<compile_context>
chip_gen: v5e
topology: v5e:2x2
jax: 0.10.0
libtpu: 0.0.40
codegen_flags: <defaults>
</compile_context>

<pallas_src>
import functools
import math

import jax
import jax.numpy as jnp
from jax import lax
from jax.experimental import pallas as pl
from jax.experimental.pallas import tpu as pltpu

_MXU_DTYPE = jnp.bfloat16      # matmul inputs / inter-kernel activations; accum stays f32
_NEG_INF = -1e9
_VMEM_LIMIT = 48 * 1024 * 1024   # <= v7x physical 64 MiB per TensorCore


def _choose_tile(dim, target, align):
    """Return (tile, padded_dim). Full-dim block if dim <= target, else aligned tile
    with dim padded up to a multiple of it (cdiv-safe grids, no dropped tails)."""
    if dim <= target:
        return dim, dim
    t = max(align, (target // align) * align)
    padded = ((dim + t - 1) // t) * t
    return t, padded


# --------------------------- fused linear kernel ----------------------------

def _linear_kernel(*refs, relu, eps, has_norm, has_residual):
    x_ref, w_ref, b_ref = refs[0], refs[1], refs[2]
    idx = 3
    if has_norm:
        na_ref, nb_ref = refs[idx], refs[idx + 1]
        idx += 2
    if has_residual:
        r_ref = refs[idx]
        idx += 1
    o_ref, acc_ref = refs[idx], refs[idx + 1]

    k = pl.program_id(2)

    @pl.when(k == 0)
    def _():
        acc_ref[...] = jnp.zeros_like(acc_ref)

    if has_norm:
        # torch reference Norm: alpha * (x - mean) / (x.std(unbiased) + eps) + bias
        x = x_ref[...].astype(jnp.float32)
        d = x.shape[-1]
        mean = jnp.mean(x, axis=-1, keepdims=True)
        c = x - mean
        var = jnp.sum(c * c, axis=-1, keepdims=True) / (d - 1)
        inv = pl.reciprocal(jnp.sqrt(var) + eps, approx=True)
        xm = (na_ref[...] * c * inv + nb_ref[...]).astype(_MXU_DTYPE)
    else:
        xm = x_ref[...]                                   # already bf16

    acc_ref[...] += jnp.dot(xm, w_ref[...], preferred_element_type=jnp.float32)

    @pl.when(k == pl.num_programs(2) - 1)
    def _():
        y = acc_ref[...] + b_ref[...]
        if relu:
            y = jnp.maximum(y, 0.0)
        if has_residual:
            y = y + r_ref[...].astype(jnp.float32)
        o_ref[...] = y.astype(o_ref.dtype)


# ----------------------------- layer-norm kernel -----------------------------

def _norm_kernel(x_ref, a_ref, b_ref, o_ref, *, eps):
    x = x_ref[...].astype(jnp.float32)
    d = x.shape[-1]
    mean = jnp.mean(x, axis=-1, keepdims=True)
    c = x - mean
    var = jnp.sum(c * c, axis=-1, keepdims=True) / (d - 1)     # torch std() is unbiased
    inv = pl.reciprocal(jnp.sqrt(var) + eps, approx=True)
    o_ref[...] = (a_ref[...] * c * inv + b_ref[...]).astype(o_ref.dtype)


def pallas_norm2d(x, alpha, bias, *, eps=1e-6, out_dtype=_MXU_DTYPE):
    M, D = x.shape
    tm, Mp = _choose_tile(M, 256, 8)
    if Mp != M:
        x = jnp.pad(x, ((0, Mp - M), (0, 0)))
    out = pl.pallas_call(
        functools.partial(_norm_kernel, eps=eps),
        grid=(Mp // tm,),
        in_specs=[pl.BlockSpec((tm, D), lambda i: (i, 0)),
                  pl.BlockSpec((1, D), lambda i: (0, 0)),
                  pl.BlockSpec((1, D), lambda i: (0, 0))],
        out_specs=pl.BlockSpec((tm, D), lambda i: (i, 0)),
        out_shape=jax.ShapeDtypeStruct((Mp, D), out_dtype),
        compiler_params=pltpu.CompilerParams(dimension_semantics=("parallel",)),
    )(x, alpha.reshape(1, D).astype(jnp.float32), bias.reshape(1, D).astype(jnp.float32))
    if Mp != M:
        out = out[:M]
    return out


def pallas_norm(x3, alpha, bias, eps=1e-6, out_dtype=_MXU_DTYPE):
    B, S, D = x3.shape
    return pallas_norm2d(x3.reshape(B * S, D), alpha, bias,
                         eps=eps, out_dtype=out_dtype).reshape(B, S, D)


# ------------------------------- linear wrapper -------------------------------

def pallas_linear(x, w, b, *, norm=None, residual=None, relu=False, eps=1e-6,
                  out_dtype=_MXU_DTYPE):
    """y = [residual +] [relu](layer_norm?(x) @ w + b).  x:(M,K) bf16, w:(K,N) bf16,
    b:(1,N) f32. Output dtype selectable (bf16 for activations, f32 for logits)."""
    M, K = x.shape
    N = w.shape[1]

    tn, Np = _choose_tile(N, 1024, 128)
    if norm is not None and Np // tn > 1:
        # Wide output: don't recompute the fused norm for every N tile —
        # normalize once with the standalone row-norm kernel instead.
        x = pallas_norm2d(x, norm["a"], norm["b"], eps=eps)
        norm = None

    x = x.astype(_MXU_DTYPE)
    w = w.astype(_MXU_DTYPE)
    b = b.astype(jnp.float32)

    tm, Mp = _choose_tile(M, 256, 8)
    if norm is not None:
        tk, Kp = K, K                               # fused norm needs the full row, unpadded
    else:
        tk, Kp = _choose_tile(K, 1024, 128)

    if Mp != M or Kp != K:
        x = jnp.pad(x, ((0, Mp - M), (0, Kp - K)))
    if Kp != K or Np != N:
        w = jnp.pad(w, ((0, Kp - K), (0, Np - N)))
    if Np != N:
        b = jnp.pad(b, ((0, 0), (0, Np - N)))
    if residual is not None:
        residual = residual.astype(_MXU_DTYPE)
        if Mp != M or Np != N:
            residual = jnp.pad(residual, ((0, Mp - M), (0, Np - N)))

    in_specs = [
        pl.BlockSpec((tm, tk), lambda i, j, k: (i, k)),
        pl.BlockSpec((tk, tn), lambda i, j, k: (k, j)),
        pl.BlockSpec((1, tn), lambda i, j, k: (0, j)),
    ]
    args = [x, w, b]
    if norm is not None:
        in_specs += [pl.BlockSpec((1, K), lambda i, j, k: (0, 0)),
                     pl.BlockSpec((1, K), lambda i, j, k: (0, 0))]
        args += [norm["a"].reshape(1, K).astype(jnp.float32),
                 norm["b"].reshape(1, K).astype(jnp.float32)]
    if residual is not None:
        in_specs.append(pl.BlockSpec((tm, tn), lambda i, j, k: (i, j)))
        args.append(residual)

    kernel = functools.partial(_linear_kernel, relu=relu, eps=eps,
                               has_norm=norm is not None,
                               has_residual=residual is not None)
    out = pl.pallas_call(
        kernel,
        grid=(Mp // tm, Np // tn, Kp // tk),
        in_specs=in_specs,
        out_specs=pl.BlockSpec((tm, tn), lambda i, j, k: (i, j)),
        out_shape=jax.ShapeDtypeStruct((Mp, Np), out_dtype),
        scratch_shapes=[pltpu.VMEM((tm, tn), jnp.float32)],
        compiler_params=pltpu.CompilerParams(
            dimension_semantics=("parallel", "parallel", "arbitrary"),
            vmem_limit_bytes=_VMEM_LIMIT),
    )(*args)
    if Mp != M or Np != N:
        out = out[:M, :N]
    return out


# ------------------------------ attention kernels -----------------------------

def _mha_core(q, k, v, bias, heads, scale):
    """q:(Sq,D) k,v:(Sk,D) bf16; bias additive f32 broadcastable to (Sq,Sk).
    Returns (Sq,D) f32 (single lane-dense slab, no per-head masked stores)."""
    D = q.shape[-1]
    dk = D // heads
    outs = []
    # NOTE: real deployments should use d_model / head-dim multiples of 128
    # so these contractions actually fill the MXU; at toy dims this is overhead.
    for h in range(heads):                                # static unroll over heads
        sl = slice(h * dk, (h + 1) * dk)
        s = lax.dot_general(q[:, sl], k[:, sl], (((1,), (1,)), ((), ())),
                            preferred_element_type=jnp.float32) * scale
        s = s + bias                                      # masked positions get -1e9
        s = s - jnp.max(s, axis=-1, keepdims=True)        # f32 softmax
        p = jnp.exp(s)
        p = p * pl.reciprocal(jnp.sum(p, axis=-1, keepdims=True), approx=True)
        outs.append(jnp.dot(p.astype(v.dtype), v[:, sl],
                            preferred_element_type=jnp.float32))
    return jnp.concatenate(outs, axis=-1) if heads > 1 else outs[0]


def _self_attn_kernel(qkv_ref, m_ref, o_ref, *, heads, scale):
    qkv = qkv_ref[...]                                    # (Sq, 3D) bf16 fused buffer
    D = qkv.shape[-1] // 3
    q, k, v = qkv[:, :D], qkv[:, D:2 * D], qkv[:, 2 * D:]
    bias = jnp.where(m_ref[...] == 0.0, _NEG_INF, 0.0).astype(jnp.float32)  # (Mq, Sk)
    o_ref[...] = _mha_core(q, k, v, bias, heads, scale).astype(o_ref.dtype)


def _cross_attn_kernel(q_ref, kv_ref, m_ref, o_ref, *, heads, scale):
    q = q_ref[...]                                        # (Sq, D) bf16
    kv = kv_ref[...]                                      # (Sk, 2D) bf16 fused buffer
    D = q.shape[-1]
    k, v = kv[:, :D], kv[:, D:]
    bias = jnp.where(m_ref[...] == 0.0, _NEG_INF, 0.0).astype(jnp.float32)
    o_ref[...] = _mha_core(q, k, v, bias, heads, scale).astype(o_ref.dtype)


def pallas_self_attention(qkv, mask, heads):
    # qkv: (B, Sq, 3D) bf16;  mask: (B, Mq, Sq) f32 with Mq in {1, Sq}
    B, Sq, D3 = qkv.shape
    D = D3 // 3
    Mq = mask.shape[1]
    scale = 1.0 / math.sqrt(D // heads)
    return pl.pallas_call(
        functools.partial(_self_attn_kernel, heads=heads, scale=scale),
        grid=(B,),
        in_specs=[pl.BlockSpec((None, Sq, D3), lambda b: (b, 0, 0)),
                  pl.BlockSpec((None, Mq, Sq), lambda b: (b, 0, 0))],
        out_specs=pl.BlockSpec((None, Sq, D), lambda b: (b, 0, 0)),
        out_shape=jax.ShapeDtypeStruct((B, Sq, D), _MXU_DTYPE),
        compiler_params=pltpu.CompilerParams(dimension_semantics=("parallel",)),
    )(qkv, mask)


def pallas_cross_attention(q, kv, mask, heads):
    # q: (B, Sq, D) bf16;  kv: (B, Sk, 2D) bf16;  mask: (B, Mq, Sk) f32
    B, Sq, D = q.shape
    Sk = kv.shape[1]
    Mq = mask.shape[1]
    scale = 1.0 / math.sqrt(D // heads)
    return pl.pallas_call(
        functools.partial(_cross_attn_kernel, heads=heads, scale=scale),
        grid=(B,),
        in_specs=[pl.BlockSpec((None, Sq, D), lambda b: (b, 0, 0)),
                  pl.BlockSpec((None, Sk, 2 * D), lambda b: (b, 0, 0)),
                  pl.BlockSpec((None, Mq, Sk), lambda b: (b, 0, 0))],
        out_specs=pl.BlockSpec((None, Sq, D), lambda b: (b, 0, 0)),
        out_shape=jax.ShapeDtypeStruct((B, Sq, D), _MXU_DTYPE),
        compiler_params=pltpu.CompilerParams(dimension_semantics=("parallel",)),
    )(q, kv, mask)


# ------------------------------ parameter init -------------------------------

def init_linear(key, din, dout, scale=0.02):
    kw, kb = jax.random.split(key)
    return {"w": (scale * jax.random.normal(kw, (din, dout), jnp.float32)).astype(_MXU_DTYPE),
            "b": scale * jax.random.normal(kb, (1, dout), jnp.float32)}


def init_mha_self(key, d_model):
    k1, k2 = jax.random.split(key)
    return {"qkv": init_linear(k1, d_model, 3 * d_model),    # fused Q/K/V projection
            "o": init_linear(k2, d_model, d_model)}


def init_mha_cross(key, d_model):
    k1, k2, k3 = jax.random.split(key, 3)
    return {"q": init_linear(k1, d_model, d_model),
            "kv": init_linear(k2, d_model, 2 * d_model),     # fused K/V projection
            "o": init_linear(k3, d_model, d_model)}


def init_norm(d_model):
    return {"a": jnp.ones((d_model,), jnp.float32),
            "b": jnp.zeros((d_model,), jnp.float32)}


def init_ff(key, d_model, d_ff):
    k1, k2 = jax.random.split(key)
    return {"l1": init_linear(k1, d_model, d_ff),
            "l2": init_linear(k2, d_ff, d_model)}


def init_encoder_layer(key, d_model, d_ff):
    k1, k2 = jax.random.split(key)
    return {"n1": init_norm(d_model), "n2": init_norm(d_model),
            "attn": init_mha_self(k1, d_model), "ff": init_ff(k2, d_model, d_ff)}


def init_decoder_layer(key, d_model, d_ff):
    k1, k2, k3 = jax.random.split(key, 3)
    return {"n1": init_norm(d_model), "n2": init_norm(d_model), "n3": init_norm(d_model),
            "attn1": init_mha_self(k1, d_model), "attn2": init_mha_cross(k2, d_model),
            "ff": init_ff(k3, d_model, d_ff)}


def init_transformer(key, src_vocab, trg_vocab, d_model, N, d_ff):
    keys = jax.random.split(key, 2 * N + 3)
    return {
        "enc_embed": 0.02 * jax.random.normal(keys[2 * N], (src_vocab, d_model), jnp.float32),
        "dec_embed": 0.02 * jax.random.normal(keys[2 * N + 1], (trg_vocab, d_model), jnp.float32),
        "enc_layers": [init_encoder_layer(keys[i], d_model, d_ff) for i in range(N)],
        "dec_layers": [init_decoder_layer(keys[N + i], d_model, d_ff) for i in range(N)],
        "enc_norm": init_norm(d_model),
        "dec_norm": init_norm(d_model),
        "out": init_linear(keys[2 * N + 2], d_model, trg_vocab),
    }


# ------------------------------- model forward -------------------------------

def positional_encoding(seq_len, d_model):
    pos = jnp.arange(seq_len, dtype=jnp.float32)[:, None]
    i = jnp.arange(0, d_model, 2, dtype=jnp.float32)[None, :]
    pe = jnp.zeros((seq_len, d_model), jnp.float32)
    pe = pe.at[:, 0::2].set(jnp.sin(pos / (10000.0 ** (2.0 * i / d_model))))
    pe = pe.at[:, 1::2].set(jnp.cos(pos / (10000.0 ** (2.0 * (i + 1.0) / d_model))))
    return pe


def embed_and_pe(tokens, embed_table, d_model):
    x = jnp.take(embed_table, tokens, axis=0)              # Embedder
    x = x * math.sqrt(d_model)                             # PositionalEncoder scale
    x = x + positional_encoding(tokens.shape[1], d_model)[None]
    return x.astype(_MXU_DTYPE)                            # dropout = identity (eval)


def self_attention_block(x, norm_p, attn_p, mask, heads):
    # x2 = norm(x); x + attn(x2, x2, x2)   [norm fused into QKV, residual into o-proj]
    B, S, D = x.shape
    xr = x.reshape(B * S, D)
    qkv = pallas_linear(xr, attn_p["qkv"]["w"], attn_p["qkv"]["b"], norm=norm_p)
    attn = pallas_self_attention(qkv.reshape(B, S, 3 * D), mask, heads)     # (B,S,D) bf16
    out = pallas_linear(attn.reshape(B * S, D), attn_p["o"]["w"], attn_p["o"]["b"],
                        residual=xr)
    return out.reshape(B, S, D)


def cross_attention_block(x, e_out, norm_p, attn_p, mask, heads):
    # x2 = norm(x); x + attn(x2, e_out, e_out)
    B, Sq, D = x.shape
    Sk = e_out.shape[1]
    xr = x.reshape(B * Sq, D)
    q = pallas_linear(xr, attn_p["q"]["w"], attn_p["q"]["b"], norm=norm_p)
    kv = pallas_linear(e_out.reshape(B * Sk, D), attn_p["kv"]["w"], attn_p["kv"]["b"])
    attn = pallas_cross_attention(q.reshape(B, Sq, D), kv.reshape(B, Sk, 2 * D), mask, heads)
    out = pallas_linear(attn.reshape(B * Sq, D), attn_p["o"]["w"], attn_p["o"]["b"],
                        residual=xr)
    return out.reshape(B, Sq, D)


def ff_block(x, norm_p, ff_p):
    # x2 = norm(x); x + l2(relu(l1(x2)))   [wide l1 -> standalone norm, residual into l2]
    B, S, D = x.shape
    xr = x.reshape(B * S, D)
    h = pallas_linear(xr, ff_p["l1"]["w"], ff_p["l1"]["b"], norm=norm_p, relu=True)
    out = pallas_linear(h, ff_p["l2"]["w"], ff_p["l2"]["b"], residual=xr)
    return out.reshape(B, S, D)


def transformer_forward(params, src, trg, src_mask, trg_mask, *, d_model, heads):
    # masks are consumed in-kernel as raw 0/1; no precomputed additive bias tensors
    src_mask = src_mask.astype(jnp.float32)
    trg_mask = trg_mask.astype(jnp.float32)

    # Encoder
    x = embed_and_pe(src, params["enc_embed"], d_model)
    for p in params["enc_layers"]:
        x = self_attention_block(x, p["n1"], p["attn"], src_mask, heads)
        x = ff_block(x, p["n2"], p["ff"])
    e_outputs = pallas_norm(x, params["enc_norm"]["a"], params["enc_norm"]["b"])

    # Decoder
    x = embed_and_pe(trg, params["dec_embed"], d_model)
    for p in params["dec_layers"]:
        x = self_attention_block(x, p["n1"], p["attn1"], trg_mask, heads)
        x = cross_attention_block(x, e_outputs, p["n2"], p["attn2"], src_mask, heads)
        x = ff_block(x, p["n3"], p["ff"])

    # Final decoder norm fused into the vocab projection (or standalone if vocab is wide)
    Bq, Sq, D = x.shape
    logits = pallas_linear(x.reshape(Bq * Sq, D), params["out"]["w"], params["out"]["b"],
                           norm=params["dec_norm"], out_dtype=jnp.float32)
    return logits.reshape(Bq, Sq, -1)


# ------------------------------------ main ------------------------------------

if __name__ == "__main__":
    B, Ss, St = 2, 8, 8
    d_model, heads, N = 32, 4, 2
    d_ff = 2048                      # FeedForward default d_ff in the reference
    src_vocab, trg_vocab = 48, 48
    # TODO(synk): training-mode dropout not implemented (forward/inference only).

    key = jax.random.PRNGKey(0)
    kp, ks, kt = jax.random.split(key, 3)
    params = init_transformer(kp, src_vocab, trg_vocab, d_model, N, d_ff)

    src = jax.random.randint(ks, (B, Ss), 0, src_vocab, dtype=jnp.int32)
    trg = jax.random.randint(kt, (B, St), 0, trg_vocab, dtype=jnp.int32)
    src_mask = jnp.ones((B, 1, Ss), jnp.float32)                           # padding mask
    trg_mask = jnp.broadcast_to(jnp.tril(jnp.ones((St, St), jnp.float32))[None],
                                (B, St, St))                               # causal mask

    fwd = jax.jit(functools.partial(transformer_forward, d_model=d_model, heads=heads))
    out = fwd(params, src, trg, src_mask, trg_mask)
    jax.block_until_ready(out)
    assert out.shape == (B, St, trg_vocab) and out.dtype == jnp.float32
    print("KERNEL_OK")
</pallas_src>

<mosaic_0001>
module attributes {stable_mosaic.version = 11 : i64} {
  func.func @_linear_kernel(%arg0: i32, %arg1: i32, %arg2: i32, %arg3: memref<16x32xbf16, #tpu.memory_space<vmem>>, %arg4: memref<32x96xbf16, #tpu.memory_space<vmem>>, %arg5: memref<1x96xf32, #tpu.memory_space<vmem>>, %arg6: memref<1x32xf32, #tpu.memory_space<vmem>>, %arg7: memref<1x32xf32, #tpu.memory_space<vmem>>, %arg8: memref<16x96xbf16, #tpu.memory_space<vmem>>, %arg9: memref<16x96xf32, #tpu.memory_space<vmem>>) attributes {dimension_semantics = [#tpu.dimension_semantics<parallel>, #tpu.dimension_semantics<parallel>, #tpu.dimension_semantics<arbitrary>], iteration_bounds = array<i64: 1, 1, 1>, scalar_prefetch = 0 : i64, scratch_operands = 1 : i64, tpu.core_type = #tpu.core_type<tc>, window_params = [{transform_indices = @transform_0, window_bounds = array<i64: 16, 32>}, {transform_indices = @transform_1, window_bounds = array<i64: 32, 96>}, {transform_indices = @transform_2, window_bounds = array<i64: 1, 96>}, {pipeline_mode = #tpu.pipeline_mode<synchronous>, transform_indices = @transform_3, window_bounds = array<i64: 1, 32>}, {pipeline_mode = #tpu.pipeline_mode<synchronous>, transform_indices = @transform_4, window_bounds = array<i64: 1, 32>}, {transform_indices = @transform_5, window_bounds = array<i64: 16, 96>}]} {
    %c0_i32 = arith.constant 0 : i32
    %0 = arith.cmpi eq, %arg2, %c0_i32 : i32
    %1 = arith.extui %0 : i1 to i32
    %c0_i32_0 = arith.constant 0 : i32
    %2 = arith.cmpi ne, %1, %c0_i32_0 : i32
    scf.if %2 {
      %cst_19 = arith.constant 0.000000e+00 : f32
      %37 = vector.broadcast %cst_19 : f32 to vector<16x96xf32>
      %c0_20 = arith.constant 0 : index
      %c0_21 = arith.constant 0 : index
      %38 = vector.load %arg9[%c0_20, %c0_21] : memref<16x96xf32, #tpu.memory_space<vmem>>, vector<16x96xf32>
      tpu.vector_store %arg9[%c0_20, %c0_21], %37 {strides = array<i32>} : memref<16x96xf32, #tpu.memory_space<vmem>>, vector<16x96xf32>,
    } else {
    }
    %c0 = arith.constant 0 : index
    %c0_1 = arith.constant 0 : index
    %3 = vector.load %arg3[%c0, %c0_1] : memref<16x32xbf16, #tpu.memory_space<vmem>>, vector<16x32xbf16>
    %4 = arith.extf %3 : vector<16x32xbf16> to vector<16x32xf32>
    %cst = arith.constant dense<0.000000e+00> : vector<16xf32>
    %5 = vector.multi_reduction <add>, %4, %cst [1] : vector<16x32xf32> to vector<16xf32>
    %6 = vector.shape_cast %5 : vector<16xf32> to vector<16x1xf32>
    %cst_2 = arith.constant 3.200000e+01 : f32
    %7 = vector.broadcast %cst_2 : f32 to vector<16x1xf32>
    %8 = arith.divf %6, %7 : vector<16x1xf32>
    %9 = vector.broadcast %8 : vector<16x1xf32> to vector<16x32xf32>
    %10 = arith.subf %4, %9 : vector<16x32xf32>
    %11 = arith.mulf %10, %10 : vector<16x32xf32>
    %cst_3 = arith.constant dense<0.000000e+00> : vector<16xf32>
    %12 = vector.multi_reduction <add>, %11, %cst_3 [1] : vector<16x32xf32> to vector<16xf32>
    %13 = vector.shape_cast %12 : vector<16xf32> to vector<16x1xf32>
    %cst_4 = arith.constant 3.100000e+01 : f32
    %14 = vector.broadcast %cst_4 : f32 to vector<16x1xf32>
    %15 = arith.divf %13, %14 : vector<16x1xf32>
    %16 = math.sqrt %15 : vector<16x1xf32>
    %cst_5 = arith.constant 9.99999997E-7 : f32
    %17 = vector.broadcast %cst_5 : f32 to vector<16x1xf32>
    %18 = arith.addf %16, %17 : vector<16x1xf32>
    %19 = tpu.reciprocal %18 {approx = true} : vector<16x1xf32> -> vector<16x1xf32>
    %c0_6 = arith.constant 0 : index
    %c0_7 = arith.constant 0 : index
    %20 = vector.load %arg6[%c0_6, %c0_7] : memref<1x32xf32, #tpu.memory_space<vmem>>, vector<1x32xf32>
    %21 = vector.broadcast %20 : vector<1x32xf32> to vector<16x32xf32>
    %22 = arith.mulf %21, %10 : vector<16x32xf32>
    %23 = vector.broadcast %19 : vector<16x1xf32> to vector<16x32xf32>
    %24 = arith.mulf %22, %23 : vector<16x32xf32>
    %c0_8 = arith.constant 0 : index
    %c0_9 = arith.constant 0 : index
    %25 = vector.load %arg7[%c0_8, %c0_9] : memref<1x32xf32, #tpu.memory_space<vmem>>, vector<1x32xf32>
    %26 = vector.broadcast %25 : vector<1x32xf32> to vector<16x32xf32>
    %27 = arith.addf %24, %26 : vector<16x32xf32>
    %28 = arith.truncf %27 : vector<16x32xf32> to vector<16x32xbf16>
    %c0_10 = arith.constant 0 : index
    %c0_11 = arith.constant 0 : index
    %29 = vector.load %arg9[%c0_10, %c0_11] : memref<16x96xf32, #tpu.memory_space<vmem>>, vector<16x96xf32>
    %c0_12 = arith.constant 0 : index
    %c0_13 = arith.constant 0 : index
    %30 = vector.load %arg4[%c0_12, %c0_13] : memref<32x96xbf16, #tpu.memory_space<vmem>>, vector<32x96xbf16>
    %cst_14 = arith.constant dense<0.000000e+00> : vector<16x96xf32>
    %31 = tpu.matmul %28, %30, %cst_14 {dimension_numbers = #tpu.dot_dimension_numbers<[1], [0], [0], [1], [0, 0, 1, 1], [], []>} : vector<16x32xbf16>, vector<32x96xbf16>, vector<16x96xf32> -> vector<16x96xf32>
    %32 = arith.addf %29, %31 : vector<16x96xf32>
    %c0_15 = arith.constant 0 : index
    %c0_16 = arith.constant 0 : index
    %33 = vector.load %arg9[%c0_15, %c0_16] : memref<16x96xf32, #tpu.memory_space<vmem>>, vector<16x96xf32>
    tpu.vector_store %arg9[%c0_15, %c0_16], %32 {strides = array<i32>} : memref<16x96xf32, #tpu.memory_space<vmem>>, vector<16x96xf32>,
    %c0_i32_17 = arith.constant 0 : i32
    %34 = arith.cmpi eq, %arg2, %c0_i32_17 : i32
    %35 = arith.extui %34 : i1 to i32
    %c0_i32_18 = arith.constant 0 : i32
    %36 = arith.cmpi ne, %35, %c0_i32_18 : i32
    scf.if %36 {
      %c0_19 = arith.constant 0 : index
      %c0_20 = arith.constant 0 : index
      %37 = vector.load %arg9[%c0_19, %c0_20] : memref<16x96xf32, #tpu.memory_space<vmem>>, vector<16x96xf32>
      %c0_21 = arith.constant 0 : index
      %c0_22 = arith.constant 0 : index
      %38 = vector.load %arg5[%c0_21, %c0_22] : memref<1x96xf32, #tpu.memory_space<vmem>>, vector<1x96xf32>
      %39 = vector.broadcast %38 : vector<1x96xf32> to vector<16x96xf32>
      %40 = arith.addf %37, %39 : vector<16x96xf32>
      %41 = arith.truncf %40 : vector<16x96xf32> to vector<16x96xbf16>
      %c0_23 = arith.constant 0 : index
      %c0_24 = arith.constant 0 : index
      %42 = vector.load %arg8[%c0_23, %c0_24] : memref<16x96xbf16, #tpu.memory_space<vmem>>, vector<16x96xbf16>
      tpu.vector_store %arg8[%c0_23, %c0_24], %41 {strides = array<i32>} : memref<16x96xbf16, #tpu.memory_space<vmem>>, vector<16x96xbf16>,
    } else {
    }
    return
  }
  func.func @transform_0(%arg0: i32, %arg1: i32, %arg2: i32) -> (i32, i32) {
    %c0_i32 = arith.constant 0 : i32
    return %arg0, %arg2 : i32, i32
  }
  func.func @transform_1(%arg0: i32, %arg1: i32, %arg2: i32) -> (i32, i32) {
    %c0_i32 = arith.constant 0 : i32
    return %arg2, %arg1 : i32, i32
  }
  func.func @transform_2(%arg0: i32, %arg1: i32, %arg2: i32) -> (i32, i32) {
    %c0_i32 = arith.constant 0 : i32
    %c0_i32_0 = arith.constant 0 : i32
    return %c0_i32, %arg1 : i32, i32
  }
  func.func @transform_3(%arg0: i32, %arg1: i32, %arg2: i32) -> (i32, i32) {
    %c0_i32 = arith.constant 0 : i32
    %c0_i32_0 = arith.constant 0 : i32
    %c0_i32_1 = arith.constant 0 : i32
    return %c0_i32, %c0_i32_0 : i32, i32
  }
  func.func @transform_4(%arg0: i32, %arg1: i32, %arg2: i32) -> (i32, i32) {
    %c0_i32 = arith.constant 0 : i32
    %c0_i32_0 = arith.constant 0 : i32
    %c0_i32_1 = arith.constant 0 : i32
    return %c0_i32, %c0_i32_0 : i32, i32
  }
  func.func @transform_5(%arg0: i32, %arg1: i32, %arg2: i32) -> (i32, i32) {
    %c0_i32 = arith.constant 0 : i32
    return %arg0, %arg1 : i32, i32
  }
}

module attributes {stable_mosaic.version = 11 : i64} {
  func.func @_linear_kernel(%arg0: i32, %arg1: i32, %arg2: i32, %arg3: memref<16x32xbf16, #tpu.memory_space<vmem>>, %arg4: memref<32x32xbf16, #tpu.memory_space<vmem>>, %arg5: memref<1x32xf32, #tpu.memory_space<vmem>>, %arg6: memref<16x32xbf16, #tpu.memory_space<vmem>>, %arg7: memref<16x32xbf16, #tpu.memory_space<vmem>>, %arg8: memref<16x32xf32, #tpu.memory_space<vmem>>) attributes {dimension_semantics = [#tpu.dimension_semantics<parallel>, #tpu.dimension_semantics<parallel>, #tpu.dimension_semantics<arbitrary>], iteration_bounds = array<i64: 1, 1, 1>, scalar_prefetch = 0 : i64, scratch_operands = 1 : i64, tpu.core_type = #tpu.core_type<tc>, window_params = [{transform_indices = @transform_0, window_bounds = array<i64: 16, 32>}, {transform_indices = @transform_1, window_bounds = array<i64: 32, 32>}, {transform_indices = @transform_2, window_bounds = array<i64: 1, 32>}, {transform_indices = @transform_3, window_bounds = array<i64: 16, 32>}, {transform_indices = @transform_4, window_bounds = array<i64: 16, 32>}]} {
    %c0_i32 = arith.constant 0 : i32
    %0 = arith.cmpi eq, %arg2, %c0_i32 : i32
    %1 = arith.extui %0 : i1 to i32
    %c0_i32_0 = arith.constant 0 : i32
    %2 = arith.cmpi ne, %1, %c0_i32_0 : i32
    scf.if %2 {
      %cst_10 = arith.constant 0.000000e+00 : f32
      %12 = vector.broadcast %cst_10 : f32 to vector<16x32xf32>
      %c0_11 = arith.constant 0 : index
      %c0_12 = arith.constant 0 : index
      %13 = vector.load %arg8[%c0_11, %c0_12] : memref<16x32xf32, #tpu.memory_space<vmem>>, vector<16x32xf32>
      tpu.vector_store %arg8[%c0_11, %c0_12], %12 {strides = array<i32>} : memref<16x32xf32, #tpu.memory_space<vmem>>, vector<16x32xf32>,
    } else {
    }
    %c0 = arith.constant 0 : index
    %c0_1 = arith.constant 0 : index
    %3 = vector.load %arg3[%c0, %c0_1] : memref<16x32xbf16, #tpu.memory_space<vmem>>, vector<16x32xbf16>
    %c0_2 = arith.constant 0 : index
    %c0_3 = arith.constant 0 : index
    %4 = vector.load %arg8[%c0_2, %c0_3] : memref<16x32xf32, #tpu.memory_space<vmem>>, vector<16x32xf32>
    %c0_4 = arith.constant 0 : index
    %c0_5 = arith.constant 0 : index
    %5 = vector.load %arg4[%c0_4, %c0_5] : memref<32x32xbf16, #tpu.memory_space<vmem>>, vector<32x32xbf16>
    %cst = arith.constant dense<0.000000e+00> : vector<16x32xf32>
    %6 = tpu.matmul %3, %5, %cst {dimension_numbers = #tpu.dot_dimension_numbers<[1], [0], [0], [1], [0, 0, 1, 1], [], []>} : vector<16x32xbf16>, vector<32x32xbf16>, vector<16x32xf32> -> vector<16x32xf32>
    %7 = arith.addf %4, %6 : vector<16x32xf32>
    %c0_6 = arith.constant 0 : index
    %c0_7 = arith.constant 0 : index
    %8 = vector.load %arg8[%c0_6, %c0_7] : memref<16x32xf32, #tpu.memory_space<vmem>>, vector<16x32xf32>
    tpu.vector_store %arg8[%c0_6, %c0_7], %7 {strides = array<i32>} : memref<16x32xf32, #tpu.memory_space<vmem>>, vector<16x32xf32>,
    %c0_i32_8 = arith.constant 0 : i32
    %9 = arith.cmpi eq, %arg2, %c0_i32_8 : i32
    %10 = arith.extui %9 : i1 to i32
    %c0_i32_9 = arith.constant 0 : i32
    %11 = arith.cmpi ne, %10, %c0_i32_9 : i32
    scf.if %11 {
      %c0_10 = arith.constant 0 : index
      %c0_11 = arith.constant 0 : index
      %12 = vector.load %arg8[%c0_10, %c0_11] : memref<16x32xf32, #tpu.memory_space<vmem>>, vector<16x32xf32>
      %c0_12 = arith.constant 0 : index
      %c0_13 = arith.constant 0 : index
      %13 = vector.load %arg5[%c0_12, %c0_13] : memref<1x32xf32, #tpu.memory_space<vmem>>, vector<1x32xf32>
      %14 = vector.broadcast %13 : vector<1x32xf32> to vector<16x32xf32>
      %15 = arith.addf %12, %14 : vector<16x32xf32>
      %c0_14 = arith.constant 0 : index
      %c0_15 = arith.constant 0 : index
      %16 = vector.load %arg6[%c0_14, %c0_15] : memref<16x32xbf16, #tpu.memory_space<vmem>>, vector<16x32xbf16>
      %17 = arith.extf %16 : vector<16x32xbf16> to vector<16x32xf32>
      %18 = arith.addf %15, %17 : vector<16x32xf32>
      %19 = arith.truncf %18 : vector<16x32xf32> to vector<16x32xbf16>
      %c0_16 = arith.constant 0 : index
      %c0_17 = arith.constant 0 : index
      %20 = vector.load %arg7[%c0_16, %c0_17] : memref<16x32xbf16, #tpu.memory_space<vmem>>, vector<16x32xbf16>
      tpu.vector_store %arg7[%c0_16, %c0_17], %19 {strides = array<i32>} : memref<16x32xbf16, #tpu.memory_space<vmem>>, vector<16x32xbf16>,
    } else {
    }
    return
  }
  func.func @transform_0(%arg0: i32, %arg1: i32, %arg2: i32) -> (i32, i32) {
    %c0_i32 = arith.constant 0 : i32
    return %arg0, %arg2 : i32, i32
  }
  func.func @transform_1(%arg0: i32, %arg1: i32, %arg2: i32) -> (i32, i32) {
    %c0_i32 = arith.constant 0 : i32
    return %arg2, %arg1 : i32, i32
  }
  func.func @transform_2(%arg0: i32, %arg1: i32, %arg2: i32) -> (i32, i32) {
    %c0_i32 = arith.constant 0 : i32
    %c0_i32_0 = arith.constant 0 : i32
    return %c0_i32, %arg1 : i32, i32
  }
  func.func @transform_3(%arg0: i32, %arg1: i32, %arg2: i32) -> (i32, i32) {
    %c0_i32 = arith.constant 0 : i32
    return %arg0, %arg1 : i32, i32
  }
  func.func @transform_4(%arg0: i32, %arg1: i32, %arg2: i32) -> (i32, i32) {
    %c0_i32 = arith.constant 0 : i32
    return %arg0, %arg1 : i32, i32
  }
}

module attributes {stable_mosaic.version = 11 : i64} {
  func.func @_self_attn_kernel(%arg0: i32, %arg1: memref<1x8x96xbf16, #tpu.memory_space<vmem>>, %arg2: memref<1x1x8xf32, #tpu.memory_space<vmem>>, %arg3: memref<1x8x32xbf16, #tpu.memory_space<vmem>>) attributes {dimension_semantics = [#tpu.dimension_semantics<parallel>], iteration_bounds = array<i64: 2>, scalar_prefetch = 0 : i64, scratch_operands = 0 : i64, tpu.core_type = #tpu.core_type<tc>, window_params = [{transform_indices = @transform_0, window_bounds = array<i64: 1, 8, 96>}, {transform_indices = @transform_1, window_bounds = array<i64: 1, 1, 8>}, {transform_indices = @transform_2, window_bounds = array<i64: 1, 8, 32>}]} {
    %c0 = arith.constant 0 : index
    %c0_0 = arith.constant 0 : index
    %c0_1 = arith.constant 0 : index
    %0 = vector.load %arg1[%c0, %c0_0, %c0_1] : memref<1x8x96xbf16, #tpu.memory_space<vmem>>, vector<1x8x96xbf16>
    %1 = vector.shape_cast %0 : vector<1x8x96xbf16> to vector<8x96xbf16>
    %2 = vector.extract_strided_slice %1 {offsets = [0, 0], sizes = [8, 32], strides = [1, 1]} : vector<8x96xbf16> to vector<8x32xbf16>
    %3 = vector.extract_strided_slice %1 {offsets = [0, 32], sizes = [8, 32], strides = [1, 1]} : vector<8x96xbf16> to vector<8x32xbf16>
    %4 = vector.extract_strided_slice %1 {offsets = [0, 64], sizes = [8, 32], strides = [1, 1]} : vector<8x96xbf16> to vector<8x32xbf16>
    %c0_2 = arith.constant 0 : index
    %c0_3 = arith.constant 0 : index
    %c0_4 = arith.constant 0 : index
    %5 = vector.load %arg2[%c0_2, %c0_3, %c0_4] : memref<1x1x8xf32, #tpu.memory_space<vmem>>, vector<1x1x8xf32>
    %6 = vector.shape_cast %5 : vector<1x1x8xf32> to vector<1x8xf32>
    %cst = arith.constant 0.000000e+00 : f32
    %7 = vector.broadcast %cst : f32 to vector<1x8xf32>
    %8 = arith.cmpf oeq, %6, %7 : vector<1x8xf32>
    %cst_5 = arith.constant -1.000000e+09 : f32
    %cst_6 = arith.constant 0.000000e+00 : f32
    %9 = vector.broadcast %cst_5 : f32 to vector<1x8xf32>
    %10 = vector.broadcast %cst_6 : f32 to vector<1x8xf32>
    %11 = arith.select %8, %9, %10 : vector<1x8xi1>, vector<1x8xf32>
    %12 = vector.extract_strided_slice %2 {offsets = [0, 0], sizes = [8, 8], strides = [1, 1]} : vector<8x32xbf16> to vector<8x8xbf16>
    %13 = vector.extract_strided_slice %3 {offsets = [0, 0], sizes = [8, 8], strides = [1, 1]} : vector<8x32xbf16> to vector<8x8xbf16>
    %cst_7 = arith.constant dense<0.000000e+00> : vector<8x8xf32>
    %14 = tpu.matmul %12, %13, %cst_7 {dimension_numbers = #tpu.dot_dimension_numbers<[1], [1], [0], [0], [0, 0, 1, 0], [], []>} : vector<8x8xbf16>, vector<8x8xbf16>, vector<8x8xf32> -> vector<8x8xf32>
    %cst_8 = arith.constant 0.353553385 : f32
    %15 = vector.broadcast %cst_8 : f32 to vector<8x8xf32>
    %16 = arith.mulf %14, %15 : vector<8x8xf32>
    %17 = vector.broadcast %11 : vector<1x8xf32> to vector<8x8xf32>
    %18 = arith.addf %16, %17 : vector<8x8xf32>
    %cst_9 = arith.constant dense<0xFF800000> : vector<8xf32>
    %19 = vector.multi_reduction <maximumf>, %18, %cst_9 [1] : vector<8x8xf32> to vector<8xf32>
    %20 = vector.shape_cast %19 : vector<8xf32> to vector<8x1xf32>
    %21 = vector.broadcast %20 : vector<8x1xf32> to vector<8x8xf32>
    %22 = arith.subf %18, %21 : vector<8x8xf32>
    %23 = math.exp %22 : vector<8x8xf32>
    %cst_10 = arith.constant dense<0.000000e+00> : vector<8xf32>
    %24 = vector.multi_reduction <add>, %23, %cst_10 [1] : vector<8x8xf32> to vector<8xf32>
    %25 = vector.shape_cast %24 : vector<8xf32> to vector<8x1xf32>
    %26 = tpu.reciprocal %25 {approx = true} : vector<8x1xf32> -> vector<8x1xf32>
    %27 = vector.broadcast %26 : vector<8x1xf32> to vector<8x8xf32>
    %28 = arith.mulf %23, %27 : vector<8x8xf32>
    %29 = arith.truncf %28 : vector<8x8xf32> to vector<8x8xbf16>
    %30 = vector.extract_strided_slice %4 {offsets = [0, 0], sizes = [8, 8], strides = [1, 1]} : vector<8x32xbf16> to vector<8x8xbf16>
    %cst_11 = arith.constant dense<0.000000e+00> : vector<8x8xf32>
    %31 = tpu.matmul %29, %30, %cst_11 {dimension_numbers = #tpu.dot_dimension_numbers<[1], [0], [0], [1], [0, 0, 1, 1], [], []>} : vector<8x8xbf16>, vector<8x8xbf16>, vector<8x8xf32> -> vector<8x8xf32>
    %32 = vector.extract_strided_slice %2 {offsets = [0, 8], sizes = [8, 8], strides = [1, 1]} : vector<8x32xbf16> to vector<8x8xbf16>
    %33 = vector.extract_strided_slice %3 {offsets = [0, 8], sizes = [8, 8], strides = [1, 1]} : vector<8x32xbf16> to vector<8x8xbf16>
    %cst_12 = arith.constant dense<0.000000e+00> : vector<8x8xf32>
    %34 = tpu.matmul %32, %33, %cst_12 {dimension_numbers = #tpu.dot_dimension_numbers<[1], [1], [0], [0], [0, 0, 1, 0], [], []>} : vector<8x8xbf16>, vector<8x8xbf16>, vector<8x8xf32> -> vector<8x8xf32>
    %cst_13 = arith.constant 0.353553385 : f32
    %35 = vector.broadcast %cst_13 : f32 to vector<8x8xf32>
    %36 = arith.mulf %34, %35 : vector<8x8xf32>
    %37 = vector.broadcast %11 : vector<1x8xf32> to vector<8x8xf32>
    %38 = arith.addf %36, %37 : vector<8x8xf32>
    %cst_14 = arith.constant dense<0xFF800000> : vector<8xf32>
    %39 = vector.multi_reduction <maximumf>, %38, %cst_14 [1] : vector<8x8xf32> to vector<8xf32>
    %40 = vector.shape_cast %39 : vector<8xf32> to vector<8x1xf32>
    %41 = vector.broadcast %40 : vector<8x1xf32> to vector<8x8xf32>
    %42 = arith.subf %38, %41 : vector<8x8xf32>
    %43 = math.exp %42 : vector<8x8xf32>
    %cst_15 = arith.constant dense<0.000000e+00> : vector<8xf32>
    %44 = vector.multi_reduction <add>, %43, %cst_15 [1] : vector<8x8xf32> to vector<8xf32>
    %45 = vector.shape_cast %44 : vector<8xf32> to vector<8x1xf32>
    %46 = tpu.reciprocal %45 {approx = true} : vector<8x1xf32> -> vector<8x1xf32>
    %47 = vector.broadcast %46 : vector<8x1xf32> to vector<8x8xf32>
    %48 = arith.mulf %43, %47 : vector<8x8xf32>
    %49 = arith.truncf %48 : vector<8x8xf32> to vector<8x8xbf16>
    %50 = vector.extract_strided_slice %4 {offsets = [0, 8], sizes = [8, 8], strides = [1, 1]} : vector<8x32xbf16> to vector<8x8xbf16>
    %cst_16 = arith.constant dense<0.000000e+00> : vector<8x8xf32>
    %51 = tpu.matmul %49, %50, %cst_16 {dimension_numbers = #tpu.dot_dimension_numbers<[1], [0], [0], [1], [0, 0, 1, 1], [], []>} : vector<8x8xbf16>, vector<8x8xbf16>, vector<8x8xf32> -> vector<8x8xf32>
    %52 = vector.extract_strided_slice %2 {offsets = [0, 16], sizes = [8, 8], strides = [1, 1]} : vector<8x32xbf16> to vector<8x8xbf16>
    %53 = vector.extract_strided_slice %3 {offsets = [0, 16], sizes = [8, 8], strides = [1, 1]} : vector<8x32xbf16> to vector<8x8xbf16>
    %cst_17 = arith.constant dense<0.000000e+00> : vector<8x8xf32>
    %54 = tpu.matmul %52, %53, %cst_17 {dimension_numbers = #tpu.dot_dimension_numbers<[1], [1], [0], [0], [0, 0, 1, 0], [], []>} : vector<8x8xbf16>, vector<8x8xbf16>, vector<8x8xf32> -> vector<8x8xf32>
    %cst_18 = arith.constant 0.353553385 : f32
    %55 = vector.broadcast %cst_18 : f32 to vector<8x8xf32>
    %56 = arith.mulf %54, %55 : vector<8x8xf32>
    %57 = vector.broadcast %11 : vector<1x8xf32> to vector<8x8xf32>
    %58 = arith.addf %56, %57 : vector<8x8xf32>
    %cst_19 = arith.constant dense<0xFF800000> : vector<8xf32>
    %59 = vector.multi_reduction <maximumf>, %58, %cst_19 [1] : vector<8x8xf32> to vector<8xf32>
    %60 = vector.shape_cast %59 : vector<8xf32> to vector<8x1xf32>
    %61 = vector.broadcast %60 : vector<8x1xf32> to vector<8x8xf32>
    %62 = arith.subf %58, %61 : vector<8x8xf32>
    %63 = math.exp %62 : vector<8x8xf32>
    %cst_20 = arith.constant dense<0.000000e+00> : vector<8xf32>
    %64 = vector.multi_reduction <add>, %63, %cst_20 [1] : vector<8x8xf32> to vector<8xf32>
    %65 = vector.shape_cast %64 : vector<8xf32> to vector<8x1xf32>
    %66 = tpu.reciprocal %65 {approx = true} : vector<8x1xf32> -> vector<8x1xf32>
    %67 = vector.broadcast %66 : vector<8x1xf32> to vector<8x8xf32>
    %68 = arith.mulf %63, %67 : vector<8x8xf32>
    %69 = arith.truncf %68 : vector<8x8xf32> to vector<8x8xbf16>
    %70 = vector.extract_strided_slice %4 {offsets = [0, 16], sizes = [8, 8], strides = [1, 1]} : vector<8x32xbf16> to vector<8x8xbf16>
    %cst_21 = arith.constant dense<0.000000e+00> : vector<8x8xf32>
    %71 = tpu.matmul %69, %70, %cst_21 {dimension_numbers = #tpu.dot_dimension_numbers<[1], [0], [0], [1], [0, 0, 1, 1], [], []>} : vector<8x8xbf16>, vector<8x8xbf16>, vector<8x8xf32> -> vector<8x8xf32>
    %72 = vector.extract_strided_slice %2 {offsets = [0, 24], sizes = [8, 8], strides = [1, 1]} : vector<8x32xbf16> to vector<8x8xbf16>
    %73 = vector.extract_strided_slice %3 {offsets = [0, 24], sizes = [8, 8], strides = [1, 1]} : vector<8x32xbf16> to vector<8x8xbf16>
    %cst_22 = arith.constant dense<0.000000e+00> : vector<8x8xf32>
    %74 = tpu.matmul %72, %73, %cst_22 {dimension_numbers = #tpu.dot_dimension_numbers<[1], [1], [0], [0], [0, 0, 1, 0], [], []>} : vector<8x8xbf16>, vector<8x8xbf16>, vector<8x8xf32> -> vector<8x8xf32>
    %cst_23 = arith.constant 0.353553385 : f32
    %75 = vector.broadcast %cst_23 : f32 to vector<8x8xf32>
    %76 = arith.mulf %74, %75 : vector<8x8xf32>
    %77 = vector.broadcast %11 : vector<1x8xf32> to vector<8x8xf32>
    %78 = arith.addf %76, %77 : vector<8x8xf32>
    %cst_24 = arith.constant dense<0xFF800000> : vector<8xf32>
    %79 = vector.multi_reduction <maximumf>, %78, %cst_24 [1] : vector<8x8xf32> to vector<8xf32>
    %80 = vector.shape_cast %79 : vector<8xf32> to vector<8x1xf32>
    %81 = vector.broadcast %80 : vector<8x1xf32> to vector<8x8xf32>
    %82 = arith.subf %78, %81 : vector<8x8xf32>
    %83 = math.exp %82 : vector<8x8xf32>
    %cst_25 = arith.constant dense<0.000000e+00> : vector<8xf32>
    %84 = vector.multi_reduction <add>, %83, %cst_25 [1] : vector<8x8xf32> to vector<8xf32>
    %85 = vector.shape_cast %84 : vector<8xf32> to vector<8x1xf32>
    %86 = tpu.reciprocal %85 {approx = true} : vector<8x1xf32> -> vector<8x1xf32>
    %87 = vector.broadcast %86 : vector<8x1xf32> to vector<8x8xf32>
    %88 = arith.mulf %83, %87 : vector<8x8xf32>
    %89 = arith.truncf %88 : vector<8x8xf32> to vector<8x8xbf16>
    %90 = vector.extract_strided_slice %4 {offsets = [0, 24], sizes = [8, 8], strides = [1, 1]} : vector<8x32xbf16> to vector<8x8xbf16>
    %cst_26 = arith.constant dense<0.000000e+00> : vector<8x8xf32>
    %91 = tpu.matmul %89, %90, %cst_26 {dimension_numbers = #tpu.dot_dimension_numbers<[1], [0], [0], [1], [0, 0, 1, 1], [], []>} : vector<8x8xbf16>, vector<8x8xbf16>, vector<8x8xf32> -> vector<8x8xf32>
    %92 = tpu.concatenate %31, %51, %71, %91 in 1 : vector<8x8xf32>, vector<8x8xf32>, vector<8x8xf32>, vector<8x8xf32> -> vector<8x32xf32>
    %93 = arith.truncf %92 : vector<8x32xf32> to vector<8x32xbf16>
    %c0_27 = arith.constant 0 : index
    %c0_28 = arith.constant 0 : index
    %c0_29 = arith.constant 0 : index
    %94 = vector.load %arg3[%c0_27, %c0_28, %c0_29] : memref<1x8x32xbf16, #tpu.memory_space<vmem>>, vector<1x8x32xbf16>
    %95 = vector.shape_cast %94 : vector<1x8x32xbf16> to vector<8x32xbf16>
    %96 = vector.shape_cast %93 : vector<8x32xbf16> to vector<1x8x32xbf16>
    tpu.vector_store %arg3[%c0_27, %c0_28, %c0_29], %96 {strides = array<i32>} : memref<1x8x32xbf16, #tpu.memory_space<vmem>>, vector<1x8x32xbf16>,
    return
  }
  func.func @transform_0(%arg0: i32) -> (i32, i32, i32) {
    %c0_i32 = arith.constant 0 : i32
    %c0_i32_0 = arith.constant 0 : i32
    %c0_i32_1 = arith.constant 0 : i32
    return %arg0, %c0_i32, %c0_i32_0 : i32, i32, i32
  }
  func.func @transform_1(%arg0: i32) -> (i32, i32, i32) {
    %c0_i32 = arith.constant 0 : i32
    %c0_i32_0 = arith.constant 0 : i32
    %c0_i32_1 = arith.constant 0 : i32
    return %arg0, %c0_i32, %c0_i32_0 : i32, i32, i32
  }
  func.func @transform_2(%arg0: i32) -> (i32, i32, i32) {
    %c0_i32 = arith.constant 0 : i32
    %c0_i32_0 = arith.constant 0 : i32
    %c0_i32_1 = arith.constant 0 : i32
    return %arg0, %c0_i32, %c0_i32_0 : i32, i32, i32
  }
}

module attributes {stable_mosaic.version = 11 : i64} {
  func.func @_norm_kernel(%arg0: i32, %arg1: memref<16x32xbf16, #tpu.memory_space<vmem>>, %arg2: memref<1x32xf32, #tpu.memory_space<vmem>>, %arg3: memref<1x32xf32, #tpu.memory_space<vmem>>, %arg4: memref<16x32xbf16, #tpu.memory_space<vmem>>) attributes {dimension_semantics = [#tpu.dimension_semantics<parallel>], iteration_bounds = array<i64: 1>, scalar_prefetch = 0 : i64, scratch_operands = 0 : i64, tpu.core_type = #tpu.core_type<tc>, window_params = [{transform_indices = @transform_0, window_bounds = array<i64: 16, 32>}, {pipeline_mode = #tpu.pipeline_mode<synchronous>, transform_indices = @transform_1, window_bounds = array<i64: 1, 32>}, {pipeline_mode = #tpu.pipeline_mode<synchronous>, transform_indices = @transform_2, window_bounds = array<i64: 1, 32>}, {transform_indices = @transform_3, window_bounds = array<i64: 16, 32>}]} {
    %c0 = arith.constant 0 : index
    %c0_0 = arith.constant 0 : index
    %0 = vector.load %arg1[%c0, %c0_0] : memref<16x32xbf16, #tpu.memory_space<vmem>>, vector<16x32xbf16>
    %1 = arith.extf %0 : vector<16x32xbf16> to vector<16x32xf32>
    %cst = arith.constant dense<0.000000e+00> : vector<16xf32>
    %2 = vector.multi_reduction <add>, %1, %cst [1] : vector<16x32xf32> to vector<16xf32>
    %3 = vector.shape_cast %2 : vector<16xf32> to vector<16x1xf32>
    %cst_1 = arith.constant 3.200000e+01 : f32
    %4 = vector.broadcast %cst_1 : f32 to vector<16x1xf32>
    %5 = arith.divf %3, %4 : vector<16x1xf32>
    %6 = vector.broadcast %5 : vector<16x1xf32> to vector<16x32xf32>
    %7 = arith.subf %1, %6 : vector<16x32xf32>
    %8 = arith.mulf %7, %7 : vector<16x32xf32>
    %cst_2 = arith.constant dense<0.000000e+00> : vector<16xf32>
    %9 = vector.multi_reduction <add>, %8, %cst_2 [1] : vector<16x32xf32> to vector<16xf32>
    %10 = vector.shape_cast %9 : vector<16xf32> to vector<16x1xf32>
    %cst_3 = arith.constant 3.100000e+01 : f32
    %11 = vector.broadcast %cst_3 : f32 to vector<16x1xf32>
    %12 = arith.divf %10, %11 : vector<16x1xf32>
    %13 = math.sqrt %12 : vector<16x1xf32>
    %cst_4 = arith.constant 9.99999997E-7 : f32
    %14 = vector.broadcast %cst_4 : f32 to vector<16x1xf32>
    %15 = arith.addf %13, %14 : vector<16x1xf32>
    %16 = tpu.reciprocal %15 {approx = true} : vector<16x1xf32> -> vector<16x1xf32>
    %c0_5 = arith.constant 0 : index
    %c0_6 = arith.constant 0 : index
    %17 = vector.load %arg2[%c0_5, %c0_6] : memref<1x32xf32, #tpu.memory_space<vmem>>, vector<1x32xf32>
    %18 = vector.broadcast %17 : vector<1x32xf32> to vector<16x32xf32>
    %19 = arith.mulf %18, %7 : vector<16x32xf32>
    %20 = vector.broadcast %16 : vector<16x1xf32> to vector<16x32xf32>
    %21 = arith.mulf %19, %20 : vector<16x32xf32>
    %c0_7 = arith.constant 0 : index
    %c0_8 = arith.constant 0 : index
    %22 = vector.load %arg3[%c0_7, %c0_8] : memref<1x32xf32, #tpu.memory_space<vmem>>, vector<1x32xf32>
    %23 = vector.broadcast %22 : vector<1x32xf32> to vector<16x32xf32>
    %24 = arith.addf %21, %23 : vector<16x32xf32>
    %25 = arith.truncf %24 : vector<16x32xf32> to vector<16x32xbf16>
    %c0_9 = arith.constant 0 : index
    %c0_10 = arith.constant 0 : index
    %26 = vector.load %arg4[%c0_9, %c0_10] : memref<16x32xbf16, #tpu.memory_space<vmem>>, vector<16x32xbf16>
    tpu.vector_store %arg4[%c0_9, %c0_10], %25 {strides = array<i32>} : memref<16x32xbf16, #tpu.memory_space<vmem>>, vector<16x32xbf16>,
    return
  }
  func.func @transform_0(%arg0: i32) -> (i32, i32) {
    %c0_i32 = arith.constant 0 : i32
    %c0_i32_0 = arith.constant 0 : i32
    return %arg0, %c0_i32 : i32, i32
  }
  func.func @transform_1(%arg0: i32) -> (i32, i32) {
    %c0_i32 = arith.constant 0 : i32
    %c0_i32_0 = arith.constant 0 : i32
    %c0_i32_1 = arith.constant 0 : i32
    return %c0_i32, %c0_i32_0 : i32, i32
  }
  func.func @transform_2(%arg0: i32) -> (i32, i32) {
    %c0_i32 = arith.constant 0 : i32
    %c0_i32_0 = arith.constant 0 : i32
    %c0_i32_1 = arith.constant 0 : i32
    return %c0_i32, %c0_i32_0 : i32, i32
  }
  func.func @transform_3(%arg0: i32) -> (i32, i32) {
    %c0_i32 = arith.constant 0 : i32
    %c0_i32_0 = arith.constant 0 : i32
    return %arg0, %c0_i32 : i32, i32
  }
}

module attributes {stable_mosaic.version = 11 : i64} {
  func.func @_linear_kernel(%arg0: i32, %arg1: i32, %arg2: i32, %arg3: memref<16x32xbf16, #tpu.memory_space<vmem>>, %arg4: memref<32x1024xbf16, #tpu.memory_space<vmem>>, %arg5: memref<1x1024xf32, #tpu.memory_space<vmem>>, %arg6: memref<16x1024xbf16, #tpu.memory_space<vmem>>, %arg7: memref<16x1024xf32, #tpu.memory_space<vmem>>) attributes {dimension_semantics = [#tpu.dimension_semantics<parallel>, #tpu.dimension_semantics<parallel>, #tpu.dimension_semantics<arbitrary>], iteration_bounds = array<i64: 1, 2, 1>, scalar_prefetch = 0 : i64, scratch_operands = 1 : i64, tpu.core_type = #tpu.core_type<tc>, window_params = [{transform_indices = @transform_0, window_bounds = array<i64: 16, 32>}, {transform_indices = @transform_1, window_bounds = array<i64: 32, 1024>}, {transform_indices = @transform_2, window_bounds = array<i64: 1, 1024>}, {transform_indices = @transform_3, window_bounds = array<i64: 16, 1024>}]} {
    %c0_i32 = arith.constant 0 : i32
    %0 = arith.cmpi eq, %arg2, %c0_i32 : i32
    %1 = arith.extui %0 : i1 to i32
    %c0_i32_0 = arith.constant 0 : i32
    %2 = arith.cmpi ne, %1, %c0_i32_0 : i32
    scf.if %2 {
      %cst_10 = arith.constant 0.000000e+00 : f32
      %12 = vector.broadcast %cst_10 : f32 to vector<16x1024xf32>
      %c0_11 = arith.constant 0 : index
      %c0_12 = arith.constant 0 : index
      %13 = vector.load %arg7[%c0_11, %c0_12] : memref<16x1024xf32, #tpu.memory_space<vmem>>, vector<16x1024xf32>
      tpu.vector_store %arg7[%c0_11, %c0_12], %12 {strides = array<i32>} : memref<16x1024xf32, #tpu.memory_space<vmem>>, vector<16x1024xf32>,
    } else {
    }
    %c0 = arith.constant 0 : index
    %c0_1 = arith.constant 0 : index
    %3 = vector.load %arg3[%c0, %c0_1] : memref<16x32xbf16, #tpu.memory_space<vmem>>, vector<16x32xbf16>
    %c0_2 = arith.constant 0 : index
    %c0_3 = arith.constant 0 : index
    %4 = vector.load %arg7[%c0_2, %c0_3] : memref<16x1024xf32, #tpu.memory_space<vmem>>, vector<16x1024xf32>
    %c0_4 = arith.constant 0 : index
    %c0_5 = arith.constant 0 : index
    %5 = vector.load %arg4[%c0_4, %c0_5] : memref<32x1024xbf16, #tpu.memory_space<vmem>>, vector<32x1024xbf16>
    %cst = arith.constant dense<0.000000e+00> : vector<16x1024xf32>
    %6 = tpu.matmul %3, %5, %cst {dimension_numbers = #tpu.dot_dimension_numbers<[1], [0], [0], [1], [0, 0, 1, 1], [], []>} : vector<16x32xbf16>, vector<32x1024xbf16>, vector<16x1024xf32> -> vector<16x1024xf32>
    %7 = arith.addf %4, %6 : vector<16x1024xf32>
    %c0_6 = arith.constant 0 : index
    %c0_7 = arith.constant 0 : index
    %8 = vector.load %arg7[%c0_6, %c0_7] : memref<16x1024xf32, #tpu.memory_space<vmem>>, vector<16x1024xf32>
    tpu.vector_store %arg7[%c0_6, %c0_7], %7 {strides = array<i32>} : memref<16x1024xf32, #tpu.memory_space<vmem>>, vector<16x1024xf32>,
    %c0_i32_8 = arith.constant 0 : i32
    %9 = arith.cmpi eq, %arg2, %c0_i32_8 : i32
    %10 = arith.extui %9 : i1 to i32
    %c0_i32_9 = arith.constant 0 : i32
    %11 = arith.cmpi ne, %10, %c0_i32_9 : i32
    scf.if %11 {
      %c0_10 = arith.constant 0 : index
      %c0_11 = arith.constant 0 : index
      %12 = vector.load %arg7[%c0_10, %c0_11] : memref<16x1024xf32, #tpu.memory_space<vmem>>, vector<16x1024xf32>
      %c0_12 = arith.constant 0 : index
      %c0_13 = arith.constant 0 : index
      %13 = vector.load %arg5[%c0_12, %c0_13] : memref<1x1024xf32, #tpu.memory_space<vmem>>, vector<1x1024xf32>
      %14 = vector.broadcast %13 : vector<1x1024xf32> to vector<16x1024xf32>
      %15 = arith.addf %12, %14 : vector<16x1024xf32>
      %cst_14 = arith.constant 0.000000e+00 : f32
      %16 = vector.broadcast %cst_14 : f32 to vector<16x1024xf32>
      %17 = arith.maximumf %15, %16 : vector<16x1024xf32>
      %18 = arith.truncf %17 : vector<16x1024xf32> to vector<16x1024xbf16>
      %c0_15 = arith.constant 0 : index
      %c0_16 = arith.constant 0 : index
      %19 = vector.load %arg6[%c0_15, %c0_16] : memref<16x1024xbf16, #tpu.memory_space<vmem>>, vector<16x1024xbf16>
      tpu.vector_store %arg6[%c0_15, %c0_16], %18 {strides = array<i32>} : memref<16x1024xbf16, #tpu.memory_space<vmem>>, vector<16x1024xbf16>,
    } else {
    }
    return
  }
  func.func @transform_0(%arg0: i32, %arg1: i32, %arg2: i32) -> (i32, i32) {
    %c0_i32 = arith.constant 0 : i32
    return %arg0, %arg2 : i32, i32
  }
  func.func @transform_1(%arg0: i32, %arg1: i32, %arg2: i32) -> (i32, i32) {
    %c0_i32 = arith.constant 0 : i32
    return %arg2, %arg1 : i32, i32
  }
  func.func @transform_2(%arg0: i32, %arg1: i32, %arg2: i32) -> (i32, i32) {
    %c0_i32 = arith.constant 0 : i32
    %c0_i32_0 = arith.constant 0 : i32
    return %c0_i32, %arg1 : i32, i32
  }
  func.func @transform_3(%arg0: i32, %arg1: i32, %arg2: i32) -> (i32, i32) {
    %c0_i32 = arith.constant 0 : i32
    return %arg0, %arg1 : i32, i32
  }
}

module attributes {stable_mosaic.version = 11 : i64} {
  func.func @_linear_kernel(%arg0: i32, %arg1: i32, %arg2: i32, %arg3: memref<16x1024xbf16, #tpu.memory_space<vmem>>, %arg4: memref<1024x32xbf16, #tpu.memory_space<vmem>>, %arg5: memref<1x32xf32, #tpu.memory_space<vmem>>, %arg6: memref<16x32xbf16, #tpu.memory_space<vmem>>, %arg7: memref<16x32xbf16, #tpu.memory_space<vmem>>, %arg8: memref<16x32xf32, #tpu.memory_space<vmem>>) attributes {dimension_semantics = [#tpu.dimension_semantics<parallel>, #tpu.dimension_semantics<parallel>, #tpu.dimension_semantics<arbitrary>], iteration_bounds = array<i64: 1, 1, 2>, scalar_prefetch = 0 : i64, scratch_operands = 1 : i64, tpu.core_type = #tpu.core_type<tc>, window_params = [{transform_indices = @transform_0, window_bounds = array<i64: 16, 1024>}, {transform_indices = @transform_1, window_bounds = array<i64: 1024, 32>}, {transform_indices = @transform_2, window_bounds = array<i64: 1, 32>}, {transform_indices = @transform_3, window_bounds = array<i64: 16, 32>}, {transform_indices = @transform_4, window_bounds = array<i64: 16, 32>}]} {
    %c0_i32 = arith.constant 0 : i32
    %0 = arith.cmpi eq, %arg2, %c0_i32 : i32
    %1 = arith.extui %0 : i1 to i32
    %c0_i32_0 = arith.constant 0 : i32
    %2 = arith.cmpi ne, %1, %c0_i32_0 : i32
    scf.if %2 {
      %cst_9 = arith.constant 0.000000e+00 : f32
      %12 = vector.broadcast %cst_9 : f32 to vector<16x32xf32>
      %c0_10 = arith.constant 0 : index
      %c0_11 = arith.constant 0 : index
      %13 = vector.load %arg8[%c0_10, %c0_11] : memref<16x32xf32, #tpu.memory_space<vmem>>, vector<16x32xf32>
      tpu.vector_store %arg8[%c0_10, %c0_11], %12 {strides = array<i32>} : memref<16x32xf32, #tpu.memory_space<vmem>>, vector<16x32xf32>,
    } else {
    }
    %c0 = arith.constant 0 : index
    %c0_1 = arith.constant 0 : index
    %3 = vector.load %arg3[%c0, %c0_1] : memref<16x1024xbf16, #tpu.memory_space<vmem>>, vector<16x1024xbf16>
    %c0_2 = arith.constant 0 : index
    %c0_3 = arith.constant 0 : index
    %4 = vector.load %arg8[%c0_2, %c0_3] : memref<16x32xf32, #tpu.memory_space<vmem>>, vector<16x32xf32>
    %c0_4 = arith.constant 0 : index
    %c0_5 = arith.constant 0 : index
    %5 = vector.load %arg4[%c0_4, %c0_5] : memref<1024x32xbf16, #tpu.memory_space<vmem>>, vector<1024x32xbf16>
    %cst = arith.constant dense<0.000000e+00> : vector<16x32xf32>
    %6 = tpu.matmul %3, %5, %cst {dimension_numbers = #tpu.dot_dimension_numbers<[1], [0], [0], [1], [0, 0, 1, 1], [], []>} : vector<16x1024xbf16>, vector<1024x32xbf16>, vector<16x32xf32> -> vector<16x32xf32>
    %7 = arith.addf %4, %6 : vector<16x32xf32>
    %c0_6 = arith.constant 0 : index
    %c0_7 = arith.constant 0 : index
    %8 = vector.load %arg8[%c0_6, %c0_7] : memref<16x32xf32, #tpu.memory_space<vmem>>, vector<16x32xf32>
    tpu.vector_store %arg8[%c0_6, %c0_7], %7 {strides = array<i32>} : memref<16x32xf32, #tpu.memory_space<vmem>>, vector<16x32xf32>,
    %c1_i32 = arith.constant 1 : i32
    %9 = arith.cmpi eq, %arg2, %c1_i32 : i32
    %10 = arith.extui %9 : i1 to i32
    %c0_i32_8 = arith.constant 0 : i32
    %11 = arith.cmpi ne, %10, %c0_i32_8 : i32
    scf.if %11 {
      %c0_9 = arith.constant 0 : index
      %c0_10 = arith.constant 0 : index
      %12 = vector.load %arg8[%c0_9, %c0_10] : memref<16x32xf32, #tpu.memory_space<vmem>>, vector<16x32xf32>
      %c0_11 = arith.constant 0 : index
      %c0_12 = arith.constant 0 : index
      %13 = vector.load %arg5[%c0_11, %c0_12] : memref<1x32xf32, #tpu.memory_space<vmem>>, vector<1x32xf32>
      %14 = vector.broadcast %13 : vector<1x32xf32> to vector<16x32xf32>
      %15 = arith.addf %12, %14 : vector<16x32xf32>
      %c0_13 = arith.constant 0 : index
      %c0_14 = arith.constant 0 : index
      %16 = vector.load %arg6[%c0_13, %c0_14] : memref<16x32xbf16, #tpu.memory_space<vmem>>, vector<16x32xbf16>
      %17 = arith.extf %16 : vector<16x32xbf16> to vector<16x32xf32>
      %18 = arith.addf %15, %17 : vector<16x32xf32>
      %19 = arith.truncf %18 : vector<16x32xf32> to vector<16x32xbf16>
      %c0_15 = arith.constant 0 : index
      %c0_16 = arith.constant 0 : index
      %20 = vector.load %arg7[%c0_15, %c0_16] : memref<16x32xbf16, #tpu.memory_space<vmem>>, vector<16x32xbf16>
      tpu.vector_store %arg7[%c0_15, %c0_16], %19 {strides = array<i32>} : memref<16x32xbf16, #tpu.memory_space<vmem>>, vector<16x32xbf16>,
    } else {
    }
    return
  }
  func.func @transform_0(%arg0: i32, %arg1: i32, %arg2: i32) -> (i32, i32) {
    %c0_i32 = arith.constant 0 : i32
    return %arg0, %arg2 : i32, i32
  }
  func.func @transform_1(%arg0: i32, %arg1: i32, %arg2: i32) -> (i32, i32) {
    %c0_i32 = arith.constant 0 : i32
    return %arg2, %arg1 : i32, i32
  }
  func.func @transform_2(%arg0: i32, %arg1: i32, %arg2: i32) -> (i32, i32) {
    %c0_i32 = arith.constant 0 : i32
    %c0_i32_0 = arith.constant 0 : i32
    return %c0_i32, %arg1 : i32, i32
  }
  func.func @transform_3(%arg0: i32, %arg1: i32, %arg2: i32) -> (i32, i32) {
    %c0_i32 = arith.constant 0 : i32
    return %arg0, %arg1 : i32, i32
  }
  func.func @transform_4(%arg0: i32, %arg1: i32, %arg2: i32) -> (i32, i32) {
    %c0_i32 = arith.constant 0 : i32
    return %arg0, %arg1 : i32, i32
  }
}

module attributes {stable_mosaic.version = 11 : i64} {
  func.func @_linear_kernel(%arg0: i32, %arg1: i32, %arg2: i32, %arg3: memref<16x32xbf16, #tpu.memory_space<vmem>>, %arg4: memref<32x64xbf16, #tpu.memory_space<vmem>>, %arg5: memref<1x64xf32, #tpu.memory_space<vmem>>, %arg6: memref<16x64xbf16, #tpu.memory_space<vmem>>, %arg7: memref<16x64xf32, #tpu.memory_space<vmem>>) attributes {dimension_semantics = [#tpu.dimension_semantics<parallel>, #tpu.dimension_semantics<parallel>, #tpu.dimension_semantics<arbitrary>], iteration_bounds = array<i64: 1, 1, 1>, scalar_prefetch = 0 : i64, scratch_operands = 1 : i64, tpu.core_type = #tpu.core_type<tc>, window_params = [{transform_indices = @transform_0, window_bounds = array<i64: 16, 32>}, {transform_indices = @transform_1, window_bounds = array<i64: 32, 64>}, {transform_indices = @transform_2, window_bounds = array<i64: 1, 64>}, {transform_indices = @transform_3, window_bounds = array<i64: 16, 64>}]} {
    %c0_i32 = arith.constant 0 : i32
    %0 = arith.cmpi eq, %arg2, %c0_i32 : i32
    %1 = arith.extui %0 : i1 to i32
    %c0_i32_0 = arith.constant 0 : i32
    %2 = arith.cmpi ne, %1, %c0_i32_0 : i32
    scf.if %2 {
      %cst_10 = arith.constant 0.000000e+00 : f32
      %12 = vector.broadcast %cst_10 : f32 to vector<16x64xf32>
      %c0_11 = arith.constant 0 : index
      %c0_12 = arith.constant 0 : index
      %13 = vector.load %arg7[%c0_11, %c0_12] : memref<16x64xf32, #tpu.memory_space<vmem>>, vector<16x64xf32>
      tpu.vector_store %arg7[%c0_11, %c0_12], %12 {strides = array<i32>} : memref<16x64xf32, #tpu.memory_space<vmem>>, vector<16x64xf32>,
    } else {
    }
    %c0 = arith.constant 0 : index
    %c0_1 = arith.constant 0 : index
    %3 = vector.load %arg3[%c0, %c0_1] : memref<16x32xbf16, #tpu.memory_space<vmem>>, vector<16x32xbf16>
    %c0_2 = arith.constant 0 : index
    %c0_3 = arith.constant 0 : index
    %4 = vector.load %arg7[%c0_2, %c0_3] : memref<16x64xf32, #tpu.memory_space<vmem>>, vector<16x64xf32>
    %c0_4 = arith.constant 0 : index
    %c0_5 = arith.constant 0 : index
    %5 = vector.load %arg4[%c0_4, %c0_5] : memref<32x64xbf16, #tpu.memory_space<vmem>>, vector<32x64xbf16>
    %cst = arith.constant dense<0.000000e+00> : vector<16x64xf32>
    %6 = tpu.matmul %3, %5, %cst {dimension_numbers = #tpu.dot_dimension_numbers<[1], [0], [0], [1], [0, 0, 1, 1], [], []>} : vector<16x32xbf16>, vector<32x64xbf16>, vector<16x64xf32> -> vector<16x64xf32>
    %7 = arith.addf %4, %6 : vector<16x64xf32>
    %c0_6 = arith.constant 0 : index
    %c0_7 = arith.constant 0 : index
    %8 = vector.load %arg7[%c0_6, %c0_7] : memref<16x64xf32, #tpu.memory_space<vmem>>, vector<16x64xf32>
    tpu.vector_store %arg7[%c0_6, %c0_7], %7 {strides = array<i32>} : memref<16x64xf32, #tpu.memory_space<vmem>>, vector<16x64xf32>,
    %c0_i32_8 = arith.constant 0 : i32
    %9 = arith.cmpi eq, %arg2, %c0_i32_8 : i32
    %10 = arith.extui %9 : i1 to i32
    %c0_i32_9 = arith.constant 0 : i32
    %11 = arith.cmpi ne, %10, %c0_i32_9 : i32
    scf.if %11 {
      %c0_10 = arith.constant 0 : index
      %c0_11 = arith.constant 0 : index
      %12 = vector.load %arg7[%c0_10, %c0_11] : memref<16x64xf32, #tpu.memory_space<vmem>>, vector<16x64xf32>
      %c0_12 = arith.constant 0 : index
      %c0_13 = arith.constant 0 : index
      %13 = vector.load %arg5[%c0_12, %c0_13] : memref<1x64xf32, #tpu.memory_space<vmem>>, vector<1x64xf32>
      %14 = vector.broadcast %13 : vector<1x64xf32> to vector<16x64xf32>
      %15 = arith.addf %12, %14 : vector<16x64xf32>
      %16 = arith.truncf %15 : vector<16x64xf32> to vector<16x64xbf16>
      %c0_14 = arith.constant 0 : index
      %c0_15 = arith.constant 0 : index
      %17 = vector.load %arg6[%c0_14, %c0_15] : memref<16x64xbf16, #tpu.memory_space<vmem>>, vector<16x64xbf16>
      tpu.vector_store %arg6[%c0_14, %c0_15], %16 {strides = array<i32>} : memref<16x64xbf16, #tpu.memory_space<vmem>>, vector<16x64xbf16>,
    } else {
    }
    return
  }
  func.func @transform_0(%arg0: i32, %arg1: i32, %arg2: i32) -> (i32, i32) {
    %c0_i32 = arith.constant 0 : i32
    return %arg0, %arg2 : i32, i32
  }
  func.func @transform_1(%arg0: i32, %arg1: i32, %arg2: i32) -> (i32, i32) {
    %c0_i32 = arith.constant 0 : i32
    return %arg2, %arg1 : i32, i32
  }
  func.func @transform_2(%arg0: i32, %arg1: i32, %arg2: i32) -> (i32, i32) {
    %c0_i32 = arith.constant 0 : i32
    %c0_i32_0 = arith.constant 0 : i32
    return %c0_i32, %arg1 : i32, i32
  }
  func.func @transform_3(%arg0: i32, %arg1: i32, %arg2: i32) -> (i32, i32) {
    %c0_i32 = arith.constant 0 : i32
    return %arg0, %arg1 : i32, i32
  }
}

module attributes {stable_mosaic.version = 11 : i64} {
  func.func @_self_attn_kernel(%arg0: i32, %arg1: memref<1x8x96xbf16, #tpu.memory_space<vmem>>, %arg2: memref<1x8x8xf32, #tpu.memory_space<vmem>>, %arg3: memref<1x8x32xbf16, #tpu.memory_space<vmem>>) attributes {dimension_semantics = [#tpu.dimension_semantics<parallel>], iteration_bounds = array<i64: 2>, scalar_prefetch = 0 : i64, scratch_operands = 0 : i64, tpu.core_type = #tpu.core_type<tc>, window_params = [{transform_indices = @transform_0, window_bounds = array<i64: 1, 8, 96>}, {transform_indices = @transform_1, window_bounds = array<i64: 1, 8, 8>}, {transform_indices = @transform_2, window_bounds = array<i64: 1, 8, 32>}]} {
    %c0 = arith.constant 0 : index
    %c0_0 = arith.constant 0 : index
    %c0_1 = arith.constant 0 : index
    %0 = vector.load %arg1[%c0, %c0_0, %c0_1] : memref<1x8x96xbf16, #tpu.memory_space<vmem>>, vector<1x8x96xbf16>
    %1 = vector.shape_cast %0 : vector<1x8x96xbf16> to vector<8x96xbf16>
    %2 = vector.extract_strided_slice %1 {offsets = [0, 0], sizes = [8, 32], strides = [1, 1]} : vector<8x96xbf16> to vector<8x32xbf16>
    %3 = vector.extract_strided_slice %1 {offsets = [0, 32], sizes = [8, 32], strides = [1, 1]} : vector<8x96xbf16> to vector<8x32xbf16>
    %4 = vector.extract_strided_slice %1 {offsets = [0, 64], sizes = [8, 32], strides = [1, 1]} : vector<8x96xbf16> to vector<8x32xbf16>
    %c0_2 = arith.constant 0 : index
    %c0_3 = arith.constant 0 : index
    %c0_4 = arith.constant 0 : index
    %5 = vector.load %arg2[%c0_2, %c0_3, %c0_4] : memref<1x8x8xf32, #tpu.memory_space<vmem>>, vector<1x8x8xf32>
    %6 = vector.shape_cast %5 : vector<1x8x8xf32> to vector<8x8xf32>
    %cst = arith.constant 0.000000e+00 : f32
    %7 = vector.broadcast %cst : f32 to vector<8x8xf32>
    %8 = arith.cmpf oeq, %6, %7 : vector<8x8xf32>
    %cst_5 = arith.constant -1.000000e+09 : f32
    %cst_6 = arith.constant 0.000000e+00 : f32
    %9 = vector.broadcast %cst_5 : f32 to vector<8x8xf32>
    %10 = vector.broadcast %cst_6 : f32 to vector<8x8xf32>
    %11 = arith.select %8, %9, %10 : vector<8x8xi1>, vector<8x8xf32>
    %12 = vector.extract_strided_slice %2 {offsets = [0, 0], sizes = [8, 8], strides = [1, 1]} : vector<8x32xbf16> to vector<8x8xbf16>
    %13 = vector.extract_strided_slice %3 {offsets = [0, 0], sizes = [8, 8], strides = [1, 1]} : vector<8x32xbf16> to vector<8x8xbf16>
    %cst_7 = arith.constant dense<0.000000e+00> : vector<8x8xf32>
    %14 = tpu.matmul %12, %13, %cst_7 {dimension_numbers = #tpu.dot_dimension_numbers<[1], [1], [0], [0], [0, 0, 1, 0], [], []>} : vector<8x8xbf16>, vector<8x8xbf16>, vector<8x8xf32> -> vector<8x8xf32>
    %cst_8 = arith.constant 0.353553385 : f32
    %15 = vector.broadcast %cst_8 : f32 to vector<8x8xf32>
    %16 = arith.mulf %14, %15 : vector<8x8xf32>
    %17 = arith.addf %16, %11 : vector<8x8xf32>
    %cst_9 = arith.constant dense<0xFF800000> : vector<8xf32>
    %18 = vector.multi_reduction <maximumf>, %17, %cst_9 [1] : vector<8x8xf32> to vector<8xf32>
    %19 = vector.shape_cast %18 : vector<8xf32> to vector<8x1xf32>
    %20 = vector.broadcast %19 : vector<8x1xf32> to vector<8x8xf32>
    %21 = arith.subf %17, %20 : vector<8x8xf32>
    %22 = math.exp %21 : vector<8x8xf32>
    %cst_10 = arith.constant dense<0.000000e+00> : vector<8xf32>
    %23 = vector.multi_reduction <add>, %22, %cst_10 [1] : vector<8x8xf32> to vector<8xf32>
    %24 = vector.shape_cast %23 : vector<8xf32> to vector<8x1xf32>
    %25 = tpu.reciprocal %24 {approx = true} : vector<8x1xf32> -> vector<8x1xf32>
    %26 = vector.broadcast %25 : vector<8x1xf32> to vector<8x8xf32>
    %27 = arith.mulf %22, %26 : vector<8x8xf32>
    %28 = arith.truncf %27 : vector<8x8xf32> to vector<8x8xbf16>
    %29 = vector.extract_strided_slice %4 {offsets = [0, 0], sizes = [8, 8], strides = [1, 1]} : vector<8x32xbf16> to vector<8x8xbf16>
    %cst_11 = arith.constant dense<0.000000e+00> : vector<8x8xf32>
    %30 = tpu.matmul %28, %29, %cst_11 {dimension_numbers = #tpu.dot_dimension_numbers<[1], [0], [0], [1], [0, 0, 1, 1], [], []>} : vector<8x8xbf16>, vector<8x8xbf16>, vector<8x8xf32> -> vector<8x8xf32>
    %31 = vector.extract_strided_slice %2 {offsets = [0, 8], sizes = [8, 8], strides = [1, 1]} : vector<8x32xbf16> to vector<8x8xbf16>
    %32 = vector.extract_strided_slice %3 {offsets = [0, 8], sizes = [8, 8], strides = [1, 1]} : vector<8x32xbf16> to vector<8x8xbf16>
    %cst_12 = arith.constant dense<0.000000e+00> : vector<8x8xf32>
    %33 = tpu.matmul %31, %32, %cst_12 {dimension_numbers = #tpu.dot_dimension_numbers<[1], [1], [0], [0], [0, 0, 1, 0], [], []>} : vector<8x8xbf16>, vector<8x8xbf16>, vector<8x8xf32> -> vector<8x8xf32>
    %cst_13 = arith.constant 0.353553385 : f32
    %34 = vector.broadcast %cst_13 : f32 to vector<8x8xf32>
    %35 = arith.mulf %33, %34 : vector<8x8xf32>
    %36 = arith.addf %35, %11 : vector<8x8xf32>
    %cst_14 = arith.constant dense<0xFF800000> : vector<8xf32>
    %37 = vector.multi_reduction <maximumf>, %36, %cst_14 [1] : vector<8x8xf32> to vector<8xf32>
    %38 = vector.shape_cast %37 : vector<8xf32> to vector<8x1xf32>
    %39 = vector.broadcast %38 : vector<8x1xf32> to vector<8x8xf32>
    %40 = arith.subf %36, %39 : vector<8x8xf32>
    %41 = math.exp %40 : vector<8x8xf32>
    %cst_15 = arith.constant dense<0.000000e+00> : vector<8xf32>
    %42 = vector.multi_reduction <add>, %41, %cst_15 [1] : vector<8x8xf32> to vector<8xf32>
    %43 = vector.shape_cast %42 : vector<8xf32> to vector<8x1xf32>
    %44 = tpu.reciprocal %43 {approx = true} : vector<8x1xf32> -> vector<8x1xf32>
    %45 = vector.broadcast %44 : vector<8x1xf32> to vector<8x8xf32>
    %46 = arith.mulf %41, %45 : vector<8x8xf32>
    %47 = arith.truncf %46 : vector<8x8xf32> to vector<8x8xbf16>
    %48 = vector.extract_strided_slice %4 {offsets = [0, 8], sizes = [8, 8], strides = [1, 1]} : vector<8x32xbf16> to vector<8x8xbf16>
    %cst_16 = arith.constant dense<0.000000e+00> : vector<8x8xf32>
    %49 = tpu.matmul %47, %48, %cst_16 {dimension_numbers = #tpu.dot_dimension_numbers<[1], [0], [0], [1], [0, 0, 1, 1], [], []>} : vector<8x8xbf16>, vector<8x8xbf16>, vector<8x8xf32> -> vector<8x8xf32>
    %50 = vector.extract_strided_slice %2 {offsets = [0, 16], sizes = [8, 8], strides = [1, 1]} : vector<8x32xbf16> to vector<8x8xbf16>
    %51 = vector.extract_strided_slice %3 {offsets = [0, 16], sizes = [8, 8], strides = [1, 1]} : vector<8x32xbf16> to vector<8x8xbf16>
    %cst_17 = arith.constant dense<0.000000e+00> : vector<8x8xf32>
    %52 = tpu.matmul %50, %51, %cst_17 {dimension_numbers = #tpu.dot_dimension_numbers<[1], [1], [0], [0], [0, 0, 1, 0], [], []>} : vector<8x8xbf16>, vector<8x8xbf16>, vector<8x8xf32> -> vector<8x8xf32>
    %cst_18 = arith.constant 0.353553385 : f32
    %53 = vector.broadcast %cst_18 : f32 to vector<8x8xf32>
    %54 = arith.mulf %52, %53 : vector<8x8xf32>
    %55 = arith.addf %54, %11 : vector<8x8xf32>
    %cst_19 = arith.constant dense<0xFF800000> : vector<8xf32>
    %56 = vector.multi_reduction <maximumf>, %55, %cst_19 [1] : vector<8x8xf32> to vector<8xf32>
    %57 = vector.shape_cast %56 : vector<8xf32> to vector<8x1xf32>
    %58 = vector.broadcast %57 : vector<8x1xf32> to vector<8x8xf32>
    %59 = arith.subf %55, %58 : vector<8x8xf32>
    %60 = math.exp %59 : vector<8x8xf32>
    %cst_20 = arith.constant dense<0.000000e+00> : vector<8xf32>
    %61 = vector.multi_reduction <add>, %60, %cst_20 [1] : vector<8x8xf32> to vector<8xf32>
    %62 = vector.shape_cast %61 : vector<8xf32> to vector<8x1xf32>
    %63 = tpu.reciprocal %62 {approx = true} : vector<8x1xf32> -> vector<8x1xf32>
    %64 = vector.broadcast %63 : vector<8x1xf32> to vector<8x8xf32>
    %65 = arith.mulf %60, %64 : vector<8x8xf32>
    %66 = arith.truncf %65 : vector<8x8xf32> to vector<8x8xbf16>
    %67 = vector.extract_strided_slice %4 {offsets = [0, 16], sizes = [8, 8], strides = [1, 1]} : vector<8x32xbf16> to vector<8x8xbf16>
    %cst_21 = arith.constant dense<0.000000e+00> : vector<8x8xf32>
    %68 = tpu.matmul %66, %67, %cst_21 {dimension_numbers = #tpu.dot_dimension_numbers<[1], [0], [0], [1], [0, 0, 1, 1], [], []>} : vector<8x8xbf16>, vector<8x8xbf16>, vector<8x8xf32> -> vector<8x8xf32>
    %69 = vector.extract_strided_slice %2 {offsets = [0, 24], sizes = [8, 8], strides = [1, 1]} : vector<8x32xbf16> to vector<8x8xbf16>
    %70 = vector.extract_strided_slice %3 {offsets = [0, 24], sizes = [8, 8], strides = [1, 1]} : vector<8x32xbf16> to vector<8x8xbf16>
    %cst_22 = arith.constant dense<0.000000e+00> : vector<8x8xf32>
    %71 = tpu.matmul %69, %70, %cst_22 {dimension_numbers = #tpu.dot_dimension_numbers<[1], [1], [0], [0], [0, 0, 1, 0], [], []>} : vector<8x8xbf16>, vector<8x8xbf16>, vector<8x8xf32> -> vector<8x8xf32>
    %cst_23 = arith.constant 0.353553385 : f32
    %72 = vector.broadcast %cst_23 : f32 to vector<8x8xf32>
    %73 = arith.mulf %71, %72 : vector<8x8xf32>
    %74 = arith.addf %73, %11 : vector<8x8xf32>
    %cst_24 = arith.constant dense<0xFF800000> : vector<8xf32>
    %75 = vector.multi_reduction <maximumf>, %74, %cst_24 [1] : vector<8x8xf32> to vector<8xf32>
    %76 = vector.shape_cast %75 : vector<8xf32> to vector<8x1xf32>
    %77 = vector.broadcast %76 : vector<8x1xf32> to vector<8x8xf32>
    %78 = arith.subf %74, %77 : vector<8x8xf32>
    %79 = math.exp %78 : vector<8x8xf32>
    %cst_25 = arith.constant dense<0.000000e+00> : vector<8xf32>
    %80 = vector.multi_reduction <add>, %79, %cst_25 [1] : vector<8x8xf32> to vector<8xf32>
    %81 = vector.shape_cast %80 : vector<8xf32> to vector<8x1xf32>
    %82 = tpu.reciprocal %81 {approx = true} : vector<8x1xf32> -> vector<8x1xf32>
    %83 = vector.broadcast %82 : vector<8x1xf32> to vector<8x8xf32>
    %84 = arith.mulf %79, %83 : vector<8x8xf32>
    %85 = arith.truncf %84 : vector<8x8xf32> to vector<8x8xbf16>
    %86 = vector.extract_strided_slice %4 {offsets = [0, 24], sizes = [8, 8], strides = [1, 1]} : vector<8x32xbf16> to vector<8x8xbf16>
    %cst_26 = arith.constant dense<0.000000e+00> : vector<8x8xf32>
    %87 = tpu.matmul %85, %86, %cst_26 {dimension_numbers = #tpu.dot_dimension_numbers<[1], [0], [0], [1], [0, 0, 1, 1], [], []>} : vector<8x8xbf16>, vector<8x8xbf16>, vector<8x8xf32> -> vector<8x8xf32>
    %88 = tpu.concatenate %30, %49, %68, %87 in 1 : vector<8x8xf32>, vector<8x8xf32>, vector<8x8xf32>, vector<8x8xf32> -> vector<8x32xf32>
    %89 = arith.truncf %88 : vector<8x32xf32> to vector<8x32xbf16>
    %c0_27 = arith.constant 0 : index
    %c0_28 = arith.constant 0 : index
    %c0_29 = arith.constant 0 : index
    %90 = vector.load %arg3[%c0_27, %c0_28, %c0_29] : memref<1x8x32xbf16, #tpu.memory_space<vmem>>, vector<1x8x32xbf16>
    %91 = vector.shape_cast %90 : vector<1x8x32xbf16> to vector<8x32xbf16>
    %92 = vector.shape_cast %89 : vector<8x32xbf16> to vector<1x8x32xbf16>
    tpu.vector_store %arg3[%c0_27, %c0_28, %c0_29], %92 {strides = array<i32>} : memref<1x8x32xbf16, #tpu.memory_space<vmem>>, vector<1x8x32xbf16>,
    return
  }
  func.func @transform_0(%arg0: i32) -> (i32, i32, i32) {
    %c0_i32 = arith.constant 0 : i32
    %c0_i32_0 = arith.constant 0 : i32
    %c0_i32_1 = arith.constant 0 : i32
    return %arg0, %c0_i32, %c0_i32_0 : i32, i32, i32
  }
  func.func @transform_1(%arg0: i32) -> (i32, i32, i32) {
    %c0_i32 = arith.constant 0 : i32
    %c0_i32_0 = arith.constant 0 : i32
    %c0_i32_1 = arith.constant 0 : i32
    return %arg0, %c0_i32, %c0_i32_0 : i32, i32, i32
  }
  func.func @transform_2(%arg0: i32) -> (i32, i32, i32) {
    %c0_i32 = arith.constant 0 : i32
    %c0_i32_0 = arith.constant 0 : i32
    %c0_i32_1 = arith.constant 0 : i32
    return %arg0, %c0_i32, %c0_i32_0 : i32, i32, i32
  }
}

module attributes {stable_mosaic.version = 11 : i64} {
  func.func @_linear_kernel(%arg0: i32, %arg1: i32, %arg2: i32, %arg3: memref<16x32xbf16, #tpu.memory_space<vmem>>, %arg4: memref<32x32xbf16, #tpu.memory_space<vmem>>, %arg5: memref<1x32xf32, #tpu.memory_space<vmem>>, %arg6: memref<1x32xf32, #tpu.memory_space<vmem>>, %arg7: memref<1x32xf32, #tpu.memory_space<vmem>>, %arg8: memref<16x32xbf16, #tpu.memory_space<vmem>>, %arg9: memref<16x32xf32, #tpu.memory_space<vmem>>) attributes {dimension_semantics = [#tpu.dimension_semantics<parallel>, #tpu.dimension_semantics<parallel>, #tpu.dimension_semantics<arbitrary>], iteration_bounds = array<i64: 1, 1, 1>, scalar_prefetch = 0 : i64, scratch_operands = 1 : i64, tpu.core_type = #tpu.core_type<tc>, window_params = [{transform_indices = @transform_0, window_bounds = array<i64: 16, 32>}, {transform_indices = @transform_1, window_bounds = array<i64: 32, 32>}, {transform_indices = @transform_2, window_bounds = array<i64: 1, 32>}, {pipeline_mode = #tpu.pipeline_mode<synchronous>, transform_indices = @transform_3, window_bounds = array<i64: 1, 32>}, {pipeline_mode = #tpu.pipeline_mode<synchronous>, transform_indices = @transform_4, window_bounds = array<i64: 1, 32>}, {transform_indices = @transform_5, window_bounds = array<i64: 16, 32>}]} {
    %c0_i32 = arith.constant 0 : i32
    %0 = arith.cmpi eq, %arg2, %c0_i32 : i32
    %1 = arith.extui %0 : i1 to i32
    %c0_i32_0 = arith.constant 0 : i32
    %2 = arith.cmpi ne, %1, %c0_i32_0 : i32
    scf.if %2 {
      %cst_19 = arith.constant 0.000000e+00 : f32
      %37 = vector.broadcast %cst_19 : f32 to vector<16x32xf32>
      %c0_20 = arith.constant 0 : index
      %c0_21 = arith.constant 0 : index
      %38 = vector.load %arg9[%c0_20, %c0_21] : memref<16x32xf32, #tpu.memory_space<vmem>>, vector<16x32xf32>
      tpu.vector_store %arg9[%c0_20, %c0_21], %37 {strides = array<i32>} : memref<16x32xf32, #tpu.memory_space<vmem>>, vector<16x32xf32>,
    } else {
    }
    %c0 = arith.constant 0 : index
    %c0_1 = arith.constant 0 : index
    %3 = vector.load %arg3[%c0, %c0_1] : memref<16x32xbf16, #tpu.memory_space<vmem>>, vector<16x32xbf16>
    %4 = arith.extf %3 : vector<16x32xbf16> to vector<16x32xf32>
    %cst = arith.constant dense<0.000000e+00> : vector<16xf32>
    %5 = vector.multi_reduction <add>, %4, %cst [1] : vector<16x32xf32> to vector<16xf32>
    %6 = vector.shape_cast %5 : vector<16xf32> to vector<16x1xf32>
    %cst_2 = arith.constant 3.200000e+01 : f32
    %7 = vector.broadcast %cst_2 : f32 to vector<16x1xf32>
    %8 = arith.divf %6, %7 : vector<16x1xf32>
    %9 = vector.broadcast %8 : vector<16x1xf32> to vector<16x32xf32>
    %10 = arith.subf %4, %9 : vector<16x32xf32>
    %11 = arith.mulf %10, %10 : vector<16x32xf32>
    %cst_3 = arith.constant dense<0.000000e+00> : vector<16xf32>
    %12 = vector.multi_reduction <add>, %11, %cst_3 [1] : vector<16x32xf32> to vector<16xf32>
    %13 = vector.shape_cast %12 : vector<16xf32> to vector<16x1xf32>
    %cst_4 = arith.constant 3.100000e+01 : f32
    %14 = vector.broadcast %cst_4 : f32 to vector<16x1xf32>
    %15 = arith.divf %13, %14 : vector<16x1xf32>
    %16 = math.sqrt %15 : vector<16x1xf32>
    %cst_5 = arith.constant 9.99999997E-7 : f32
    %17 = vector.broadcast %cst_5 : f32 to vector<16x1xf32>
    %18 = arith.addf %16, %17 : vector<16x1xf32>
    %19 = tpu.reciprocal %18 {approx = true} : vector<16x1xf32> -> vector<16x1xf32>
    %c0_6 = arith.constant 0 : index
    %c0_7 = arith.constant 0 : index
    %20 = vector.load %arg6[%c0_6, %c0_7] : memref<1x32xf32, #tpu.memory_space<vmem>>, vector<1x32xf32>
    %21 = vector.broadcast %20 : vector<1x32xf32> to vector<16x32xf32>
    %22 = arith.mulf %21, %10 : vector<16x32xf32>
    %23 = vector.broadcast %19 : vector<16x1xf32> to vector<16x32xf32>
    %24 = arith.mulf %22, %23 : vector<16x32xf32>
    %c0_8 = arith.constant 0 : index
    %c0_9 = arith.constant 0 : index
    %25 = vector.load %arg7[%c0_8, %c0_9] : memref<1x32xf32, #tpu.memory_space<vmem>>, vector<1x32xf32>
    %26 = vector.broadcast %25 : vector<1x32xf32> to vector<16x32xf32>
    %27 = arith.addf %24, %26 : vector<16x32xf32>
    %28 = arith.truncf %27 : vector<16x32xf32> to vector<16x32xbf16>
    %c0_10 = arith.constant 0 : index
    %c0_11 = arith.constant 0 : index
    %29 = vector.load %arg9[%c0_10, %c0_11] : memref<16x32xf32, #tpu.memory_space<vmem>>, vector<16x32xf32>
    %c0_12 = arith.constant 0 : index
    %c0_13 = arith.constant 0 : index
    %30 = vector.load %arg4[%c0_12, %c0_13] : memref<32x32xbf16, #tpu.memory_space<vmem>>, vector<32x32xbf16>
    %cst_14 = arith.constant dense<0.000000e+00> : vector<16x32xf32>
    %31 = tpu.matmul %28, %30, %cst_14 {dimension_numbers = #tpu.dot_dimension_numbers<[1], [0], [0], [1], [0, 0, 1, 1], [], []>} : vector<16x32xbf16>, vector<32x32xbf16>, vector<16x32xf32> -> vector<16x32xf32>
    %32 = arith.addf %29, %31 : vector<16x32xf32>
    %c0_15 = arith.constant 0 : index
    %c0_16 = arith.constant 0 : index
    %33 = vector.load %arg9[%c0_15, %c0_16] : memref<16x32xf32, #tpu.memory_space<vmem>>, vector<16x32xf32>
    tpu.vector_store %arg9[%c0_15, %c0_16], %32 {strides = array<i32>} : memref<16x32xf32, #tpu.memory_space<vmem>>, vector<16x32xf32>,
    %c0_i32_17 = arith.constant 0 : i32
    %34 = arith.cmpi eq, %arg2, %c0_i32_17 : i32
    %35 = arith.extui %34 : i1 to i32
    %c0_i32_18 = arith.constant 0 : i32
    %36 = arith.cmpi ne, %35, %c0_i32_18 : i32
    scf.if %36 {
      %c0_19 = arith.constant 0 : index
      %c0_20 = arith.constant 0 : index
      %37 = vector.load %arg9[%c0_19, %c0_20] : memref<16x32xf32, #tpu.memory_space<vmem>>, vector<16x32xf32>
      %c0_21 = arith.constant 0 : index
      %c0_22 = arith.constant 0 : index
      %38 = vector.load %arg5[%c0_21, %c0_22] : memref<1x32xf32, #tpu.memory_space<vmem>>, vector<1x32xf32>
      %39 = vector.broadcast %38 : vector<1x32xf32> to vector<16x32xf32>
      %40 = arith.addf %37, %39 : vector<16x32xf32>
      %41 = arith.truncf %40 : vector<16x32xf32> to vector<16x32xbf16>
      %c0_23 = arith.constant 0 : index
      %c0_24 = arith.constant 0 : index
      %42 = vector.load %arg8[%c0_23, %c0_24] : memref<16x32xbf16, #tpu.memory_space<vmem>>, vector<16x32xbf16>
      tpu.vector_store %arg8[%c0_23, %c0_24], %41 {strides = array<i32>} : memref<16x32xbf16, #tpu.memory_space<vmem>>, vector<16x32xbf16>,
    } else {
    }
    return
  }
  func.func @transform_0(%arg0: i32, %arg1: i32, %arg2: i32) -> (i32, i32) {
    %c0_i32 = arith.constant 0 : i32
    return %arg0, %arg2 : i32, i32
  }
  func.func @transform_1(%arg0: i32, %arg1: i32, %arg2: i32) -> (i32, i32) {
    %c0_i32 = arith.constant 0 : i32
    return %arg2, %arg1 : i32, i32
  }
  func.func @transform_2(%arg0: i32, %arg1: i32, %arg2: i32) -> (i32, i32) {
    %c0_i32 = arith.constant 0 : i32
    %c0_i32_0 = arith.constant 0 : i32
    return %c0_i32, %arg1 : i32, i32
  }
  func.func @transform_3(%arg0: i32, %arg1: i32, %arg2: i32) -> (i32, i32) {
    %c0_i32 = arith.constant 0 : i32
    %c0_i32_0 = arith.constant 0 : i32
    %c0_i32_1 = arith.constant 0 : i32
    return %c0_i32, %c0_i32_0 : i32, i32
  }
  func.func @transform_4(%arg0: i32, %arg1: i32, %arg2: i32) -> (i32, i32) {
    %c0_i32 = arith.constant 0 : i32
    %c0_i32_0 = arith.constant 0 : i32
    %c0_i32_1 = arith.constant 0 : i32
    return %c0_i32, %c0_i32_0 : i32, i32
  }
  func.func @transform_5(%arg0: i32, %arg1: i32, %arg2: i32) -> (i32, i32) {
    %c0_i32 = arith.constant 0 : i32
    return %arg0, %arg1 : i32, i32
  }
}

module attributes {stable_mosaic.version = 11 : i64} {
  func.func @_linear_kernel(%arg0: i32, %arg1: i32, %arg2: i32, %arg3: memref<16x32xbf16, #tpu.memory_space<vmem>>, %arg4: memref<32x48xbf16, #tpu.memory_space<vmem>>, %arg5: memref<1x48xf32, #tpu.memory_space<vmem>>, %arg6: memref<1x32xf32, #tpu.memory_space<vmem>>, %arg7: memref<1x32xf32, #tpu.memory_space<vmem>>, %arg8: memref<16x48xf32, #tpu.memory_space<vmem>>, %arg9: memref<16x48xf32, #tpu.memory_space<vmem>>) attributes {dimension_semantics = [#tpu.dimension_semantics<parallel>, #tpu.dimension_semantics<parallel>, #tpu.dimension_semantics<arbitrary>], iteration_bounds = array<i64: 1, 1, 1>, scalar_prefetch = 0 : i64, scratch_operands = 1 : i64, tpu.core_type = #tpu.core_type<tc>, window_params = [{transform_indices = @transform_0, window_bounds = array<i64: 16, 32>}, {transform_indices = @transform_1, window_bounds = array<i64: 32, 48>}, {transform_indices = @transform_2, window_bounds = array<i64: 1, 48>}, {pipeline_mode = #tpu.pipeline_mode<synchronous>, transform_indices = @transform_3, window_bounds = array<i64: 1, 32>}, {pipeline_mode = #tpu.pipeline_mode<synchronous>, transform_indices = @transform_4, window_bounds = array<i64: 1, 32>}, {transform_indices = @transform_5, window_bounds = array<i64: 16, 48>}]} {
    %c0_i32 = arith.constant 0 : i32
    %0 = arith.cmpi eq, %arg2, %c0_i32 : i32
    %1 = arith.extui %0 : i1 to i32
    %c0_i32_0 = arith.constant 0 : i32
    %2 = arith.cmpi ne, %1, %c0_i32_0 : i32
    scf.if %2 {
      %cst_19 = arith.constant 0.000000e+00 : f32
      %37 = vector.broadcast %cst_19 : f32 to vector<16x48xf32>
      %c0_20 = arith.constant 0 : index
      %c0_21 = arith.constant 0 : index
      %38 = vector.load %arg9[%c0_20, %c0_21] : memref<16x48xf32, #tpu.memory_space<vmem>>, vector<16x48xf32>
      tpu.vector_store %arg9[%c0_20, %c0_21], %37 {strides = array<i32>} : memref<16x48xf32, #tpu.memory_space<vmem>>, vector<16x48xf32>,
    } else {
    }
    %c0 = arith.constant 0 : index
    %c0_1 = arith.constant 0 : index
    %3 = vector.load %arg3[%c0, %c0_1] : memref<16x32xbf16, #tpu.memory_space<vmem>>, vector<16x32xbf16>
    %4 = arith.extf %3 : vector<16x32xbf16> to vector<16x32xf32>
    %cst = arith.constant dense<0.000000e+00> : vector<16xf32>
    %5 = vector.multi_reduction <add>, %4, %cst [1] : vector<16x32xf32> to vector<16xf32>
    %6 = vector.shape_cast %5 : vector<16xf32> to vector<16x1xf32>
    %cst_2 = arith.constant 3.200000e+01 : f32
    %7 = vector.broadcast %cst_2 : f32 to vector<16x1xf32>
    %8 = arith.divf %6, %7 : vector<16x1xf32>
    %9 = vector.broadcast %8 : vector<16x1xf32> to vector<16x32xf32>
    %10 = arith.subf %4, %9 : vector<16x32xf32>
    %11 = arith.mulf %10, %10 : vector<16x32xf32>
    %cst_3 = arith.constant dense<0.000000e+00> : vector<16xf32>
    %12 = vector.multi_reduction <add>, %11, %cst_3 [1] : vector<16x32xf32> to vector<16xf32>
    %13 = vector.shape_cast %12 : vector<16xf32> to vector<16x1xf32>
    %cst_4 = arith.constant 3.100000e+01 : f32
    %14 = vector.broadcast %cst_4 : f32 to vector<16x1xf32>
    %15 = arith.divf %13, %14 : vector<16x1xf32>
    %16 = math.sqrt %15 : vector<16x1xf32>
    %cst_5 = arith.constant 9.99999997E-7 : f32
    %17 = vector.broadcast %cst_5 : f32 to vector<16x1xf32>
    %18 = arith.addf %16, %17 : vector<16x1xf32>
    %19 = tpu.reciprocal %18 {approx = true} : vector<16x1xf32> -> vector<16x1xf32>
    %c0_6 = arith.constant 0 : index
    %c0_7 = arith.constant 0 : index
    %20 = vector.load %arg6[%c0_6, %c0_7] : memref<1x32xf32, #tpu.memory_space<vmem>>, vector<1x32xf32>
    %21 = vector.broadcast %20 : vector<1x32xf32> to vector<16x32xf32>
    %22 = arith.mulf %21, %10 : vector<16x32xf32>
    %23 = vector.broadcast %19 : vector<16x1xf32> to vector<16x32xf32>
    %24 = arith.mulf %22, %23 : vector<16x32xf32>
    %c0_8 = arith.constant 0 : index
    %c0_9 = arith.constant 0 : index
    %25 = vector.load %arg7[%c0_8, %c0_9] : memref<1x32xf32, #tpu.memory_space<vmem>>, vector<1x32xf32>
    %26 = vector.broadcast %25 : vector<1x32xf32> to vector<16x32xf32>
    %27 = arith.addf %24, %26 : vector<16x32xf32>
    %28 = arith.truncf %27 : vector<16x32xf32> to vector<16x32xbf16>
    %c0_10 = arith.constant 0 : index
    %c0_11 = arith.constant 0 : index
    %29 = vector.load %arg9[%c0_10, %c0_11] : memref<16x48xf32, #tpu.memory_space<vmem>>, vector<16x48xf32>
    %c0_12 = arith.constant 0 : index
    %c0_13 = arith.constant 0 : index
    %30 = vector.load %arg4[%c0_12, %c0_13] : memref<32x48xbf16, #tpu.memory_space<vmem>>, vector<32x48xbf16>
    %cst_14 = arith.constant dense<0.000000e+00> : vector<16x48xf32>
    %31 = tpu.matmul %28, %30, %cst_14 {dimension_numbers = #tpu.dot_dimension_numbers<[1], [0], [0], [1], [0, 0, 1, 1], [], []>} : vector<16x32xbf16>, vector<32x48xbf16>, vector<16x48xf32> -> vector<16x48xf32>
    %32 = arith.addf %29, %31 : vector<16x48xf32>
    %c0_15 = arith.constant 0 : index
    %c0_16 = arith.constant 0 : index
    %33 = vector.load %arg9[%c0_15, %c0_16] : memref<16x48xf32, #tpu.memory_space<vmem>>, vector<16x48xf32>
    tpu.vector_store %arg9[%c0_15, %c0_16], %32 {strides = array<i32>} : memref<16x48xf32, #tpu.memory_space<vmem>>, vector<16x48xf32>,
    %c0_i32_17 = arith.constant 0 : i32
    %34 = arith.cmpi eq, %arg2, %c0_i32_17 : i32
    %35 = arith.extui %34 : i1 to i32
    %c0_i32_18 = arith.constant 0 : i32
    %36 = arith.cmpi ne, %35, %c0_i32_18 : i32
    scf.if %36 {
      %c0_19 = arith.constant 0 : index
      %c0_20 = arith.constant 0 : index
      %37 = vector.load %arg9[%c0_19, %c0_20] : memref<16x48xf32, #tpu.memory_space<vmem>>, vector<16x48xf32>
      %c0_21 = arith.constant 0 : index
      %c0_22 = arith.constant 0 : index
      %38 = vector.load %arg5[%c0_21, %c0_22] : memref<1x48xf32, #tpu.memory_space<vmem>>, vector<1x48xf32>
      %39 = vector.broadcast %38 : vector<1x48xf32> to vector<16x48xf32>
      %40 = arith.addf %37, %39 : vector<16x48xf32>
      %c0_23 = arith.constant 0 : index
      %c0_24 = arith.constant 0 : index
      %41 = vector.load %arg8[%c0_23, %c0_24] : memref<16x48xf32, #tpu.memory_space<vmem>>, vector<16x48xf32>
      tpu.vector_store %arg8[%c0_23, %c0_24], %40 {strides = array<i32>} : memref<16x48xf32, #tpu.memory_space<vmem>>, vector<16x48xf32>,
    } else {
    }
    return
  }
  func.func @transform_0(%arg0: i32, %arg1: i32, %arg2: i32) -> (i32, i32) {
    %c0_i32 = arith.constant 0 : i32
    return %arg0, %arg2 : i32, i32
  }
  func.func @transform_1(%arg0: i32, %arg1: i32, %arg2: i32) -> (i32, i32) {
    %c0_i32 = arith.constant 0 : i32
    return %arg2, %arg1 : i32, i32
  }
  func.func @transform_2(%arg0: i32, %arg1: i32, %arg2: i32) -> (i32, i32) {
    %c0_i32 = arith.constant 0 : i32
    %c0_i32_0 = arith.constant 0 : i32
    return %c0_i32, %arg1 : i32, i32
  }
  func.func @transform_3(%arg0: i32, %arg1: i32, %arg2: i32) -> (i32, i32) {
    %c0_i32 = arith.constant 0 : i32
    %c0_i32_0 = arith.constant 0 : i32
    %c0_i32_1 = arith.constant 0 : i32
    return %c0_i32, %c0_i32_0 : i32, i32
  }
  func.func @transform_4(%arg0: i32, %arg1: i32, %arg2: i32) -> (i32, i32) {
    %c0_i32 = arith.constant 0 : i32
    %c0_i32_0 = arith.constant 0 : i32
    %c0_i32_1 = arith.constant 0 : i32
    return %c0_i32, %c0_i32_0 : i32, i32
  }
  func.func @transform_5(%arg0: i32, %arg1: i32, %arg2: i32) -> (i32, i32) {
    %c0_i32 = arith.constant 0 : i32
    return %arg0, %arg1 : i32, i32
  }
}

module attributes {stable_mosaic.version = 11 : i64} {
  func.func @_cross_attn_kernel(%arg0: i32, %arg1: memref<1x8x32xbf16, #tpu.memory_space<vmem>>, %arg2: memref<1x8x64xbf16, #tpu.memory_space<vmem>>, %arg3: memref<1x1x8xf32, #tpu.memory_space<vmem>>, %arg4: memref<1x8x32xbf16, #tpu.memory_space<vmem>>) attributes {dimension_semantics = [#tpu.dimension_semantics<parallel>], iteration_bounds = array<i64: 2>, scalar_prefetch = 0 : i64, scratch_operands = 0 : i64, tpu.core_type = #tpu.core_type<tc>, window_params = [{transform_indices = @transform_0, window_bounds = array<i64: 1, 8, 32>}, {transform_indices = @transform_1, window_bounds = array<i64: 1, 8, 64>}, {transform_indices = @transform_2, window_bounds = array<i64: 1, 1, 8>}, {transform_indices = @transform_3, window_bounds = array<i64: 1, 8, 32>}]} {
    %c0 = arith.constant 0 : index
    %c0_0 = arith.constant 0 : index
    %c0_1 = arith.constant 0 : index
    %0 = vector.load %arg1[%c0, %c0_0, %c0_1] : memref<1x8x32xbf16, #tpu.memory_space<vmem>>, vector<1x8x32xbf16>
    %1 = vector.shape_cast %0 : vector<1x8x32xbf16> to vector<8x32xbf16>
    %c0_2 = arith.constant 0 : index
    %c0_3 = arith.constant 0 : index
    %c0_4 = arith.constant 0 : index
    %2 = vector.load %arg2[%c0_2, %c0_3, %c0_4] : memref<1x8x64xbf16, #tpu.memory_space<vmem>>, vector<1x8x64xbf16>
    %3 = vector.shape_cast %2 : vector<1x8x64xbf16> to vector<8x64xbf16>
    %4 = vector.extract_strided_slice %3 {offsets = [0, 0], sizes = [8, 32], strides = [1, 1]} : vector<8x64xbf16> to vector<8x32xbf16>
    %5 = vector.extract_strided_slice %3 {offsets = [0, 32], sizes = [8, 32], strides = [1, 1]} : vector<8x64xbf16> to vector<8x32xbf16>
    %c0_5 = arith.constant 0 : index
    %c0_6 = arith.constant 0 : index
    %c0_7 = arith.constant 0 : index
    %6 = vector.load %arg3[%c0_5, %c0_6, %c0_7] : memref<1x1x8xf32, #tpu.memory_space<vmem>>, vector<1x1x8xf32>
    %7 = vector.shape_cast %6 : vector<1x1x8xf32> to vector<1x8xf32>
    %cst = arith.constant 0.000000e+00 : f32
    %8 = vector.broadcast %cst : f32 to vector<1x8xf32>
    %9 = arith.cmpf oeq, %7, %8 : vector<1x8xf32>
    %cst_8 = arith.constant -1.000000e+09 : f32
    %cst_9 = arith.constant 0.000000e+00 : f32
    %10 = vector.broadcast %cst_8 : f32 to vector<1x8xf32>
    %11 = vector.broadcast %cst_9 : f32 to vector<1x8xf32>
    %12 = arith.select %9, %10, %11 : vector<1x8xi1>, vector<1x8xf32>
    %13 = vector.extract_strided_slice %1 {offsets = [0, 0], sizes = [8, 8], strides = [1, 1]} : vector<8x32xbf16> to vector<8x8xbf16>
    %14 = vector.extract_strided_slice %4 {offsets = [0, 0], sizes = [8, 8], strides = [1, 1]} : vector<8x32xbf16> to vector<8x8xbf16>
    %cst_10 = arith.constant dense<0.000000e+00> : vector<8x8xf32>
    %15 = tpu.matmul %13, %14, %cst_10 {dimension_numbers = #tpu.dot_dimension_numbers<[1], [1], [0], [0], [0, 0, 1, 0], [], []>} : vector<8x8xbf16>, vector<8x8xbf16>, vector<8x8xf32> -> vector<8x8xf32>
    %cst_11 = arith.constant 0.353553385 : f32
    %16 = vector.broadcast %cst_11 : f32 to vector<8x8xf32>
    %17 = arith.mulf %15, %16 : vector<8x8xf32>
    %18 = vector.broadcast %12 : vector<1x8xf32> to vector<8x8xf32>
    %19 = arith.addf %17, %18 : vector<8x8xf32>
    %cst_12 = arith.constant dense<0xFF800000> : vector<8xf32>
    %20 = vector.multi_reduction <maximumf>, %19, %cst_12 [1] : vector<8x8xf32> to vector<8xf32>
    %21 = vector.shape_cast %20 : vector<8xf32> to vector<8x1xf32>
    %22 = vector.broadcast %21 : vector<8x1xf32> to vector<8x8xf32>
    %23 = arith.subf %19, %22 : vector<8x8xf32>
    %24 = math.exp %23 : vector<8x8xf32>
    %cst_13 = arith.constant dense<0.000000e+00> : vector<8xf32>
    %25 = vector.multi_reduction <add>, %24, %cst_13 [1] : vector<8x8xf32> to vector<8xf32>
    %26 = vector.shape_cast %25 : vector<8xf32> to vector<8x1xf32>
    %27 = tpu.reciprocal %26 {approx = true} : vector<8x1xf32> -> vector<8x1xf32>
    %28 = vector.broadcast %27 : vector<8x1xf32> to vector<8x8xf32>
    %29 = arith.mulf %24, %28 : vector<8x8xf32>
    %30 = arith.truncf %29 : vector<8x8xf32> to vector<8x8xbf16>
    %31 = vector.extract_strided_slice %5 {offsets = [0, 0], sizes = [8, 8], strides = [1, 1]} : vector<8x32xbf16> to vector<8x8xbf16>
    %cst_14 = arith.constant dense<0.000000e+00> : vector<8x8xf32>
    %32 = tpu.matmul %30, %31, %cst_14 {dimension_numbers = #tpu.dot_dimension_numbers<[1], [0], [0], [1], [0, 0, 1, 1], [], []>} : vector<8x8xbf16>, vector<8x8xbf16>, vector<8x8xf32> -> vector<8x8xf32>
    %33 = vector.extract_strided_slice %1 {offsets = [0, 8], sizes = [8, 8], strides = [1, 1]} : vector<8x32xbf16> to vector<8x8xbf16>
    %34 = vector.extract_strided_slice %4 {offsets = [0, 8], sizes = [8, 8], strides = [1, 1]} : vector<8x32xbf16> to vector<8x8xbf16>
    %cst_15 = arith.constant dense<0.000000e+00> : vector<8x8xf32>
    %35 = tpu.matmul %33, %34, %cst_15 {dimension_numbers = #tpu.dot_dimension_numbers<[1], [1], [0], [0], [0, 0, 1, 0], [], []>} : vector<8x8xbf16>, vector<8x8xbf16>, vector<8x8xf32> -> vector<8x8xf32>
    %cst_16 = arith.constant 0.353553385 : f32
    %36 = vector.broadcast %cst_16 : f32 to vector<8x8xf32>
    %37 = arith.mulf %35, %36 : vector<8x8xf32>
    %38 = vector.broadcast %12 : vector<1x8xf32> to vector<8x8xf32>
    %39 = arith.addf %37, %38 : vector<8x8xf32>
    %cst_17 = arith.constant dense<0xFF800000> : vector<8xf32>
    %40 = vector.multi_reduction <maximumf>, %39, %cst_17 [1] : vector<8x8xf32> to vector<8xf32>
    %41 = vector.shape_cast %40 : vector<8xf32> to vector<8x1xf32>
    %42 = vector.broadcast %41 : vector<8x1xf32> to vector<8x8xf32>
    %43 = arith.subf %39, %42 : vector<8x8xf32>
    %44 = math.exp %43 : vector<8x8xf32>
    %cst_18 = arith.constant dense<0.000000e+00> : vector<8xf32>
    %45 = vector.multi_reduction <add>, %44, %cst_18 [1] : vector<8x8xf32> to vector<8xf32>
    %46 = vector.shape_cast %45 : vector<8xf32> to vector<8x1xf32>
    %47 = tpu.reciprocal %46 {approx = true} : vector<8x1xf32> -> vector<8x1xf32>
    %48 = vector.broadcast %47 : vector<8x1xf32> to vector<8x8xf32>
    %49 = arith.mulf %44, %48 : vector<8x8xf32>
    %50 = arith.truncf %49 : vector<8x8xf32> to vector<8x8xbf16>
    %51 = vector.extract_strided_slice %5 {offsets = [0, 8], sizes = [8, 8], strides = [1, 1]} : vector<8x32xbf16> to vector<8x8xbf16>
    %cst_19 = arith.constant dense<0.000000e+00> : vector<8x8xf32>
    %52 = tpu.matmul %50, %51, %cst_19 {dimension_numbers = #tpu.dot_dimension_numbers<[1], [0], [0], [1], [0, 0, 1, 1], [], []>} : vector<8x8xbf16>, vector<8x8xbf16>, vector<8x8xf32> -> vector<8x8xf32>
    %53 = vector.extract_strided_slice %1 {offsets = [0, 16], sizes = [8, 8], strides = [1, 1]} : vector<8x32xbf16> to vector<8x8xbf16>
    %54 = vector.extract_strided_slice %4 {offsets = [0, 16], sizes = [8, 8], strides = [1, 1]} : vector<8x32xbf16> to vector<8x8xbf16>
    %cst_20 = arith.constant dense<0.000000e+00> : vector<8x8xf32>
    %55 = tpu.matmul %53, %54, %cst_20 {dimension_numbers = #tpu.dot_dimension_numbers<[1], [1], [0], [0], [0, 0, 1, 0], [], []>} : vector<8x8xbf16>, vector<8x8xbf16>, vector<8x8xf32> -> vector<8x8xf32>
    %cst_21 = arith.constant 0.353553385 : f32
    %56 = vector.broadcast %cst_21 : f32 to vector<8x8xf32>
    %57 = arith.mulf %55, %56 : vector<8x8xf32>
    %58 = vector.broadcast %12 : vector<1x8xf32> to vector<8x8xf32>
    %59 = arith.addf %57, %58 : vector<8x8xf32>
    %cst_22 = arith.constant dense<0xFF800000> : vector<8xf32>
    %60 = vector.multi_reduction <maximumf>, %59, %cst_22 [1] : vector<8x8xf32> to vector<8xf32>
    %61 = vector.shape_cast %60 : vector<8xf32> to vector<8x1xf32>
    %62 = vector.broadcast %61 : vector<8x1xf32> to vector<8x8xf32>
    %63 = arith.subf %59, %62 : vector<8x8xf32>
    %64 = math.exp %63 : vector<8x8xf32>
    %cst_23 = arith.constant dense<0.000000e+00> : vector<8xf32>
    %65 = vector.multi_reduction <add>, %64, %cst_23 [1] : vector<8x8xf32> to vector<8xf32>
    %66 = vector.shape_cast %65 : vector<8xf32> to vector<8x1xf32>
    %67 = tpu.reciprocal %66 {approx = true} : vector<8x1xf32> -> vector<8x1xf32>
    %68 = vector.broadcast %67 : vector<8x1xf32> to vector<8x8xf32>
    %69 = arith.mulf %64, %68 : vector<8x8xf32>
    %70 = arith.truncf %69 : vector<8x8xf32> to vector<8x8xbf16>
    %71 = vector.extract_strided_slice %5 {offsets = [0, 16], sizes = [8, 8], strides = [1, 1]} : vector<8x32xbf16> to vector<8x8xbf16>
    %cst_24 = arith.constant dense<0.000000e+00> : vector<8x8xf32>
    %72 = tpu.matmul %70, %71, %cst_24 {dimension_numbers = #tpu.dot_dimension_numbers<[1], [0], [0], [1], [0, 0, 1, 1], [], []>} : vector<8x8xbf16>, vector<8x8xbf16>, vector<8x8xf32> -> vector<8x8xf32>
    %73 = vector.extract_strided_slice %1 {offsets = [0, 24], sizes = [8, 8], strides = [1, 1]} : vector<8x32xbf16> to vector<8x8xbf16>
    %74 = vector.extract_strided_slice %4 {offsets = [0, 24], sizes = [8, 8], strides = [1, 1]} : vector<8x32xbf16> to vector<8x8xbf16>
    %cst_25 = arith.constant dense<0.000000e+00> : vector<8x8xf32>
    %75 = tpu.matmul %73, %74, %cst_25 {dimension_numbers = #tpu.dot_dimension_numbers<[1], [1], [0], [0], [0, 0, 1, 0], [], []>} : vector<8x8xbf16>, vector<8x8xbf16>, vector<8x8xf32> -> vector<8x8xf32>
    %cst_26 = arith.constant 0.353553385 : f32
    %76 = vector.broadcast %cst_26 : f32 to vector<8x8xf32>
    %77 = arith.mulf %75, %76 : vector<8x8xf32>
    %78 = vector.broadcast %12 : vector<1x8xf32> to vector<8x8xf32>
    %79 = arith.addf %77, %78 : vector<8x8xf32>
    %cst_27 = arith.constant dense<0xFF800000> : vector<8xf32>
    %80 = vector.multi_reduction <maximumf>, %79, %cst_27 [1] : vector<8x8xf32> to vector<8xf32>
    %81 = vector.shape_cast %80 : vector<8xf32> to vector<8x1xf32>
    %82 = vector.broadcast %81 : vector<8x1xf32> to vector<8x8xf32>
    %83 = arith.subf %79, %82 : vector<8x8xf32>
    %84 = math.exp %83 : vector<8x8xf32>
    %cst_28 = arith.constant dense<0.000000e+00> : vector<8xf32>
    %85 = vector.multi_reduction <add>, %84, %cst_28 [1] : vector<8x8xf32> to vector<8xf32>
    %86 = vector.shape_cast %85 : vector<8xf32> to vector<8x1xf32>
    %87 = tpu.reciprocal %86 {approx = true} : vector<8x1xf32> -> vector<8x1xf32>
    %88 = vector.broadcast %87 : vector<8x1xf32> to vector<8x8xf32>
    %89 = arith.mulf %84, %88 : vector<8x8xf32>
    %90 = arith.truncf %89 : vector<8x8xf32> to vector<8x8xbf16>
    %91 = vector.extract_strided_slice %5 {offsets = [0, 24], sizes = [8, 8], strides = [1, 1]} : vector<8x32xbf16> to vector<8x8xbf16>
    %cst_29 = arith.constant dense<0.000000e+00> : vector<8x8xf32>
    %92 = tpu.matmul %90, %91, %cst_29 {dimension_numbers = #tpu.dot_dimension_numbers<[1], [0], [0], [1], [0, 0, 1, 1], [], []>} : vector<8x8xbf16>, vector<8x8xbf16>, vector<8x8xf32> -> vector<8x8xf32>
    %93 = tpu.concatenate %32, %52, %72, %92 in 1 : vector<8x8xf32>, vector<8x8xf32>, vector<8x8xf32>, vector<8x8xf32> -> vector<8x32xf32>
    %94 = arith.truncf %93 : vector<8x32xf32> to vector<8x32xbf16>
    %c0_30 = arith.constant 0 : index
    %c0_31 = arith.constant 0 : index
    %c0_32 = arith.constant 0 : index
    %95 = vector.load %arg4[%c0_30, %c0_31, %c0_32] : memref<1x8x32xbf16, #tpu.memory_space<vmem>>, vector<1x8x32xbf16>
    %96 = vector.shape_cast %95 : vector<1x8x32xbf16> to vector<8x32xbf16>
    %97 = vector.shape_cast %94 : vector<8x32xbf16> to vector<1x8x32xbf16>
    tpu.vector_store %arg4[%c0_30, %c0_31, %c0_32], %97 {strides = array<i32>} : memref<1x8x32xbf16, #tpu.memory_space<vmem>>, vector<1x8x32xbf16>,
    return
  }
  func.func @transform_0(%arg0: i32) -> (i32, i32, i32) {
    %c0_i32 = arith.constant 0 : i32
    %c0_i32_0 = arith.constant 0 : i32
    %c0_i32_1 = arith.constant 0 : i32
    return %arg0, %c0_i32, %c0_i32_0 : i32, i32, i32
  }
  func.func @transform_1(%arg0: i32) -> (i32, i32, i32) {
    %c0_i32 = arith.constant 0 : i32
    %c0_i32_0 = arith.constant 0 : i32
    %c0_i32_1 = arith.constant 0 : i32
    return %arg0, %c0_i32, %c0_i32_0 : i32, i32, i32
  }
  func.func @transform_2(%arg0: i32) -> (i32, i32, i32) {
    %c0_i32 = arith.constant 0 : i32
    %c0_i32_0 = arith.constant 0 : i32
    %c0_i32_1 = arith.constant 0 : i32
    return %arg0, %c0_i32, %c0_i32_0 : i32, i32, i32
  }
  func.func @transform_3(%arg0: i32) -> (i32, i32, i32) {
    %c0_i32 = arith.constant 0 : i32
    %c0_i32_0 = arith.constant 0 : i32
    %c0_i32_1 = arith.constant 0 : i32
    return %arg0, %c0_i32, %c0_i32_0 : i32, i32, i32
  }
}

</mosaic_0001>

<llo_original>
// kernel: transformer_forward.36
$region0: #{transformer_forward.36}
  #allocation0 [shape = 'u32[]', space=smem, size = 0x4, offset = 0x4, fixed_abs, tag = 'smem constant byte address 0x4 - core index']
  #allocation1 [shape = 'u32[72,128]{1,0:T(1,128)}', space=vmem, size = 0x9000, scoped, tag = 'internal scratch']
  #allocation2 [shape = 'f32[16,32]{1,0:T(8,128)}', space=vmem, size = 0x2000, scoped, tag = 'scratch operand']
  %s0 = inlined_call_operand.vmem [shape: bf16[16,32], index: 0, kind: input, shape index: {}]
  %s1 = inlined_call_operand.vmem [shape: bf16[32,32], index: 1, kind: input, shape index: {}]
  %s2 = inlined_call_operand.vmem [shape: f32[1,32], index: 2, kind: input, shape index: {}]
  %s3 = inlined_call_operand.vmem [shape: bf16[16,32], index: 3, kind: input, shape index: {}]
  %s4 = inlined_call_operand.vmem [shape: bf16[16,32], index: 4, kind: output, shape index: {}]
  %s5 = sld [smem:[#allocation0]]
  $region34: #{transformer_forward.36} parent=0
    _
  %s7 = ssub.s32 1, %s5
  %s8 = scalar_select 0, %s7, %s5
  // Predicated region
  $region2: #{transformer_forward.36} parent=0 // pred_check
    _
  $region3: #{transformer_forward.36} parent=0 // pred_check_branch
    %10 = sbr.rel (0) target = $region5
  $region4: #{transformer_forward.36} parent=0 // pred_region
    _
  $region5: #{transformer_forward.36} parent=0 // pred_fallthru
    _
  // Predicated region
  $region6: #{transformer_forward.36} parent=0 // pred_check
    _
  $region7: #{transformer_forward.36} parent=0 // pred_check_branch
    %12 = sbr.rel (0) target = $region9
  $region8: #{transformer_forward.36} parent=0 // pred_region
    _
  $region9: #{transformer_forward.36} parent=0 // pred_fallthru
    _
  // Predicated region
  $region10: #{transformer_forward.36} parent=0 // pred_check
    _
  $region11: #{transformer_forward.36} parent=0 // pred_check_branch
    %14 = sbr.rel (0) target = $region13
  $region12: #{transformer_forward.36} parent=0 // pred_region
    _
  $region13: #{transformer_forward.36} parent=0 // pred_fallthru
    _
  // Predicated region
  $region14: #{transformer_forward.36} parent=0 // pred_check
    _
  $region15: #{transformer_forward.36} parent=0 // pred_check_branch
    %16 = sbr.rel (0) target = $region17
  $region16: #{transformer_forward.36} parent=0 // pred_region
    _
  $region17: #{transformer_forward.36} parent=0 // pred_fallthru
    _
  %p18 = scmp.eq.s32.totalorder 0, 0
  // Predicated region
  $region18: #{transformer_forward.36} parent=0 // pred_check
    %p19 = pneg %p18
  $region19: #{transformer_forward.36} parent=0 // pred_check_branch
    %21 = sbr.rel (%p19) target = $region21
  $region20: #{transformer_forward.36} parent=0 // pred_region
    %vm22 = vcmask 261120
    %23 = vst.msk [vmem:[#allocation2] sm:$0xff] %vm22, 0.0
    %24 = vst.msk [vmem:[#allocation2 + $0x8] sm:$0xff] %vm22, 0.0
  $region21: #{transformer_forward.36} parent=0 // pred_fallthru
    _
  %v25 = vld [vmem:[%s0] sm:$0xf]
  %v26 = vld [vmem:[%s0 + $0x4] sm:$0xf]
  %v27 = vld [vmem:[#allocation2] sm:$0xff]
  %v28 = vld [vmem:[#allocation2 + $0x8] sm:$0xff]
  %v29 = vld [vmem:[%s1] sm:$0xf]
  %v30 = vld [vmem:[%s1 + $0x4] sm:$0xf]
  %v31 = vld [vmem:[%s1 + $0x8] sm:$0xf]
  %v32 = vld [vmem:[%s1 + $0xc] sm:$0xf]
  %v35 = vunpack.c.l.b16 %v25
  %v36 = vunpack.c.l.b16 %v26
  %v37 = vpack.c.b16 %v36, %v35
  %v42 = vunpack.c.l.b16 %v29
  %v43 = vunpack.c.l.b16 %v30
  %v44 = vunpack.c.l.b16 %v31
  %v45 = vunpack.c.l.b16 %v32
  %v46 = vpack.c.b16 %v43, %v42
  %v47 = vpack.c.b16 %v45, %v44
  %vm50 = vcmask 261120
  %v52 = vsel %vm50, %v37, 0
  %54 = vmatpush.bf16.msra.mxu0 0
  %55 = vmatpush.bf16.msra.mxu0 0
  %56 = vmatpush.bf16.msra.mxu0 0
  %57 = vmatpush.bf16.msra.mxu0 0
  %58 = vmatpush.bf16.msra.mxu0 0
  %59 = vmatpush.bf16.msra.mxu0 0
  %60 = vmatpush.bf16.msra.mxu0 %v47
  %61 = vmatpush.bf16.msra.mxu0 %v46
  %62 = vmatmul.bf16.gmra.mxu0 %v52
  %v63 = vpop.f32.mrf.mxu0
  %v64 = vadd.f32 0.0, %v63
  %v65 = vpop.f32.mrf.mxu0
  %v66 = vadd.f32 0.0, %v65
  %67 = vdwg.mxu0
  %v68 = vadd.f32 %v27, %v64
  %v69 = vadd.f32 %v28, %v66
  %70 = vst.msk [vmem:[#allocation2] sm:$0xff] %vm50, %v68
  %71 = vst.msk [vmem:[#allocation2 + $0x8] sm:$0xff] %vm50, %v69
  // Predicated region
  $region22: #{transformer_forward.36} parent=0 // pred_check
    %p72 = pneg %p18
  $region23: #{transformer_forward.36} parent=0 // pred_check_branch
    %74 = sbr.rel (%p72) target = $region25
  $region24: #{transformer_forward.36} parent=0 // pred_region
    %v75 = vld [vmem:[#allocation2] sm:$0xff]
    %v76 = vld [vmem:[#allocation2 + $0x8] sm:$0xff]
    %v77 = vld [vmem:[%s2] sm:$0x1]
    %v79 = vperm.slane %v77, 0
    %v81 = vadd.f32 %v75, %v79
    %v82 = vadd.f32 %v76, %v79
    %v83 = vld [vmem:[%s3] sm:$0xf]
    %v84 = vld [vmem:[%s3 + $0x4] sm:$0xf]
    %v85 = vunpack.c.l.bf16 %v83
    %v86 = vunpack.c.l.bf16 %v84
    %v87 = vadd.f32 %v81, %v85
    %v88 = vadd.f32 %v82, %v86
    %v89 = vpack.c.bf16 %v87, %v87
    %v90 = vpack.c.bf16 %v88, %v88
    %vm91 = vcmask 257024
    %92 = vst.msk [vmem:[%s4] sm:$0xf] %vm91, %v89
    %93 = vst.msk [vmem:[%s4 + $0x4] sm:$0xf] %vm91, %v90
  $region25: #{transformer_forward.36} parent=0 // pred_fallthru
    _
  // Predicated region
  $region26: #{transformer_forward.36} parent=0 // pred_check
    _
  $region27: #{transformer_forward.36} parent=0 // pred_check_branch
    %95 = sbr.rel (0) target = $region29
  $region28: #{transformer_forward.36} parent=0 // pred_region
    _
  $region29: #{transformer_forward.36} parent=0 // pred_fallthru
    _
  // Predicated region
  $region30: #{transformer_forward.36} parent=0 // pred_check
    _
  $region31: #{transformer_forward.36} parent=0 // pred_check_branch
    %97 = sbr.rel (0) target = $region33
  $region32: #{transformer_forward.36} parent=0 // pred_region
    _
  $region33: #{transformer_forward.36} parent=0 // pred_fallthru
    _

// kernel: transformer_forward.34
$region0: #{transformer_forward.34}
  #allocation0 [shape = 'u32[]', space=smem, size = 0x4, offset = 0x4, fixed_abs, tag = 'smem constant byte address 0x4 - core index']
  #allocation1 [shape = 'u32[72,128]{1,0:T(1,128)}', space=vmem, size = 0x9000, scoped, tag = 'internal scratch']
  #allocation2 [shape = 'f32[16,96]{1,0:T(8,128)}', space=vmem, size = 0x2000, scoped, tag = 'scratch operand']
  %s0 = inlined_call_operand.vmem [shape: bf16[16,32], index: 0, kind: input, shape index: {}]
  %s1 = inlined_call_operand.vmem [shape: bf16[32,96], index: 1, kind: input, shape index: {}]
  %s2 = inlined_call_operand.vmem [shape: f32[1,96], index: 2, kind: input, shape index: {}]
  %s3 = inlined_call_operand.vmem [shape: f32[1,32], index: 3, kind: input, shape index: {}]
  %s4 = inlined_call_operand.vmem [shape: f32[1,32], index: 4, kind: input, shape index: {}]
  %s5 = inlined_call_operand.vmem [shape: bf16[16,96], index: 5, kind: output, shape index: {}]
  %s6 = sld [smem:[#allocation0]]
  $region38: #{transformer_forward.34} parent=0
    _
  %s8 = ssub.s32 1, %s6
  %s9 = scalar_select 0, %s8, %s6
  // Predicated region
  $region2: #{transformer_forward.34} parent=0 // pred_check
    _
  $region3: #{transformer_forward.34} parent=0 // pred_check_branch
    %11 = sbr.rel (0) target = $region5
  $region4: #{transformer_forward.34} parent=0 // pred_region
    _
  $region5: #{transformer_forward.34} parent=0 // pred_fallthru
    _
  // Predicated region
  $region6: #{transformer_forward.34} parent=0 // pred_check
    _
  $region7: #{transformer_forward.34} parent=0 // pred_check_branch
    %13 = sbr.rel (0) target = $region9
  $region8: #{transformer_forward.34} parent=0 // pred_region
    _
  $region9: #{transformer_forward.34} parent=0 // pred_fallthru
    _
  // Predicated region
  $region10: #{transformer_forward.34} parent=0 // pred_check
    _
  $region11: #{transformer_forward.34} parent=0 // pred_check_branch
    %15 = sbr.rel (0) target = $region13
  $region12: #{transformer_forward.34} parent=0 // pred_region
    _
  $region13: #{transformer_forward.34} parent=0 // pred_fallthru
    _
  // Predicated region
  $region14: #{transformer_forward.34} parent=0 // pred_check
    _
  $region15: #{transformer_forward.34} parent=0 // pred_check_branch
    %17 = sbr.rel (0) target = $region17
  $region16: #{transformer_forward.34} parent=0 // pred_region
    _
  $region17: #{transformer_forward.34} parent=0 // pred_fallthru
    _
  // Predicated region
  $region18: #{transformer_forward.34} parent=0 // pred_check
    _
  $region19: #{transformer_forward.34} parent=0 // pred_check_branch
    %19 = sbr.rel (0) target = $region21
  $region20: #{transformer_forward.34} parent=0 // pred_region
    _
  $region21: #{transformer_forward.34} parent=0 // pred_fallthru
    _
  %p21 = scmp.eq.s32.totalorder 0, 0
  // Predicated region
  $region22: #{transformer_forward.34} parent=0 // pred_check
    %p22 = pneg %p21
  $region23: #{transformer_forward.34} parent=0 // pred_check_branch
    %24 = sbr.rel (%p22) target = $region25
  $region24: #{transformer_forward.34} parent=0 // pred_region
    %vm25 = vcmask 785408
    %26 = vst.msk [vmem:[#allocation2] sm:$0xff] %vm25, 0.0
    %27 = vst.msk [vmem:[#allocation2 + $0x8] sm:$0xff] %vm25, 0.0
  $region25: #{transformer_forward.34} parent=0 // pred_fallthru
    _
  %v28 = vld [vmem:[%s0] sm:$0xf]
  %v29 = vld [vmem:[%s0 + $0x4] sm:$0xf]
  %v30 = vunpack.c.l.bf16 %v28
  %v31 = vunpack.c.l.bf16 %v29
  %vm32 = vcmask 261120
  %v33 = vsel %vm32, %v30, 0.0
  %34 = vadd.xlane.f32.xlu0 %v33
  %v35 = vpop.xlane.xlu0 %34
  %v36 = vsel %vm32, %v31, 0.0
  %37 = vadd.xlane.f32.xlu0 %v36
  %v38 = vpop.xlane.xlu0 %37
  %v39 = vrcp.pop 32.0
  %v40 = vmul.f32 32.0, %v39
  %v41 = vsub.f32 1.0, %v40
  %v42 = vmul.f32 %v39, %v41
  %v43 = vadd.f32 %v39, %v42
  %vm44 = vweird.f32 %v39
  %v45 = vsel %vm44, %v39, %v43
  %v46 = vmul.f32 %v35, %v45
  %v47 = vmul.f32 %v38, %v45
  %v48 = vsub.f32 %v30, %v46
  %v49 = vsub.f32 %v31, %v47
  %v50 = vmul.f32 %v48, %v48
  %v51 = vmul.f32 %v49, %v49
  %v52 = vsel %vm32, %v50, 0.0
  %53 = vadd.xlane.f32.xlu0 %v52
  %v54 = vpop.xlane.xlu0 %53
  %v55 = vsel %vm32, %v51, 0.0
  %56 = vadd.xlane.f32.xlu0 %v55
  %v57 = vpop.xlane.xlu0 %56
  %v58 = vrcp.pop 31.0
  %v59 = vmul.f32 31.0, %v58
  %v60 = vsub.f32 1.0, %v59
  %v61 = vmul.f32 %v58, %v60
  %v62 = vadd.f32 %v58, %v61
  %vm63 = vweird.f32 %v58
  %v64 = vsel %vm63, %v58, %v62
  %v65 = vmul.f32 %v54, %v64
  %v66 = vmul.f32 %v57, %v64
  %v67 = vrsqrt.pop %v65
  %v68 = vmul.f32 %v67, %v65
  %v69 = vmul.f32 %v68, %v67
  %v70 = vmul.f32 0.5, %v69
  %v71 = vsub.f32 1.5, %v70
  %v72 = vmul.f32 %v67, %v71
  %v73 = vmul.f32 %v65, %v72
  %vm74 = vcmp.eq.f32.partialorder %v65, inf
  %v75 = vsel %vm74, %v65, %v73
  %vm76 = vcmp.eq.f32.partialorder %v65, 0.0
  %v77 = vand.u32 %v65, 2147483648
  %v78 = vsel %vm76, %v77, %v75
  %v79 = vrsqrt.pop %v66
  %v80 = vmul.f32 %v79, %v66
  %v81 = vmul.f32 %v80, %v79
  %v82 = vmul.f32 0.5, %v81
  %v83 = vsub.f32 1.5, %v82
  %v84 = vmul.f32 %v79, %v83
  %v85 = vmul.f32 %v66, %v84
  %vm86 = vcmp.eq.f32.partialorder %v66, inf
  %v87 = vsel %vm86, %v66, %v85
  %vm88 = vcmp.eq.f32.partialorder %v66, 0.0
  %v89 = vand.u32 %v66, 2147483648
  %v90 = vsel %vm88, %v89, %v87
  %v91 = vadd.f32 %v78, 1e-06
  %v92 = vadd.f32 %v90, 1e-06
  %v93 = vrcp.pop %v91
  %v94 = vrcp.pop %v92
  %v95 = vld [vmem:[%s3] sm:$0x1]
  %v97 = vperm.slane %v95, 0
  %v99 = vmul.f32 %v97, %v48
  %v100 = vmul.f32 %v97, %v49
  %v101 = vmul.f32 %v99, %v93
  %v102 = vmul.f32 %v100, %v94
  %v103 = vld [vmem:[%s4] sm:$0x1]
  %v105 = vperm.slane %v103, 0
  %v107 = vadd.f32 %v101, %v105
  %v108 = vadd.f32 %v102, %v105
  %v109 = vpack.c.bf16 %v108, %v107
  %v110 = vld [vmem:[#allocation2] sm:$0xff]
  %v111 = vld [vmem:[#allocation2 + $0x8] sm:$0xff]
  %v112 = vld [vmem:[%s1] sm:$0xf]
  %v113 = vld [vmem:[%s1 + $0x4] sm:$0xf]
  %v114 = vld [vmem:[%s1 + $0x8] sm:$0xf]
  %v115 = vld [vmem:[%s1 + $0xc] sm:$0xf]
  %v120 = vunpack.c.l.b16 %v112
  %v121 = vunpack.c.l.b16 %v113
  %v122 = vunpack.c.l.b16 %v114
  %v123 = vunpack.c.l.b16 %v115
  %v124 = vpack.c.b16 %v121, %v120
  %v125 = vpack.c.b16 %v123, %v122
  %v129 = vsel %vm32, %v109, 0
  %131 = vmatpush.bf16.msra.mxu0 0
  %132 = vmatpush.bf16.msra.mxu0 0
  %133 = vmatpush.bf16.msra.mxu0 0
  %134 = vmatpush.bf16.msra.mxu0 0
  %135 = vmatpush.bf16.msra.mxu0 0
  %136 = vmatpush.bf16.msra.mxu0 0
  %137 = vmatpush.bf16.msra.mxu0 %v125
  %138 = vmatpush.bf16.msra.mxu0 %v124
  %139 = vmatmul.bf16.gmra.mxu0 %v129
  %v140 = vpop.f32.mrf.mxu0
  %v141 = vadd.f32 0.0, %v140
  %v142 = vpop.f32.mrf.mxu0
  %v143 = vadd.f32 0.0, %v142
  %144 = vdwg.mxu0
  %v145 = vadd.f32 %v110, %v141
  %v146 = vadd.f32 %v111, %v143
  %vm147 = vcmask 785408
  %148 = vst.msk [vmem:[#allocation2] sm:$0xff] %vm147, %v145
  %149 = vst.msk [vmem:[#allocation2 + $0x8] sm:$0xff] %vm147, %v146
  // Predicated region
  $region26: #{transformer_forward.34} parent=0 // pred_check
    %p150 = pneg %p21
  $region27: #{transformer_forward.34} parent=0 // pred_check_branch
    %152 = sbr.rel (%p150) target = $region29
  $region28: #{transformer_forward.34} parent=0 // pred_region
    %v153 = vld [vmem:[#allocation2] sm:$0xff]
    %v154 = vld [vmem:[#allocation2 + $0x8] sm:$0xff]
    %v155 = vld [vmem:[%s2] sm:$0x1]
    %v157 = vperm.slane %v155, 0
    %v159 = vadd.f32 %v153, %v157
    %v160 = vadd.f32 %v154, %v157
    %v161 = vpack.c.bf16 %v159, %v159
    %v162 = vpack.c.bf16 %v160, %v160
    %vm163 = vcmask 781312
    %164 = vst.msk [vmem:[%s5] sm:$0xf] %vm163, %v161
    %165 = vst.msk [vmem:[%s5 + $0x4] sm:$0xf] %vm163, %v162
  $region29: #{transformer_forward.34} parent=0 // pred_fallthru
    _
  // Predicated region
  $region30: #{transformer_forward.34} parent=0 // pred_check
    _
  $region31: #{transformer_forward.34} parent=0 // pred_check_branch
    %167 = sbr.rel (0) target = $region33
  $region32: #{transformer_forward.34} parent=0 // pred_region
    _
  $region33: #{transformer_forward.34} parent=0 // pred_fallthru
    _
  // Predicated region
  $region34: #{transformer_forward.34} parent=0 // pred_check
    _
  $region35: #{transformer_forward.34} parent=0 // pred_check_branch
    %169 = sbr.rel (0) target = $region37
  $region36: #{transformer_forward.34} parent=0 // pred_region
    _
  $region37: #{transformer_forward.34} parent=0 // pred_fallthru
    _

// kernel: transformer_forward.35
$region0: #{transformer_forward.35}
  #allocation0 [shape = 'u32[]', space=smem, size = 0x4, offset = 0x4, fixed_abs, tag = 'smem constant byte address 0x4 - core index']
  #allocation1 [shape = 'u32[72,128]{1,0:T(1,128)}', space=vmem, size = 0x9000, scoped, tag = 'internal scratch']
  %s0 = inlined_call_operand.vmem [shape: bf16[2,8,96], index: 0, kind: input, shape index: {}]
  %s1 = inlined_call_operand.vmem [shape: f32[2,1,8], index: 1, kind: input, shape index: {}]
  %s2 = inlined_call_operand.vmem [shape: bf16[2,8,32], index: 2, kind: output, shape index: {}]
  %s3 = sld [smem:[#allocation0]]
  $region41: #{transformer_forward.35} parent=0
    _
  %s5 = ssub.s32 1, %s3
  %s6 = scalar_select 0, %s5, %s3
  loop: start=0, step=1, limit=4
  $region2: #{transformer_forward.35} parent=0 // loop_pre_header
    _
  $region3: #{transformer_forward.35} parent=0 // loop_header
    %s8 = sphi 0, %s12
    %p9 = scmp.ge.s32.totalorder %s8, 4
    %s18 = sphi 0, %s20
    %s21 = sphi 0, %s18
    %s22 = sphi 0, %s21
    %s38 = sphi 0, %s22
    %s44 = sphi 0, %s46
    %s47 = sphi 0, %s44
    %s48 = sphi 0, %s47
    %s64 = sphi 0, %s48
    %s70 = sphi 0, %s72
    %s73 = sphi 0, %s70
    %s74 = sphi 0, %s73
    %s90 = sphi 0, %s74
  $region4: #{transformer_forward.35} parent=0 // loop_header_branch
    %11 = sbr.rel (%p9) target = $region8
  $region5: #{transformer_forward.35} parent=0 // loop_body
    %s13 = ssub.s32 %s8, 1
    %s14 = ssub.s32 %s8, 2
    %s15 = sadd.s32 %s8, 1
    %s16 = ssub.s32 %s8, %s15
    %p17 = scmp.eq.s32.totalorder %s16, 0
    %s19 = sadd.s32 %s18, 1
    %s20 = scalar_select %p17, %s18, %s19
    %p23 = pneg %p17
    %p24 = scmp.eq.s32.totalorder %s8, 1
    %p25 = por %p23, %p24
    %p26 = scmp.ne.s32.totalorder %s18, %s21
    %p27 = scmp.eq.s32.totalorder %s8, 0
    %p28 = por %p26, %p27
    %p29 = scmp.ne.s32.totalorder %s18, %s21
    %p30 = scmp.eq.s32.totalorder %s13, 1
    %p31 = por %p29, %p30
    %p32 = scmp.ne.s32.totalorder %s21, %s22
    %p33 = scmp.eq.s32.totalorder %s13, 0
    %p34 = por %p32, %p33
    %p35 = scmp.ne.s32.totalorder %s21, %s22
    %p36 = scmp.eq.s32.totalorder %s14, 1
    %p37 = por %p35, %p36
    %p39 = scmp.ne.s32.totalorder %s22, %s38
    %p40 = scmp.eq.s32.totalorder %s14, 0
    %p41 = por %p39, %p40
    %s42 = ssub.s32 %s8, %s15
    %p43 = scmp.eq.s32.totalorder %s42, 0
    %s45 = sadd.s32 %s44, 1
    %s46 = scalar_select %p43, %s44, %s45
    %p49 = pneg %p43
    %p50 = scmp.eq.s32.totalorder %s8, 1
    %p51 = por %p49, %p50
    %p52 = scmp.ne.s32.totalorder %s44, %s47
    %p53 = scmp.eq.s32.totalorder %s8, 0
    %p54 = por %p52, %p53
    %p55 = scmp.ne.s32.totalorder %s44, %s47
    %p56 = scmp.eq.s32.totalorder %s13, 1
    %p57 = por %p55, %p56
    %p58 = scmp.ne.s32.totalorder %s47, %s48
    %p59 = scmp.eq.s32.totalorder %s13, 0
    %p60 = por %p58, %p59
    %p61 = scmp.ne.s32.totalorder %s47, %s48
    %p62 = scmp.eq.s32.totalorder %s14, 1
    %p63 = por %p61, %p62
    %p65 = scmp.ne.s32.totalorder %s48, %s64
    %p66 = scmp.eq.s32.totalorder %s14, 0
    %p67 = por %p65, %p66
    %s68 = ssub.s32 %s8, %s15
    %p69 = scmp.eq.s32.totalorder %s68, 0
    %s71 = sadd.s32 %s70, 1
    %s72 = scalar_select %p69, %s70, %s71
    %p75 = pneg %p69
    %p76 = scmp.eq.s32.totalorder %s8, 1
    %p77 = por %p75, %p76
    %p78 = scmp.ne.s32.totalorder %s70, %s73
    %p79 = scmp.eq.s32.totalorder %s8, 0
    %p80 = por %p78, %p79
    %p81 = scmp.ne.s32.totalorder %s70, %s73
    %p82 = scmp.eq.s32.totalorder %s13, 1
    %p83 = por %p81, %p82
    %p84 = scmp.ne.s32.totalorder %s73, %s74
    %p85 = scmp.eq.s32.totalorder %s13, 0
    %p86 = por %p84, %p85
    %p87 = scmp.ne.s32.totalorder %s73, %s74
    %p88 = scmp.eq.s32.totalorder %s14, 1
    %p89 = por %p87, %p88
    %p91 = scmp.ne.s32.totalorder %s74, %s90
    %p92 = scmp.eq.s32.totalorder %s14, 0
    %p93 = por %p91, %p92
    %p94 = scmp.le.s32.totalorder 1, %s8
    %p95 = scmp.lt.s32.totalorder %s8, 3
    %p96 = pnand %p94, %p95
    %p97 = pneg %p96
    // Predicated region
    $region9: #{transformer_forward.35} parent=5 // pred_check
      _
    $region10: #{transformer_forward.35} parent=5 // pred_check_branch
      %99 = sbr.rel (%p96) target = $region12
    $region11: #{transformer_forward.35} parent=5 // pred_region
      %s100 = ssub.s32 %s8, 1
    $region12: #{transformer_forward.35} parent=5 // pred_fallthru
      _
    %p101 = scmp.lt.s32.totalorder %s8, 2
    // Predicated region
    $region13: #{transformer_forward.35} parent=5 // pred_check
      %p102 = pneg %p101
    $region14: #{transformer_forward.35} parent=5 // pred_check_branch
      %104 = sbr.rel (%p102) target = $region16
    $region15: #{transformer_forward.35} parent=5 // pred_region
      // Predicated region
      $region17: #{transformer_forward.35} parent=15 // pred_check
        %p105 = pneg %p28
      $region18: #{transformer_forward.35} parent=15 // pred_check_branch
        %107 = sbr.rel (%p105) target = $region20
      $region19: #{transformer_forward.35} parent=15 // pred_region
        %p108 = scmp.lt.s32.totalorder %s8, 1
        %s109 = scalar_select %p108, %s8, 1
        %s110 = smul.addr %s109, 4
        %s111 = scalar_lea.vmem %s0, %s110
      $region20: #{transformer_forward.35} parent=15 // pred_fallthru
        _
      // Predicated region
      $region21: #{transformer_forward.35} parent=15 // pred_check
        %p112 = pneg %p54
      $region22: #{transformer_forward.35} parent=15 // pred_check_branch
        %114 = sbr.rel (%p112) target = $region24
      $region23: #{transformer_forward.35} parent=15 // pred_region
        %p115 = scmp.lt.s32.totalorder %s8, 1
        %s116 = scalar_select %p115, %s8, 1
        %s117 = scalar_lea.vmem %s1, %s116
      $region24: #{transformer_forward.35} parent=15 // pred_fallthru
        _
    $region16: #{transformer_forward.35} parent=5 // pred_fallthru
      _
    %p118 = scmp.le.s32.totalorder 1, %s8
    %p119 = scmp.lt.s32.totalorder %s8, 3
    %p120 = pnand %p118, %p119
    %p121 = pneg %p120
    // Predicated region
    $region25: #{transformer_forward.35} parent=5 // pred_check
      _
    $region26: #{transformer_forward.35} parent=5 // pred_check_branch
      %123 = sbr.rel (%p120) target = $region28
    $region27: #{transformer_forward.35} parent=5 // pred_region
      %s124 = ssub.s32 %s8, 1
      %p125 = scmp.lt.s32.totalorder %s13, 1
      %s126 = scalar_select %p125, %s13, 1
      %s127 = smul.addr %s126, 4
      %s128 = scalar_lea.vmem %s0, %s127
      %p129 = pneg %p34
      %p130 = pneg %p31
      %p131 = scmp.lt.s32.totalorder %s13, 1
      %s132 = scalar_select %p131, %s13, 1
      %s133 = scalar_lea.vmem %s1, %s132
      %p134 = pneg %p60
      %p135 = pneg %p57
      %p136 = pneg %p86
      %p137 = pneg %p83
      %p138 = scmp.lt.s32.totalorder %s13, 1
      %s139 = scalar_select %p138, %s13, 1
      %s140 = smul.addr %s139, 4
      %s141 = scalar_lea.vmem %s2, %s140
      %p142 = scmp.lt.s32.totalorder %s13, 1
      %s143 = scalar_select %p142, %s13, 1
      %s144 = smul.addr %s143, 4
      %s145 = scalar_lea.vmem %s0, %s144
      %p146 = scmp.lt.s32.totalorder %s13, 1
      %s147 = scalar_select %p146, %s13, 1
      %s148 = scalar_lea.vmem %s1, %s147
      %p149 = scmp.lt.s32.totalorder %s13, 1
      %s150 = scalar_select %p149, %s13, 1
      %s151 = smul.addr %s150, 4
      %s152 = scalar_lea.vmem %s2, %s151
      %v154 = vld [vmem:[%s145] sm:$0xf]
      %v155 = vld [vmem:[%s148] sm:$0x1]
      %vm156 = vcmp.eq.f32.partialorder %v155, 0.0
      %v157 = vsel %vm156, -1e+09, 0.0
      %v159 = vunpack.c.l.b16 %v154
      %v160 = vpack.c.b16 %v159, %v159
      %161 = vrot.lane.b32.xlu0 %v160, 96
      %v162 = vpop.permute.xlu0 %161
      %vm163 = vcmask 64512
      %v165 = vsel %vm163, %v154, 0
      %v168 = vsel %vm163, %v162, 0
      %170 = vmatpush.bf16.xpose.msra.mxu0 0
      %171 = vmatpush.bf16.xpose.msra.mxu0 0
      %172 = vmatpush.bf16.xpose.msra.mxu0 0
      %173 = vmatpush.bf16.xpose.msra.mxu0 0
      %174 = vmatpush.bf16.xpose.msra.mxu0 0
      %175 = vmatpush.bf16.xpose.msra.mxu0 0
      %176 = vmatpush.bf16.xpose.msra.mxu0 0
      %177 = vmatpush.bf16.xpose.msra.mxu0 %v168
      %178 = vmatmul.bf16.gmra.mxu0 %v165
      %v179 = vpop.f32.mrf.mxu0
      %v180 = vadd.f32 0.0, %v179
      %v181 = vpop.f32.mrf.mxu0
      %182 = vdwg.mxu0
      %v183 = vmul.f32 %v180, 0.35355338
      %v185 = vperm.slane %v157, 0
      %v187 = vadd.f32 %v183, %v185
      %v188 = vsel %vm163, %v187, -inf
      %189 = vmax.xlane.f32.xlu0 %v188
      %v190 = vpop.xlane.xlu0 %189
      %v191 = vsub.f32 %v187, %v190
      %v192 = vmul.f32 %v191, 1.442695
      %v193 = vpow.pop %v192
      %v194 = vsel %vm163, %v193, 0.0
      %195 = vadd.xlane.f32.xlu0 %v194
      %v196 = vpop.xlane.xlu0 %195
      %v197 = vrcp.pop %v196
      %v198 = vmul.f32 %v193, %v197
      %v199 = vpack.c.bf16 %v198, %v198
      %200 = vrot.lane.b32.xlu0 %v160, 64
      %v201 = vpop.permute.xlu0 %200
      %v203 = vsel %vm163, %v199, 0
      %vm205 = vcmask 1043456
      %v207 = vsel %vm205, %v201, 0
      %209 = vmatpush.bf16.msra.mxu0 0
      %210 = vmatpush.bf16.msra.mxu0 0
      %211 = vmatpush.bf16.msra.mxu0 0
      %212 = vmatpush.bf16.msra.mxu0 0
      %213 = vmatpush.bf16.msra.mxu0 0
      %214 = vmatpush.bf16.msra.mxu0 0
      %215 = vmatpush.bf16.msra.mxu0 0
      %216 = vmatpush.bf16.msra.mxu0 %v207
      %217 = vmatmul.bf16.gmra.mxu0 %v203
      %v218 = vpop.f32.mrf.mxu0
      %v219 = vadd.f32 0.0, %v218
      %v220 = vpop.f32.mrf.mxu0
      %221 = vdwg.mxu0
      %222 = vrot.lane.b32.xlu0 %v160, 120
      %v223 = vpop.permute.xlu0 %222
      %224 = vrot.lane.b32.xlu0 %v160, 88
      %v225 = vpop.permute.xlu0 %224
      %v227 = vsel %vm163, %v223, 0
      %v230 = vsel %vm163, %v225, 0
      %232 = vmatpush.bf16.xpose.msra.mxu0 0
      %233 = vmatpush.bf16.xpose.msra.mxu0 0
      %234 = vmatpush.bf16.xpose.msra.mxu0 0
      %235 = vmatpush.bf16.xpose.msra.mxu0 0
      %236 = vmatpush.bf16.xpose.msra.mxu0 0
      %237 = vmatpush.bf16.xpose.msra.mxu0 0
      %238 = vmatpush.bf16.xpose.msra.mxu0 0
      %239 = vmatpush.bf16.xpose.msra.mxu0 %v230
      %240 = vmatmul.bf16.gmra.mxu0 %v227
      %v241 = vpop.f32.mrf.mxu0
      %v242 = vadd.f32 0.0, %v241
      %v243 = vpop.f32.mrf.mxu0
      %244 = vdwg.mxu0
      %v245 = vmul.f32 %v242, 0.35355338
      %v246 = vadd.f32 %v245, %v185
      %v247 = vsel %vm163, %v246, -inf
      %248 = vmax.xlane.f32.xlu0 %v247
      %v249 = vpop.xlane.xlu0 %248
      %v250 = vsub.f32 %v246, %v249
      %v251 = vmul.f32 %v250, 1.442695
      %v252 = vpow.pop %v251
      %v253 = vsel %vm163, %v252, 0.0
      %254 = vadd.xlane.f32.xlu0 %v253
      %v255 = vpop.xlane.xlu0 %254
      %v256 = vrcp.pop %v255
      %v257 = vmul.f32 %v252, %v256
      %v258 = vpack.c.bf16 %v257, %v257
      %259 = vrot.lane.b32.xlu0 %v160, 56
      %v260 = vpop.permute.xlu0 %259
      %v262 = vsel %vm163, %v258, 0
      %v265 = vsel %vm205, %v260, 0
      %267 = vmatpush.bf16.msra.mxu0 0
      %268 = vmatpush.bf16.msra.mxu0 0
      %269 = vmatpush.bf16.msra.mxu0 0
      %270 = vmatpush.bf16.msra.mxu0 0
      %271 = vmatpush.bf16.msra.mxu0 0
      %272 = vmatpush.bf16.msra.mxu0 0
      %273 = vmatpush.bf16.msra.mxu0 0
      %274 = vmatpush.bf16.msra.mxu0 %v265
      %275 = vmatmul.bf16.gmra.mxu0 %v262
      %v276 = vpop.f32.mrf.mxu0
      %v277 = vadd.f32 0.0, %v276
      %v278 = vpop.f32.mrf.mxu0
      %279 = vdwg.mxu0
      %280 = vrot.lane.b32.xlu0 %v160, 112
      %v281 = vpop.permute.xlu0 %280
      %282 = vrot.lane.b32.xlu0 %v160, 80
      %v283 = vpop.permute.xlu0 %282
      %v285 = vsel %vm163, %v281, 0
      %v288 = vsel %vm163, %v283, 0
      %290 = vmatpush.bf16.xpose.msra.mxu0 0
      %291 = vmatpush.bf16.xpose.msra.mxu0 0
      %292 = vmatpush.bf16.xpose.msra.mxu0 0
      %293 = vmatpush.bf16.xpose.msra.mxu0 0
      %294 = vmatpush.bf16.xpose.msra.mxu0 0
      %295 = vmatpush.bf16.xpose.msra.mxu0 0
      %296 = vmatpush.bf16.xpose.msra.mxu0 0
      %297 = vmatpush.bf16.xpose.msra.mxu0 %v288
      %298 = vmatmul.bf16.gmra.mxu0 %v285
      %v299 = vpop.f32.mrf.mxu0
      %v300 = vadd.f32 0.0, %v299
      %v301 = vpop.f32.mrf.mxu0
      %302 = vdwg.mxu0
      %v303 = vmul.f32 %v300, 0.35355338
      %v304 = vadd.f32 %v303, %v185
      %v305 = vsel %vm163, %v304, -inf
      %306 = vmax.xlane.f32.xlu0 %v305
      %v307 = vpop.xlane.xlu0 %306
      %v308 = vsub.f32 %v304, %v307
      %v309 = vmul.f32 %v308, 1.442695
      %v310 = vpow.pop %v309
      %v311 = vsel %vm163, %v310, 0.0
      %312 = vadd.xlane.f32.xlu0 %v311
      %v313 = vpop.xlane.xlu0 %312
      %v314 = vrcp.pop %v313
      %v315 = vmul.f32 %v310, %v314
      %v316 = vpack.c.bf16 %v315, %v315
      %317 = vrot.lane.b32.xlu0 %v160, 48
      %v318 = vpop.permute.xlu0 %317
      %v320 = vsel %vm163, %v316, 0
      %v323 = vsel %vm205, %v318, 0
      %325 = vmatpush.bf16.msra.mxu0 0
      %326 = vmatpush.bf16.msra.mxu0 0
      %327 = vmatpush.bf16.msra.mxu0 0
      %328 = vmatpush.bf16.msra.mxu0 0
      %329 = vmatpush.bf16.msra.mxu0 0
      %330 = vmatpush.bf16.msra.mxu0 0
      %331 = vmatpush.bf16.msra.mxu0 0
      %332 = vmatpush.bf16.msra.mxu0 %v323
      %333 = vmatmul.bf16.gmra.mxu0 %v320
      %v334 = vpop.f32.mrf.mxu0
      %v335 = vadd.f32 0.0, %v334
      %v336 = vpop.f32.mrf.mxu0
      %337 = vdwg.mxu0
      %338 = vrot.lane.b32.xlu0 %v160, 104
      %v339 = vpop.permute.xlu0 %338
      %340 = vrot.lane.b32.xlu0 %v160, 72
      %v341 = vpop.permute.xlu0 %340
      %v343 = vsel %vm163, %v339, 0
      %v346 = vsel %vm163, %v341, 0
      %348 = vmatpush.bf16.xpose.msra.mxu0 0
      %349 = vmatpush.bf16.xpose.msra.mxu0 0
      %350 = vmatpush.bf16.xpose.msra.mxu0 0
      %351 = vmatpush.bf16.xpose.msra.mxu0 0
      %352 = vmatpush.bf16.xpose.msra.mxu0 0
      %353 = vmatpush.bf16.xpose.msra.mxu0 0
      %354 = vmatpush.bf16.xpose.msra.mxu0 0
      %355 = vmatpush.bf16.xpose.msra.mxu0 %v346
      %356 = vmatmul.bf16.gmra.mxu0 %v343
      %v357 = vpop.f32.mrf.mxu0
      %v358 = vadd.f32 0.0, %v357
      %v359 = vpop.f32.mrf.mxu0
      %360 = vdwg.mxu0
      %v361 = vmul.f32 %v358, 0.35355338
      %v362 = vadd.f32 %v361, %v185
      %v363 = vsel %vm163, %v362, -inf
      %364 = vmax.xlane.f32.xlu0 %v363
      %v365 = vpop.xlane.xlu0 %364
      %v366 = vsub.f32 %v362, %v365
      %v367 = vmul.f32 %v366, 1.442695
      %v368 = vpow.pop %v367
      %v369 = vsel %vm163, %v368, 0.0
      %370 = vadd.xlane.f32.xlu0 %v369
      %v371 = vpop.xlane.xlu0 %370
      %v372 = vrcp.pop %v371
      %v373 = vmul.f32 %v368, %v372
      %v374 = vpack.c.bf16 %v373, %v373
      %375 = vrot.lane.b32.xlu0 %v160, 40
      %v376 = vpop.permute.xlu0 %375
      %v378 = vsel %vm163, %v374, 0
      %v381 = vsel %vm205, %v376, 0
      %383 = vmatpush.bf16.msra.mxu0 0
      %384 = vmatpush.bf16.msra.mxu0 0
      %385 = vmatpush.bf16.msra.mxu0 0
      %386 = vmatpush.bf16.msra.mxu0 0
      %387 = vmatpush.bf16.msra.mxu0 0
      %388 = vmatpush.bf16.msra.mxu0 0
      %389 = vmatpush.bf16.msra.mxu0 0
      %390 = vmatpush.bf16.msra.mxu0 %v381
      %391 = vmatmul.bf16.gmra.mxu0 %v378
      %v392 = vpop.f32.mrf.mxu0
      %v393 = vadd.f32 0.0, %v392
      %v394 = vpop.f32.mrf.mxu0
      %395 = vdwg.mxu0
      %397 = vrot.lane.b32.xlu0 %v277, 8
      %v398 = vpop.permute.xlu0 %397
      %401 = vrot.lane.b32.xlu0 %v335, 16
      %v402 = vpop.permute.xlu0 %401
      %405 = vrot.lane.b32.xlu0 %v393, 24
      %v406 = vpop.permute.xlu0 %405
      %v408 = vsel %vm163, %v219, %v398
      %vm409 = vcmask 130048
      %v410 = vsel %vm409, %v408, %v402
      %vm411 = vcmask 195584
      %v412 = vsel %vm411, %v410, %v406
      %v413 = vpack.c.bf16 %v412, %v412
      %vm414 = vcmask 257024
      %415 = vst.msk [vmem:[%s152] sm:$0xf] %vm414, %v413
      %p416 = scmp.lt.s32.totalorder %s13, 1
      %s417 = scalar_select %p416, %s13, 1
      %s418 = smul.addr %s417, 4
      %s419 = scalar_lea.vmem %s2, %s418
      // Predicated region
      $region29: #{transformer_forward.35} parent=27 // pred_check
        %p420 = pneg %p83
      $region30: #{transformer_forward.35} parent=27 // pred_check_branch
        %422 = sbr.rel (%p420) target = $region32
      $region31: #{transformer_forward.35} parent=27 // pred_region
        _
      $region32: #{transformer_forward.35} parent=27 // pred_fallthru
        _
    $region28: #{transformer_forward.35} parent=5 // pred_fallthru
      _
    %p423 = scmp.le.s32.totalorder 2, %s8
    // Predicated region
    $region33: #{transformer_forward.35} parent=5 // pred_check
      %p424 = pneg %p423
    $region34: #{transformer_forward.35} parent=5 // pred_check_branch
      %426 = sbr.rel (%p424) target = $region36
    $region35: #{transformer_forward.35} parent=5 // pred_region
      %s427 = ssub.s32 %s8, 2
      // Predicated region
      $region37: #{transformer_forward.35} parent=35 // pred_check
        %p428 = pneg %p89
      $region38: #{transformer_forward.35} parent=35 // pred_check_branch
        %430 = sbr.rel (%p428) target = $region40
      $region39: #{transformer_forward.35} parent=35 // pred_region
        %p431 = scmp.lt.s32.totalorder %s14, 1
        %s432 = scalar_select %p431, %s14, 1
        %s433 = smul.addr %s432, 4
        %s434 = scalar_lea.vmem %s2, %s433
      $region40: #{transformer_forward.35} parent=35 // pred_fallthru
        _
    $region36: #{transformer_forward.35} parent=5 // pred_fallthru
      _
  $region6: #{transformer_forward.35} parent=0 // loop_footer
    %s12 = sadd.s32 1, %s8
  $region7: #{transformer_forward.35} parent=0 // loop_footer_branch
    %7 = sbr.rel target = $region3
  $region8: #{transformer_forward.35} parent=0 // loop_exit
    _

// kernel: transformer_forward.37
$region0: #{transformer_forward.37}
  #allocation0 [shape = 'u32[]', space=smem, size = 0x4, offset = 0x4, fixed_abs, tag = 'smem constant byte address 0x4 - core index']
  #allocation1 [shape = 'u32[72,128]{1,0:T(1,128)}', space=vmem, size = 0x9000, scoped, tag = 'internal scratch']
  %s0 = inlined_call_operand.vmem [shape: bf16[16,32], index: 0, kind: input, shape index: {}]
  %s1 = inlined_call_operand.vmem [shape: f32[1,32], index: 1, kind: input, shape index: {}]
  %s2 = inlined_call_operand.vmem [shape: f32[1,32], index: 2, kind: input, shape index: {}]
  %s3 = inlined_call_operand.vmem [shape: bf16[16,32], index: 3, kind: output, shape index: {}]
  %s4 = sld [smem:[#allocation0]]
  $region22: #{transformer_forward.37} parent=0
    _
  %s6 = ssub.s32 1, %s4
  %s7 = scalar_select 0, %s6, %s4
  // Predicated region
  $region2: #{transformer_forward.37} parent=0 // pred_check
    _
  $region3: #{transformer_forward.37} parent=0 // pred_check_branch
    %9 = sbr.rel (0) target = $region5
  $region4: #{transformer_forward.37} parent=0 // pred_region
    _
  $region5: #{transformer_forward.37} parent=0 // pred_fallthru
    _
  // Predicated region
  $region6: #{transformer_forward.37} parent=0 // pred_check
    _
  $region7: #{transformer_forward.37} parent=0 // pred_check_branch
    %11 = sbr.rel (0) target = $region9
  $region8: #{transformer_forward.37} parent=0 // pred_region
    _
  $region9: #{transformer_forward.37} parent=0 // pred_fallthru
    _
  // Predicated region
  $region10: #{transformer_forward.37} parent=0 // pred_check
    _
  $region11: #{transformer_forward.37} parent=0 // pred_check_branch
    %13 = sbr.rel (0) target = $region13
  $region12: #{transformer_forward.37} parent=0 // pred_region
    _
  $region13: #{transformer_forward.37} parent=0 // pred_fallthru
    _
  %v14 = vld [vmem:[%s0] sm:$0xf]
  %v15 = vld [vmem:[%s0 + $0x4] sm:$0xf]
  %v16 = vunpack.c.l.bf16 %v14
  %v17 = vunpack.c.l.bf16 %v15
  %vm18 = vcmask 261120
  %v19 = vsel %vm18, %v16, 0.0
  %20 = vadd.xlane.f32.xlu0 %v19
  %v21 = vpop.xlane.xlu0 %20
  %v22 = vsel %vm18, %v17, 0.0
  %23 = vadd.xlane.f32.xlu0 %v22
  %v24 = vpop.xlane.xlu0 %23
  %v25 = vrcp.pop 32.0
  %v26 = vmul.f32 32.0, %v25
  %v27 = vsub.f32 1.0, %v26
  %v28 = vmul.f32 %v25, %v27
  %v29 = vadd.f32 %v25, %v28
  %vm30 = vweird.f32 %v25
  %v31 = vsel %vm30, %v25, %v29
  %v32 = vmul.f32 %v21, %v31
  %v33 = vmul.f32 %v24, %v31
  %v34 = vsub.f32 %v16, %v32
  %v35 = vsub.f32 %v17, %v33
  %v36 = vmul.f32 %v34, %v34
  %v37 = vmul.f32 %v35, %v35
  %v38 = vsel %vm18, %v36, 0.0
  %39 = vadd.xlane.f32.xlu0 %v38
  %v40 = vpop.xlane.xlu0 %39
  %v41 = vsel %vm18, %v37, 0.0
  %42 = vadd.xlane.f32.xlu0 %v41
  %v43 = vpop.xlane.xlu0 %42
  %v44 = vrcp.pop 31.0
  %v45 = vmul.f32 31.0, %v44
  %v46 = vsub.f32 1.0, %v45
  %v47 = vmul.f32 %v44, %v46
  %v48 = vadd.f32 %v44, %v47
  %vm49 = vweird.f32 %v44
  %v50 = vsel %vm49, %v44, %v48
  %v51 = vmul.f32 %v40, %v50
  %v52 = vmul.f32 %v43, %v50
  %v53 = vrsqrt.pop %v51
  %v54 = vmul.f32 %v53, %v51
  %v55 = vmul.f32 %v54, %v53
  %v56 = vmul.f32 0.5, %v55
  %v57 = vsub.f32 1.5, %v56
  %v58 = vmul.f32 %v53, %v57
  %v59 = vmul.f32 %v51, %v58
  %vm60 = vcmp.eq.f32.partialorder %v51, inf
  %v61 = vsel %vm60, %v51, %v59
  %vm62 = vcmp.eq.f32.partialorder %v51, 0.0
  %v63 = vand.u32 %v51, 2147483648
  %v64 = vsel %vm62, %v63, %v61
  %v65 = vrsqrt.pop %v52
  %v66 = vmul.f32 %v65, %v52
  %v67 = vmul.f32 %v66, %v65
  %v68 = vmul.f32 0.5, %v67
  %v69 = vsub.f32 1.5, %v68
  %v70 = vmul.f32 %v65, %v69
  %v71 = vmul.f32 %v52, %v70
  %vm72 = vcmp.eq.f32.partialorder %v52, inf
  %v73 = vsel %vm72, %v52, %v71
  %vm74 = vcmp.eq.f32.partialorder %v52, 0.0
  %v75 = vand.u32 %v52, 2147483648
  %v76 = vsel %vm74, %v75, %v73
  %v77 = vadd.f32 %v64, 1e-06
  %v78 = vadd.f32 %v76, 1e-06
  %v79 = vrcp.pop %v77
  %v80 = vrcp.pop %v78
  %v81 = vld [vmem:[%s1] sm:$0x1]
  %v83 = vperm.slane %v81, 0
  %v85 = vmul.f32 %v83, %v34
  %v86 = vmul.f32 %v83, %v35
  %v87 = vmul.f32 %v85, %v79
  %v88 = vmul.f32 %v86, %v80
  %v89 = vld [vmem:[%s2] sm:$0x1]
  %v91 = vperm.slane %v89, 0
  %v93 = vadd.f32 %v87, %v91
  %v94 = vadd.f32 %v88, %v91
  %v95 = vpack.c.bf16 %v93, %v93
  %v96 = vpack.c.bf16 %v94, %v94
  %vm97 = vcmask 257024
  %98 = vst.msk [vmem:[%s3] sm:$0xf] %vm97, %v95
  %99 = vst.msk [vmem:[%s3 + $0x4] sm:$0xf] %vm97, %v96
  // Predicated region
  $region14: #{transformer_forward.37} parent=0 // pred_check
    _
  $region15: #{transformer_forward.37} parent=0 // pred_check_branch
    %101 = sbr.rel (0) target = $region17
  $region16: #{transformer_forward.37} parent=0 // pred_region
    _
  $region17: #{transformer_forward.37} parent=0 // pred_fallthru
    _
  // Predicated region
  $region18: #{transformer_forward.37} parent=0 // pred_check
    _
  $region19: #{transformer_forward.37} parent=0 // pred_check_branch
    %103 = sbr.rel (0) target = $region21
  $region20: #{transformer_forward.37} parent=0 // pred_region
    _
  $region21: #{transformer_forward.37} parent=0 // pred_fallthru
    _

// kernel: transformer_forward.38
$region0: #{transformer_forward.38}
  #allocation0 [shape = 'u32[]', space=smem, size = 0x4, offset = 0x4, fixed_abs, tag = 'smem constant byte address 0x4 - core index']
  #allocation1 [shape = 'u32[72,128]{1,0:T(1,128)}', space=vmem, size = 0x9000, scoped, tag = 'internal scratch']
  #allocation2 [shape = 'f32[16,1024]{1,0:T(8,128)}', space=vmem, size = 0x10000, scoped, tag = 'scratch operand']
  %s0 = inlined_call_operand.vmem [shape: bf16[16,32], index: 0, kind: input, shape index: {}]
  %s1 = inlined_call_operand.vmem [shape: bf16[32,2048], index: 1, kind: input, shape index: {}]
  %s2 = inlined_call_operand.vmem [shape: f32[1,2048], index: 2, kind: input, shape index: {}]
  %s3 = inlined_call_operand.vmem [shape: bf16[16,2048], index: 3, kind: output, shape index: {}]
  %s4 = sld [smem:[#allocation0]]
  $region95: #{transformer_forward.38} parent=0
    _
  %s6 = ssub.s32 1, %s4
  %s7 = scalar_select 0, %s6, %s4
  $region1: #{transformer_forward.38} parent=0
    #allocation3 [shape = 'u8[131072]{0}', space=vmem, size = 0x20000, scoped, tag = 'input window, operand 1']
    #allocation4 [shape = 'u8[65536]{0}', space=vmem, size = 0x10000, scoped, tag = 'output window, operand 0']
    loop: start=0, step=1, limit=4
    $region2: #{transformer_forward.38} parent=1 // loop_pre_header
      _
    $region3: #{transformer_forward.38} parent=1 // loop_header
      %s9 = sphi 0, %s13
      %p10 = scmp.ge.s32.totalorder %s9, 4
      %s16 = sphi 0, %s35
      %s17 = sphi 0, %s31
      %s18 = sphi 0, %s27
      %s19 = sphi 0, %s16
      %s20 = sphi 0, %s17
      %s21 = sphi 0, %s18
      %s22 = sphi 0, %s19
      %s23 = sphi 0, %s20
      %s24 = sphi 0, %s21
      %s40 = sphi 0, %s42
      %s43 = sphi 0, %s40
      %s44 = sphi 0, %s43
      %s60 = sphi 0, %s44
      %s68 = sphi 0, %s70
      %s71 = sphi 0, %s68
      %s72 = sphi 0, %s71
      %s88 = sphi 0, %s72
      %s94 = sphi 0, %s96
      %s97 = sphi 0, %s94
      %s98 = sphi 0, %s97
      %s114 = sphi 0, %s98
      %s122 = sphi 0, %s124
      %s125 = sphi 0, %s122
      %s126 = sphi 0, %s125
      %s142 = sphi 0, %s126
    $region4: #{transformer_forward.38} parent=1 // loop_header_branch
      %12 = sbr.rel (%p10) target = $region8
    $region5: #{transformer_forward.38} parent=1 // loop_body
      %s14 = ssub.s32 %s9, 1
      %s15 = ssub.s32 %s9, 2
      %s25 = sadd.s32 1, %s18
      %p26 = scmp.ge.s32.totalorder %s25, 1
      %s27 = scalar_select %p26, 0, %s25
      %s28 = sadd.s32 1, %s17
      %s29 = scalar_select %p26, %s28, %s17
      %p30 = scmp.ge.s32.totalorder %s29, 2
      %s31 = scalar_select %p30, 0, %s29
      %s32 = sadd.s32 1, %s16
      %s33 = scalar_select %p30, %s32, %s16
      %p34 = scmp.ge.s32.totalorder %s33, 1
      %s35 = scalar_select %p34, 0, %s33
      %s36 = ssub.s32 %s16, %s35
      %s37 = ssub.s32 %s18, %s27
      %s38 = sor.u32 %s36, %s37
      %p39 = scmp.eq.s32.totalorder %s38, 0
      %s41 = sadd.s32 %s40, 1
      %s42 = scalar_select %p39, %s40, %s41
      %p45 = pneg %p39
      %p46 = scmp.eq.s32.totalorder %s9, 1
      %p47 = por %p45, %p46
      %p48 = scmp.ne.s32.totalorder %s40, %s43
      %p49 = scmp.eq.s32.totalorder %s9, 0
      %p50 = por %p48, %p49
      %p51 = scmp.ne.s32.totalorder %s40, %s43
      %p52 = scmp.eq.s32.totalorder %s14, 1
      %p53 = por %p51, %p52
      %p54 = scmp.ne.s32.totalorder %s43, %s44
      %p55 = scmp.eq.s32.totalorder %s14, 0
      %p56 = por %p54, %p55
      %p57 = scmp.ne.s32.totalorder %s43, %s44
      %p58 = scmp.eq.s32.totalorder %s15, 1
      %p59 = por %p57, %p58
      %p61 = scmp.ne.s32.totalorder %s44, %s60
      %p62 = scmp.eq.s32.totalorder %s15, 0
      %p63 = por %p61, %p62
      %s64 = ssub.s32 %s18, %s27
      %s65 = ssub.s32 %s17, %s31
      %s66 = sor.u32 %s64, %s65
      %p67 = scmp.eq.s32.totalorder %s66, 0
      %s69 = sadd.s32 %s68, 1
      %s70 = scalar_select %p67, %s68, %s69
      %p73 = pneg %p67
      %p74 = scmp.eq.s32.totalorder %s9, 1
      %p75 = por %p73, %p74
      %p76 = scmp.ne.s32.totalorder %s68, %s71
      %p77 = scmp.eq.s32.totalorder %s9, 0
      %p78 = por %p76, %p77
      %p79 = scmp.ne.s32.totalorder %s68, %s71
      %p80 = scmp.eq.s32.totalorder %s14, 1
      %p81 = por %p79, %p80
      %p82 = scmp.ne.s32.totalorder %s71, %s72
      %p83 = scmp.eq.s32.totalorder %s14, 0
      %p84 = por %p82, %p83
      %p85 = scmp.ne.s32.totalorder %s71, %s72
      %p86 = scmp.eq.s32.totalorder %s15, 1
      %p87 = por %p85, %p86
      %p89 = scmp.ne.s32.totalorder %s72, %s88
      %p90 = scmp.eq.s32.totalorder %s15, 0
      %p91 = por %p89, %p90
      %s92 = ssub.s32 %s17, %s31
      %p93 = scmp.eq.s32.totalorder %s92, 0
      %s95 = sadd.s32 %s94, 1
      %s96 = scalar_select %p93, %s94, %s95
      %p99 = pneg %p93
      %p100 = scmp.eq.s32.totalorder %s9, 1
      %p101 = por %p99, %p100
      %p102 = scmp.ne.s32.totalorder %s94, %s97
      %p103 = scmp.eq.s32.totalorder %s9, 0
      %p104 = por %p102, %p103
      %p105 = scmp.ne.s32.totalorder %s94, %s97
      %p106 = scmp.eq.s32.totalorder %s14, 1
      %p107 = por %p105, %p106
      %p108 = scmp.ne.s32.totalorder %s97, %s98
      %p109 = scmp.eq.s32.totalorder %s14, 0
      %p110 = por %p108, %p109
      %p111 = scmp.ne.s32.totalorder %s97, %s98
      %p112 = scmp.eq.s32.totalorder %s15, 1
      %p113 = por %p111, %p112
      %p115 = scmp.ne.s32.totalorder %s98, %s114
      %p116 = scmp.eq.s32.totalorder %s15, 0
      %p117 = por %p115, %p116
      %s118 = ssub.s32 %s16, %s35
      %s119 = ssub.s32 %s17, %s31
      %s120 = sor.u32 %s118, %s119
      %p121 = scmp.eq.s32.totalorder %s120, 0
      %s123 = sadd.s32 %s122, 1
      %s124 = scalar_select %p121, %s122, %s123
      %p127 = pneg %p121
      %p128 = scmp.eq.s32.totalorder %s9, 1
      %p129 = por %p127, %p128
      %p130 = scmp.ne.s32.totalorder %s122, %s125
      %p131 = scmp.eq.s32.totalorder %s9, 0
      %p132 = por %p130, %p131
      %p133 = scmp.ne.s32.totalorder %s122, %s125
      %p134 = scmp.eq.s32.totalorder %s14, 1
      %p135 = por %p133, %p134
      %p136 = scmp.ne.s32.totalorder %s125, %s126
      %p137 = scmp.eq.s32.totalorder %s14, 0
      %p138 = por %p136, %p137
      %p139 = scmp.ne.s32.totalorder %s125, %s126
      %p140 = scmp.eq.s32.totalorder %s15, 1
      %p141 = por %p139, %p140
      %p143 = scmp.ne.s32.totalorder %s126, %s142
      %p144 = scmp.eq.s32.totalorder %s15, 0
      %p145 = por %p143, %p144
      %p146 = scmp.le.s32.totalorder 1, %s9
      %p147 = scmp.lt.s32.totalorder %s9, 3
      %p148 = pnand %p146, %p147
      %p149 = pneg %p148
      // Predicated region
      $region9: #{transformer_forward.38} parent=5 // pred_check
        _
      $region10: #{transformer_forward.38} parent=5 // pred_check_branch
        %151 = sbr.rel (%p148) target = $region12
      $region11: #{transformer_forward.38} parent=5 // pred_region
        %s152 = ssub.s32 %s9, 1
        // Predicated region
        $region13: #{transformer_forward.38} parent=11 // pred_check
          %p153 = pneg %p56
        $region14: #{transformer_forward.38} parent=11 // pred_check_branch
          %155 = sbr.rel (%p153) target = $region16
        $region15: #{transformer_forward.38} parent=11 // pred_region
          %s156 = smul.u32 2, %s19
          %p157 = scmp.lt.s32.totalorder %s156, 1
          %s158 = scalar_select %p157, %s156, 1
          %p159 = scmp.lt.s32.totalorder %s21, 0
          %s160 = scalar_select %p159, %s21, 0
          %s161 = sadd.s32 %s160, %s158
          %s162 = smul.addr %s161, 4
          %s163 = scalar_lea.vmem %s0, %s162
          %s164 = smul.u32 2, %s19
        $region16: #{transformer_forward.38} parent=11 // pred_fallthru
          _
      $region12: #{transformer_forward.38} parent=5 // pred_fallthru
        _
      %p165 = scmp.lt.s32.totalorder %s9, 2
      // Predicated region
      $region17: #{transformer_forward.38} parent=5 // pred_check
        %p166 = pneg %p165
      $region18: #{transformer_forward.38} parent=5 // pred_check_branch
        %168 = sbr.rel (%p166) target = $region20
      $region19: #{transformer_forward.38} parent=5 // pred_region
        // Predicated region
        $region21: #{transformer_forward.38} parent=19 // pred_check
          %p169 = pneg %p78
        $region22: #{transformer_forward.38} parent=19 // pred_check_branch
          %171 = sbr.rel (%p169) target = $region24
        $region23: #{transformer_forward.38} parent=19 // pred_region
          %s172 = sand.u32 %s68, 1
          %s173 = sand.u32 %s68, 1
          %s174 = smul.addr %s173, 128
          %s175 = scalar_lea.vmem [#allocation3], %s174
          %s176 = smul.u32 4, %s18
          %s177 = smul.u32 8, %s17
          %s178 = smul.addr %s176, 16
          %s179 = sadd.s32 %s177, %s178
          %s180 = smul.addr %s179, 4
          %s181 = scalar_lea.vmem %s1, %s180
          // Predicated region
          $region25: #{transformer_forward.38} parent=23 // pred_check
            _
          $region26: #{transformer_forward.38} parent=23 // pred_check_branch
            %183 = sbr.rel (0) target = $region28
          $region27: #{transformer_forward.38} parent=23 // pred_region
            // Predicated region
            $region29: #{transformer_forward.38} parent=27 // pred_check
              _
            $region30: #{transformer_forward.38} parent=27 // pred_check_branch
              %185 = sbr.rel (0) target = $region32
            $region31: #{transformer_forward.38} parent=27 // pred_region
              loop: start=0, step=1, limit=1
              $region33: #{transformer_forward.38} parent=31 // loop_pre_header
                _
              $region34: #{transformer_forward.38} parent=31 // loop_header
                %s187 = sphi 0, %s191
                %p188 = scmp.ge.s32.totalorder %s187, 1
                %s192 = sphi %s181, %s181
                %s193 = sphi %s175, %s175
              $region35: #{transformer_forward.38} parent=31 // loop_header_branch
                %190 = sbr.rel (%p188) target = $region39
              $region36: #{transformer_forward.38} parent=31 // loop_body
                %v194 = vld [vmem:[%s192] sm:$0xff]
                %195 = vst [vmem:[%s193] sm:$0xff] %v194
                %v196 = vld [vmem:[%s192 + $0x8] sm:$0xff]
                %197 = vst [vmem:[%s193 + $0x8] sm:$0xff] %v196
                %v198 = vld [vmem:[%s192 + $0x10] sm:$0xff]
                %199 = vst [vmem:[%s193 + $0x10] sm:$0xff] %v198
                %v200 = vld [vmem:[%s192 + $0x18] sm:$0xff]
                %201 = vst [vmem:[%s193 + $0x18] sm:$0xff] %v200
                %v202 = vld [vmem:[%s192 + $0x40] sm:$0xff]
                %203 = vst [vmem:[%s193 + $0x20] sm:$0xff] %v202
                %v204 = vld [vmem:[%s192 + $0x48] sm:$0xff]
                %205 = vst [vmem:[%s193 + $0x28] sm:$0xff] %v204
                %v206 = vld [vmem:[%s192 + $0x50] sm:$0xff]
                %207 = vst [vmem:[%s193 + $0x30] sm:$0xff] %v206
                %v208 = vld [vmem:[%s192 + $0x58] sm:$0xff]
                %209 = vst [vmem:[%s193 + $0x38] sm:$0xff] %v208
                %v210 = vld [vmem:[%s192 + $0x80] sm:$0xff]
                %211 = vst [vmem:[%s193 + $0x40] sm:$0xff] %v210
                %v212 = vld [vmem:[%s192 + $0x88] sm:$0xff]
                %213 = vst [vmem:[%s193 + $0x48] sm:$0xff] %v212
                %v214 = vld [vmem:[%s192 + $0x90] sm:$0xff]
                %215 = vst [vmem:[%s193 + $0x50] sm:$0xff] %v214
                %v216 = vld [vmem:[%s192 + $0x98] sm:$0xff]
                %217 = vst [vmem:[%s193 + $0x58] sm:$0xff] %v216
                %v218 = vld [vmem:[%s192 + $0xc0] sm:$0xff]
                %219 = vst [vmem:[%s193 + $0x60] sm:$0xff] %v218
                %v220 = vld [vmem:[%s192 + $0xc8] sm:$0xff]
                %221 = vst [vmem:[%s193 + $0x68] sm:$0xff] %v220
                %v222 = vld [vmem:[%s192 + $0xd0] sm:$0xff]
                %223 = vst [vmem:[%s193 + $0x70] sm:$0xff] %v222
                %v224 = vld [vmem:[%s192 + $0xd8] sm:$0xff]
                %225 = vst [vmem:[%s193 + $0x78] sm:$0xff] %v224
              $region37: #{transformer_forward.38} parent=31 // loop_footer
                %s191 = sadd.s32 1, %s187
              $region38: #{transformer_forward.38} parent=31 // loop_footer_branch
                %186 = sbr.rel target = $region34
              $region39: #{transformer_forward.38} parent=31 // loop_exit
                _
            $region32: #{transformer_forward.38} parent=27 // pred_fallthru
              _
            // Predicated region
            $region40: #{transformer_forward.38} parent=27 // pred_check
              _
            $region41: #{transformer_forward.38} parent=27 // pred_check_branch
              %227 = sbr.rel target = $region43
            $region42: #{transformer_forward.38} parent=27 // pred_region
              _
            $region43: #{transformer_forward.38} parent=27 // pred_fallthru
              _
          $region28: #{transformer_forward.38} parent=23 // pred_fallthru
            _
          %228 = vnop
        $region24: #{transformer_forward.38} parent=19 // pred_fallthru
          _
        // Predicated region
        $region44: #{transformer_forward.38} parent=19 // pred_check
          %p229 = pneg %p104
        $region45: #{transformer_forward.38} parent=19 // pred_check_branch
          %231 = sbr.rel (%p229) target = $region47
        $region46: #{transformer_forward.38} parent=19 // pred_region
          %s232 = smul.u32 8, %s17
          %p233 = scmp.lt.s32.totalorder %s232, 15
          %s234 = scalar_select %p233, %s232, 15
          %s235 = scalar_lea.vmem %s2, %s234
          %s236 = smul.u32 8, %s17
        $region47: #{transformer_forward.38} parent=19 // pred_fallthru
          _
      $region20: #{transformer_forward.38} parent=5 // pred_fallthru
        _
      %p237 = scmp.le.s32.totalorder 1, %s9
      %p238 = scmp.lt.s32.totalorder %s9, 3
      %p239 = pnand %p237, %p238
      %p240 = pneg %p239
      // Predicated region
      $region48: #{transformer_forward.38} parent=5 // pred_check
        _
      $region49: #{transformer_forward.38} parent=5 // pred_check_branch
        %242 = sbr.rel (%p239) target = $region51
      $region50: #{transformer_forward.38} parent=5 // pred_region
        %s243 = ssub.s32 %s9, 1
        %s244 = sand.u32 %s71, 1
        %s245 = sand.u32 %s71, 1
        %s246 = smul.addr %s245, 128
        %s247 = scalar_lea.vmem [#allocation3], %s246
        // Predicated region
        $region52: #{transformer_forward.38} parent=50 // pred_check
          %p248 = pneg %p84
        $region53: #{transformer_forward.38} parent=50 // pred_check_branch
          %250 = sbr.rel (%p248) target = $region55
        $region54: #{transformer_forward.38} parent=50 // pred_region
          _
        $region55: #{transformer_forward.38} parent=50 // pred_fallthru
          _
        %s251 = smul.u32 2, %s19
        %p252 = scmp.lt.s32.totalorder %s251, 1
        %s253 = scalar_select %p252, %s251, 1
        %p254 = scmp.lt.s32.totalorder %s21, 0
        %s255 = scalar_select %p254, %s21, 0
        %s256 = sadd.s32 %s255, %s253
        %s257 = smul.addr %s256, 4
        %s258 = scalar_lea.vmem %s0, %s257
        %p259 = pneg %p56
        %p260 = pneg %p53
        %s261 = sand.u32 %s71, 1
        %s262 = sand.u32 %s71, 1
        %s263 = smul.addr %s262, 128
        %s264 = scalar_lea.vmem [#allocation3], %s263
        %p265 = pneg %p84
        %p266 = pneg %p81
        %s267 = smul.u32 8, %s20
        %p268 = scmp.lt.s32.totalorder %s267, 15
        %s269 = scalar_select %p268, %s267, 15
        %s270 = scalar_lea.vmem %s2, %s269
        %p271 = pneg %p110
        %p272 = pneg %p107
        %p273 = pneg %p138
        %p274 = pneg %p135
        %s275 = sand.u32 %s125, 1
        %s276 = sand.u32 %s125, 1
        %s277 = smul.addr %s276, 64
        %s278 = scalar_lea.vmem [#allocation4], %s277
        %s279 = smul.u32 2, %s19
        %p280 = scmp.lt.s32.totalorder %s279, 1
        %s281 = scalar_select %p280, %s279, 1
        %p282 = scmp.lt.s32.totalorder %s21, 0
        %s283 = scalar_select %p282, %s21, 0
        %s284 = sadd.s32 %s283, %s281
        %s285 = smul.addr %s284, 4
        %s286 = scalar_lea.vmem %s0, %s285
        %s287 = smul.u32 2, %s19
        %s288 = smul.u32 4, %s21
        %s289 = smul.u32 8, %s20
        %s290 = smul.u32 8, %s20
        %p291 = scmp.lt.s32.totalorder %s290, 15
        %s292 = scalar_select %p291, %s290, 15
        %s293 = scalar_lea.vmem %s2, %s292
        %s294 = smul.u32 8, %s20
        %s295 = smul.u32 2, %s19
        %s296 = smul.u32 8, %s20
        %p298 = scmp.eq.s32.totalorder %s21, 0
        // Predicated region
        $region56: #{transformer_forward.38} parent=50 // pred_check
          %p299 = pneg %p298
        $region57: #{transformer_forward.38} parent=50 // pred_check_branch
          %301 = sbr.rel (%p299) target = $region59
        $region58: #{transformer_forward.38} parent=50 // pred_region
          %302 = vst [vmem:[#allocation2] sm:$0xff] 0.0
          %303 = vst [vmem:[#allocation2 + $0x8] sm:$0xff] 0.0
          %304 = vst [vmem:[#allocation2 + $0x10] sm:$0xff] 0.0
          %305 = vst [vmem:[#allocation2 + $0x18] sm:$0xff] 0.0
          %306 = vst [vmem:[#allocation2 + $0x20] sm:$0xff] 0.0
          %307 = vst [vmem:[#allocation2 + $0x28] sm:$0xff] 0.0
          %308 = vst [vmem:[#allocation2 + $0x30] sm:$0xff] 0.0
          %309 = vst [vmem:[#allocation2 + $0x38] sm:$0xff] 0.0
          %310 = vst [vmem:[#allocation2 + $0x40] sm:$0xff] 0.0
          %311 = vst [vmem:[#allocation2 + $0x48] sm:$0xff] 0.0
          %312 = vst [vmem:[#allocation2 + $0x50] sm:$0xff] 0.0
          %313 = vst [vmem:[#allocation2 + $0x58] sm:$0xff] 0.0
          %314 = vst [vmem:[#allocation2 + $0x60] sm:$0xff] 0.0
          %315 = vst [vmem:[#allocation2 + $0x68] sm:$0xff] 0.0
          %316 = vst [vmem:[#allocation2 + $0x70] sm:$0xff] 0.0
          %317 = vst [vmem:[#allocation2 + $0x78] sm:$0xff] 0.0
        $region59: #{transformer_forward.38} parent=50 // pred_fallthru
          _
        %v318 = vld [vmem:[%s286] sm:$0xf]
        %v319 = vld [vmem:[%s286 + $0x4] sm:$0xf]
        %v320 = vld [vmem:[#allocation2] sm:$0xff]
        %v321 = vld [vmem:[#allocation2 + $0x8] sm:$0xff]
        %v322 = vld [vmem:[#allocation2 + $0x10] sm:$0xff]
        %v323 = vld [vmem:[#allocation2 + $0x18] sm:$0xff]
        %v324 = vld [vmem:[#allocation2 + $0x20] sm:$0xff]
        %v325 = vld [vmem:[#allocation2 + $0x28] sm:$0xff]
        %v326 = vld [vmem:[#allocation2 + $0x30] sm:$0xff]
        %v327 = vld [vmem:[#allocation2 + $0x38] sm:$0xff]
        %v328 = vld [vmem:[#allocation2 + $0x40] sm:$0xff]
        %v329 = vld [vmem:[#allocation2 + $0x48] sm:$0xff]
        %v330 = vld [vmem:[#allocation2 + $0x50] sm:$0xff]
        %v331 = vld [vmem:[#allocation2 + $0x58] sm:$0xff]
        %v332 = vld [vmem:[#allocation2 + $0x60] sm:$0xff]
        %v333 = vld [vmem:[#allocation2 + $0x68] sm:$0xff]
        %v334 = vld [vmem:[#allocation2 + $0x70] sm:$0xff]
        %v335 = vld [vmem:[#allocation2 + $0x78] sm:$0xff]
        %v336 = vld [vmem:[%s247] sm:$0xff]
        %v337 = vld [vmem:[%s247 + $0x8] sm:$0xff]
        %v338 = vld [vmem:[%s247 + $0x10] sm:$0xff]
        %v339 = vld [vmem:[%s247 + $0x18] sm:$0xff]
        %v340 = vld [vmem:[%s247 + $0x20] sm:$0xff]
        %v341 = vld [vmem:[%s247 + $0x28] sm:$0xff]
        %v342 = vld [vmem:[%s247 + $0x30] sm:$0xff]
        %v343 = vld [vmem:[%s247 + $0x38] sm:$0xff]
        %v344 = vld [vmem:[%s247 + $0x40] sm:$0xff]
        %v345 = vld [vmem:[%s247 + $0x48] sm:$0xff]
        %v346 = vld [vmem:[%s247 + $0x50] sm:$0xff]
        %v347 = vld [vmem:[%s247 + $0x58] sm:$0xff]
        %v348 = vld [vmem:[%s247 + $0x60] sm:$0xff]
        %v349 = vld [vmem:[%s247 + $0x68] sm:$0xff]
        %v350 = vld [vmem:[%s247 + $0x70] sm:$0xff]
        %v351 = vld [vmem:[%s247 + $0x78] sm:$0xff]
        %v354 = vunpack.c.l.b16 %v318
        %v355 = vunpack.c.l.b16 %v319
        %v356 = vpack.c.b16 %v355, %v354
        %v373 = vunpack.c.l.b16 %v336
        %v374 = vunpack.c.h.b16 %v336
        %v375 = vunpack.c.l.b16 %v337
        %v376 = vunpack.c.h.b16 %v337
        %v377 = vunpack.c.l.b16 %v338
        %v378 = vunpack.c.h.b16 %v338
        %v379 = vunpack.c.l.b16 %v339
        %v380 = vunpack.c.h.b16 %v339
        %v381 = vunpack.c.l.b16 %v340
        %v382 = vunpack.c.h.b16 %v340
        %v383 = vunpack.c.l.b16 %v341
        %v384 = vunpack.c.h.b16 %v341
        %v385 = vunpack.c.l.b16 %v342
        %v386 = vunpack.c.h.b16 %v342
        %v387 = vunpack.c.l.b16 %v343
        %v388 = vunpack.c.h.b16 %v343
        %v389 = vunpack.c.l.b16 %v344
        %v390 = vunpack.c.h.b16 %v344
        %v391 = vunpack.c.l.b16 %v345
        %v392 = vunpack.c.h.b16 %v345
        %v393 = vunpack.c.l.b16 %v346
        %v394 = vunpack.c.h.b16 %v346
        %v395 = vunpack.c.l.b16 %v347
        %v396 = vunpack.c.h.b16 %v347
        %v397 = vunpack.c.l.b16 %v348
        %v398 = vunpack.c.h.b16 %v348
        %v399 = vunpack.c.l.b16 %v349
        %v400 = vunpack.c.h.b16 %v349
        %v401 = vunpack.c.l.b16 %v350
        %v402 = vunpack.c.h.b16 %v350
        %v403 = vunpack.c.l.b16 %v351
        %v404 = vunpack.c.h.b16 %v351
        %v405 = vpack.c.b16 %v381, %v373
        %v406 = vpack.c.b16 %v382, %v374
        %v407 = vpack.c.b16 %v383, %v375
        %v408 = vpack.c.b16 %v384, %v376
        %v409 = vpack.c.b16 %v385, %v377
        %v410 = vpack.c.b16 %v386, %v378
        %v411 = vpack.c.b16 %v387, %v379
        %v412 = vpack.c.b16 %v388, %v380
        %v413 = vpack.c.b16 %v397, %v389
        %v414 = vpack.c.b16 %v398, %v390
        %v415 = vpack.c.b16 %v399, %v391
        %v416 = vpack.c.b16 %v400, %v392
        %v417 = vpack.c.b16 %v401, %v393
        %v418 = vpack.c.b16 %v402, %v394
        %v419 = vpack.c.b16 %v403, %v395
        %v420 = vpack.c.b16 %v404, %v396
        %vm437 = vcmask 261120
        %v439 = vsel %vm437, %v356, 0
        %441 = vmatpush.bf16.msra.mxu0 0
        %442 = vmatpush.bf16.msra.mxu0 0
        %443 = vmatpush.bf16.msra.mxu0 0
        %444 = vmatpush.bf16.msra.mxu0 0
        %445 = vmatpush.bf16.msra.mxu0 0
        %446 = vmatpush.bf16.msra.mxu0 0
        %447 = vmatpush.bf16.msra.mxu0 %v413
        %448 = vmatpush.bf16.msra.mxu0 %v405
        %449 = vmatmul.bf16.gmra.mxu0 %v439
        %v450 = vpop.f32.mrf.mxu0
        %v451 = vadd.f32 0.0, %v450
        %v452 = vpop.f32.mrf.mxu0
        %v453 = vadd.f32 0.0, %v452
        %454 = vdwg.mxu0
        %455 = vmatpush.bf16.msra.mxu0 0
        %456 = vmatpush.bf16.msra.mxu0 0
        %457 = vmatpush.bf16.msra.mxu0 0
        %458 = vmatpush.bf16.msra.mxu0 0
        %459 = vmatpush.bf16.msra.mxu0 0
        %460 = vmatpush.bf16.msra.mxu0 0
        %461 = vmatpush.bf16.msra.mxu0 %v414
        %462 = vmatpush.bf16.msra.mxu0 %v406
        %463 = vmatmul.bf16.gmra.mxu0 %v439
        %v464 = vpop.f32.mrf.mxu0
        %v465 = vadd.f32 0.0, %v464
        %v466 = vpop.f32.mrf.mxu0
        %v467 = vadd.f32 0.0, %v466
        %468 = vdwg.mxu0
        %469 = vmatpush.bf16.msra.mxu0 0
        %470 = vmatpush.bf16.msra.mxu0 0
        %471 = vmatpush.bf16.msra.mxu0 0
        %472 = vmatpush.bf16.msra.mxu0 0
        %473 = vmatpush.bf16.msra.mxu0 0
        %474 = vmatpush.bf16.msra.mxu0 0
        %475 = vmatpush.bf16.msra.mxu0 %v415
        %476 = vmatpush.bf16.msra.mxu0 %v407
        %477 = vmatmul.bf16.gmra.mxu0 %v439
        %v478 = vpop.f32.mrf.mxu0
        %v479 = vadd.f32 0.0, %v478
        %v480 = vpop.f32.mrf.mxu0
        %v481 = vadd.f32 0.0, %v480
        %482 = vdwg.mxu0
        %483 = vmatpush.bf16.msra.mxu0 0
        %484 = vmatpush.bf16.msra.mxu0 0
        %485 = vmatpush.bf16.msra.mxu0 0
        %486 = vmatpush.bf16.msra.mxu0 0
        %487 = vmatpush.bf16.msra.mxu0 0
        %488 = vmatpush.bf16.msra.mxu0 0
        %489 = vmatpush.bf16.msra.mxu0 %v416
        %490 = vmatpush.bf16.msra.mxu0 %v408
        %491 = vmatmul.bf16.gmra.mxu0 %v439
        %v492 = vpop.f32.mrf.mxu0
        %v493 = vadd.f32 0.0, %v492
        %v494 = vpop.f32.mrf.mxu0
        %v495 = vadd.f32 0.0, %v494
        %496 = vdwg.mxu0
        %497 = vmatpush.bf16.msra.mxu0 0
        %498 = vmatpush.bf16.msra.mxu0 0
        %499 = vmatpush.bf16.msra.mxu0 0
        %500 = vmatpush.bf16.msra.mxu0 0
        %501 = vmatpush.bf16.msra.mxu0 0
        %502 = vmatpush.bf16.msra.mxu0 0
        %503 = vmatpush.bf16.msra.mxu0 %v417
        %504 = vmatpush.bf16.msra.mxu0 %v409
        %505 = vmatmul.bf16.gmra.mxu0 %v439
        %v506 = vpop.f32.mrf.mxu0
        %v507 = vadd.f32 0.0, %v506
        %v508 = vpop.f32.mrf.mxu0
        %v509 = vadd.f32 0.0, %v508
        %510 = vdwg.mxu0
        %511 = vmatpush.bf16.msra.mxu0 0
        %512 = vmatpush.bf16.msra.mxu0 0
        %513 = vmatpush.bf16.msra.mxu0 0
        %514 = vmatpush.bf16.msra.mxu0 0
        %515 = vmatpush.bf16.msra.mxu0 0
        %516 = vmatpush.bf16.msra.mxu0 0
        %517 = vmatpush.bf16.msra.mxu0 %v418
        %518 = vmatpush.bf16.msra.mxu0 %v410
        %519 = vmatmul.bf16.gmra.mxu0 %v439
        %v520 = vpop.f32.mrf.mxu0
        %v521 = vadd.f32 0.0, %v520
        %v522 = vpop.f32.mrf.mxu0
        %v523 = vadd.f32 0.0, %v522
        %524 = vdwg.mxu0
        %525 = vmatpush.bf16.msra.mxu0 0
        %526 = vmatpush.bf16.msra.mxu0 0
        %527 = vmatpush.bf16.msra.mxu0 0
        %528 = vmatpush.bf16.msra.mxu0 0
        %529 = vmatpush.bf16.msra.mxu0 0
        %530 = vmatpush.bf16.msra.mxu0 0
        %531 = vmatpush.bf16.msra.mxu0 %v419
        %532 = vmatpush.bf16.msra.mxu0 %v411
        %533 = vmatmul.bf16.gmra.mxu0 %v439
        %v534 = vpop.f32.mrf.mxu0
        %v535 = vadd.f32 0.0, %v534
        %v536 = vpop.f32.mrf.mxu0
        %v537 = vadd.f32 0.0, %v536
        %538 = vdwg.mxu0
        %539 = vmatpush.bf16.msra.mxu0 0
        %540 = vmatpush.bf16.msra.mxu0 0
        %541 = vmatpush.bf16.msra.mxu0 0
        %542 = vmatpush.bf16.msra.mxu0 0
        %543 = vmatpush.bf16.msra.mxu0 0
        %544 = vmatpush.bf16.msra.mxu0 0
        %545 = vmatpush.bf16.msra.mxu0 %v420
        %546 = vmatpush.bf16.msra.mxu0 %v412
        %547 = vmatmul.bf16.gmra.mxu0 %v439
        %v548 = vpop.f32.mrf.mxu0
        %v549 = vadd.f32 0.0, %v548
        %v550 = vpop.f32.mrf.mxu0
        %v551 = vadd.f32 0.0, %v550
        %552 = vdwg.mxu0
        %v553 = vadd.f32 %v320, %v451
        %v554 = vadd.f32 %v321, %v465
        %v555 = vadd.f32 %v322, %v479
        %v556 = vadd.f32 %v323, %v493
        %v557 = vadd.f32 %v324, %v507
        %v558 = vadd.f32 %v325, %v521
        %v559 = vadd.f32 %v326, %v535
        %v560 = vadd.f32 %v327, %v549
        %v561 = vadd.f32 %v328, %v453
        %v562 = vadd.f32 %v329, %v467
        %v563 = vadd.f32 %v330, %v481
        %v564 = vadd.f32 %v331, %v495
        %v565 = vadd.f32 %v332, %v509
        %v566 = vadd.f32 %v333, %v523
        %v567 = vadd.f32 %v334, %v537
        %v568 = vadd.f32 %v335, %v551
        %569 = vst [vmem:[#allocation2] sm:$0xff] %v553
        %570 = vst [vmem:[#allocation2 + $0x8] sm:$0xff] %v554
        %571 = vst [vmem:[#allocation2 + $0x10] sm:$0xff] %v555
        %572 = vst [vmem:[#allocation2 + $0x18] sm:$0xff] %v556
        %573 = vst [vmem:[#allocation2 + $0x20] sm:$0xff] %v557
        %574 = vst [vmem:[#allocation2 + $0x28] sm:$0xff] %v558
        %575 = vst [vmem:[#allocation2 + $0x30] sm:$0xff] %v559
        %576 = vst [vmem:[#allocation2 + $0x38] sm:$0xff] %v560
        %577 = vst [vmem:[#allocation2 + $0x40] sm:$0xff] %v561
        %578 = vst [vmem:[#allocation2 + $0x48] sm:$0xff] %v562
        %579 = vst [vmem:[#allocation2 + $0x50] sm:$0xff] %v563
        %580 = vst [vmem:[#allocation2 + $0x58] sm:$0xff] %v564
        %581 = vst [vmem:[#allocation2 + $0x60] sm:$0xff] %v565
        %582 = vst [vmem:[#allocation2 + $0x68] sm:$0xff] %v566
        %583 = vst [vmem:[#allocation2 + $0x70] sm:$0xff] %v567
        %584 = vst [vmem:[#allocation2 + $0x78] sm:$0xff] %v568
        // Predicated region
        $region60: #{transformer_forward.38} parent=50 // pred_check
          %p585 = pneg %p298
        $region61: #{transformer_forward.38} parent=50 // pred_check_branch
          %587 = sbr.rel (%p585) target = $region63
        $region62: #{transformer_forward.38} parent=50 // pred_region
          %v588 = vld [vmem:[#allocation2] sm:$0xff]
          %v589 = vld [vmem:[#allocation2 + $0x8] sm:$0xff]
          %v590 = vld [vmem:[#allocation2 + $0x10] sm:$0xff]
          %v591 = vld [vmem:[#allocation2 + $0x18] sm:$0xff]
          %v592 = vld [vmem:[#allocation2 + $0x20] sm:$0xff]
          %v593 = vld [vmem:[#allocation2 + $0x28] sm:$0xff]
          %v594 = vld [vmem:[#allocation2 + $0x30] sm:$0xff]
          %v595 = vld [vmem:[#allocation2 + $0x38] sm:$0xff]
          %v596 = vld [vmem:[#allocation2 + $0x40] sm:$0xff]
          %v597 = vld [vmem:[#allocation2 + $0x48] sm:$0xff]
          %v598 = vld [vmem:[#allocation2 + $0x50] sm:$0xff]
          %v599 = vld [vmem:[#allocation2 + $0x58] sm:$0xff]
          %v600 = vld [vmem:[#allocation2 + $0x60] sm:$0xff]
          %v601 = vld [vmem:[#allocation2 + $0x68] sm:$0xff]
          %v602 = vld [vmem:[#allocation2 + $0x70] sm:$0xff]
          %v603 = vld [vmem:[#allocation2 + $0x78] sm:$0xff]
          %v604 = vld [vmem:[%s293] sm:$0xff]
          %v606 = vperm.slane %v604, 0
          %v607 = vperm.slane %v604, 1
          %v608 = vperm.slane %v604, 2
          %v609 = vperm.slane %v604, 3
          %v610 = vperm.slane %v604, 4
          %v611 = vperm.slane %v604, 5
          %v612 = vperm.slane %v604, 6
          %v613 = vperm.slane %v604, 7
          %v622 = vadd.f32 %v588, %v606
          %v623 = vadd.f32 %v589, %v607
          %v624 = vadd.f32 %v590, %v608
          %v625 = vadd.f32 %v591, %v609
          %v626 = vadd.f32 %v592, %v610
          %v627 = vadd.f32 %v593, %v611
          %v628 = vadd.f32 %v594, %v612
          %v629 = vadd.f32 %v595, %v613
          %v630 = vadd.f32 %v596, %v606
          %v631 = vadd.f32 %v597, %v607
          %v632 = vadd.f32 %v598, %v608
          %v633 = vadd.f32 %v599, %v609
          %v634 = vadd.f32 %v600, %v610
          %v635 = vadd.f32 %v601, %v611
          %v636 = vadd.f32 %v602, %v612
          %v637 = vadd.f32 %v603, %v613
          %v638 = vmax.f32 %v622, 0.0
          %v639 = vmax.f32 %v623, 0.0
          %v640 = vmax.f32 %v624, 0.0
          %v641 = vmax.f32 %v625, 0.0
          %v642 = vmax.f32 %v626, 0.0
          %v643 = vmax.f32 %v627, 0.0
          %v644 = vmax.f32 %v628, 0.0
          %v645 = vmax.f32 %v629, 0.0
          %v646 = vmax.f32 %v630, 0.0
          %v647 = vmax.f32 %v631, 0.0
          %v648 = vmax.f32 %v632, 0.0
          %v649 = vmax.f32 %v633, 0.0
          %v650 = vmax.f32 %v634, 0.0
          %v651 = vmax.f32 %v635, 0.0
          %v652 = vmax.f32 %v636, 0.0
          %v653 = vmax.f32 %v637, 0.0
          %v654 = vpack.c.bf16 %v639, %v638
          %v655 = vpack.c.bf16 %v641, %v640
          %v656 = vpack.c.bf16 %v643, %v642
          %v657 = vpack.c.bf16 %v645, %v644
          %v658 = vpack.c.bf16 %v647, %v646
          %v659 = vpack.c.bf16 %v649, %v648
          %v660 = vpack.c.bf16 %v651, %v650
          %v661 = vpack.c.bf16 %v653, %v652
          %662 = vst [vmem:[%s278] sm:$0xff] %v654
          %663 = vst [vmem:[%s278 + $0x8] sm:$0xff] %v655
          %664 = vst [vmem:[%s278 + $0x10] sm:$0xff] %v656
          %665 = vst [vmem:[%s278 + $0x18] sm:$0xff] %v657
          %666 = vst [vmem:[%s278 + $0x20] sm:$0xff] %v658
          %667 = vst [vmem:[%s278 + $0x28] sm:$0xff] %v659
          %668 = vst [vmem:[%s278 + $0x30] sm:$0xff] %v660
          %669 = vst [vmem:[%s278 + $0x38] sm:$0xff] %v661
        $region63: #{transformer_forward.38} parent=50 // pred_fallthru
          _
        %s670 = sand.u32 %s125, 1
        %s671 = sand.u32 %s125, 1
        %s672 = smul.addr %s671, 64
        %s673 = scalar_lea.vmem [#allocation4], %s672
        // Predicated region
        $region64: #{transformer_forward.38} parent=50 // pred_check
          %p674 = pneg %p135
        $region65: #{transformer_forward.38} parent=50 // pred_check_branch
          %676 = sbr.rel (%p674) target = $region67
        $region66: #{transformer_forward.38} parent=50 // pred_region
          %s677 = smul.u32 2, %s19
          %s678 = smul.u32 8, %s20
          %s679 = smul.addr %s677, 16
          %s680 = sadd.s32 %s678, %s679
          %s681 = smul.addr %s680, 4
          %s682 = scalar_lea.vmem %s3, %s681
          // Predicated region
          $region68: #{transformer_forward.38} parent=66 // pred_check
            _
          $region69: #{transformer_forward.38} parent=66 // pred_check_branch
            %684 = sbr.rel (0) target = $region71
          $region70: #{transformer_forward.38} parent=66 // pred_region
            // Predicated region
            $region72: #{transformer_forward.38} parent=70 // pred_check
              _
            $region73: #{transformer_forward.38} parent=70 // pred_check_branch
              %686 = sbr.rel (0) target = $region75
            $region74: #{transformer_forward.38} parent=70 // pred_region
              loop: start=0, step=1, limit=1
              $region76: #{transformer_forward.38} parent=74 // loop_pre_header
                _
              $region77: #{transformer_forward.38} parent=74 // loop_header
                %s688 = sphi 0, %s692
                %p689 = scmp.ge.s32.totalorder %s688, 1
                %s693 = sphi %s673, %s673
                %s694 = sphi %s682, %s682
              $region78: #{transformer_forward.38} parent=74 // loop_header_branch
                %691 = sbr.rel (%p689) target = $region82
              $region79: #{transformer_forward.38} parent=74 // loop_body
                %v695 = vld [vmem:[%s693] sm:$0xff]
                %696 = vst [vmem:[%s694] sm:$0xff] %v695
                %v697 = vld [vmem:[%s693 + $0x8] sm:$0xff]
                %698 = vst [vmem:[%s694 + $0x8] sm:$0xff] %v697
                %v699 = vld [vmem:[%s693 + $0x10] sm:$0xff]
                %700 = vst [vmem:[%s694 + $0x10] sm:$0xff] %v699
                %v701 = vld [vmem:[%s693 + $0x18] sm:$0xff]
                %702 = vst [vmem:[%s694 + $0x18] sm:$0xff] %v701
                %v703 = vld [vmem:[%s693 + $0x20] sm:$0xff]
                %704 = vst [vmem:[%s694 + $0x40] sm:$0xff] %v703
                %v705 = vld [vmem:[%s693 + $0x28] sm:$0xff]
                %706 = vst [vmem:[%s694 + $0x48] sm:$0xff] %v705
                %v707 = vld [vmem:[%s693 + $0x30] sm:$0xff]
                %708 = vst [vmem:[%s694 + $0x50] sm:$0xff] %v707
                %v709 = vld [vmem:[%s693 + $0x38] sm:$0xff]
                %710 = vst [vmem:[%s694 + $0x58] sm:$0xff] %v709
              $region80: #{transformer_forward.38} parent=74 // loop_footer
                %s692 = sadd.s32 1, %s688
              $region81: #{transformer_forward.38} parent=74 // loop_footer_branch
                %687 = sbr.rel target = $region77
              $region82: #{transformer_forward.38} parent=74 // loop_exit
                _
            $region75: #{transformer_forward.38} parent=70 // pred_fallthru
              _
            // Predicated region
            $region83: #{transformer_forward.38} parent=70 // pred_check
              _
            $region84: #{transformer_forward.38} parent=70 // pred_check_branch
              %712 = sbr.rel target = $region86
            $region85: #{transformer_forward.38} parent=70 // pred_region
              _
            $region86: #{transformer_forward.38} parent=70 // pred_fallthru
              _
          $region71: #{transformer_forward.38} parent=66 // pred_fallthru
            _
          %713 = vnop
        $region67: #{transformer_forward.38} parent=50 // pred_fallthru
          _
      $region51: #{transformer_forward.38} parent=5 // pred_fallthru
        _
      %p714 = scmp.le.s32.totalorder 2, %s9
      // Predicated region
      $region87: #{transformer_forward.38} parent=5 // pred_check
        %p715 = pneg %p714
      $region88: #{transformer_forward.38} parent=5 // pred_check_branch
        %717 = sbr.rel (%p715) target = $region90
      $region89: #{transformer_forward.38} parent=5 // pred_region
        %s718 = ssub.s32 %s9, 2
        // Predicated region
        $region91: #{transformer_forward.38} parent=89 // pred_check
          %p719 = pneg %p141
        $region92: #{transformer_forward.38} parent=89 // pred_check_branch
          %721 = sbr.rel (%p719) target = $region94
        $region93: #{transformer_forward.38} parent=89 // pred_region
          %s722 = sand.u32 %s126, 1
          %s723 = sand.u32 %s126, 1
          %s724 = smul.addr %s723, 64
          %s725 = scalar_lea.vmem [#allocation4], %s724
        $region94: #{transformer_forward.38} parent=89 // pred_fallthru
          _
      $region90: #{transformer_forward.38} parent=5 // pred_fallthru
        _
    $region6: #{transformer_forward.38} parent=1 // loop_footer
      %s13 = sadd.s32 1, %s9
    $region7: #{transformer_forward.38} parent=1 // loop_footer_branch
      %8 = sbr.rel target = $region3
    $region8: #{transformer_forward.38} parent=1 // loop_exit
      _

// kernel: transformer_forward.39
$region0: #{transformer_forward.39}
  #allocation0 [shape = 'u32[]', space=smem, size = 0x4, offset = 0x4, fixed_abs, tag = 'smem constant byte address 0x4 - core index']
  #allocation1 [shape = 'u32[72,128]{1,0:T(1,128)}', space=vmem, size = 0x9000, scoped, tag = 'internal scratch']
  #allocation2 [shape = 'f32[16,32]{1,0:T(8,128)}', space=vmem, size = 0x2000, scoped, tag = 'scratch operand']
  %s0 = inlined_call_operand.vmem [shape: bf16[16,2048], index: 0, kind: input, shape index: {}]
  %s1 = inlined_call_operand.vmem [shape: bf16[2048,32], index: 1, kind: input, shape index: {}]
  %s2 = inlined_call_operand.vmem [shape: f32[1,32], index: 2, kind: input, shape index: {}]
  %s3 = inlined_call_operand.vmem [shape: bf16[16,32], index: 3, kind: input, shape index: {}]
  %s4 = inlined_call_operand.vmem [shape: bf16[16,32], index: 4, kind: output, shape index: {}]
  %s5 = sld [smem:[#allocation0]]
  $region80: #{transformer_forward.39} parent=0
    _
  %s7 = ssub.s32 1, %s5
  %s8 = scalar_select 0, %s7, %s5
  $region1: #{transformer_forward.39} parent=0
    #allocation3 [shape = 'u8[65536]{0}', space=vmem, size = 0x10000, scoped, tag = 'input window, operand 0']
    loop: start=0, step=1, limit=4
    $region2: #{transformer_forward.39} parent=1 // loop_pre_header
      _
    $region3: #{transformer_forward.39} parent=1 // loop_header
      %s10 = sphi 0, %s14
      %p11 = scmp.ge.s32.totalorder %s10, 4
      %s17 = sphi 0, %s36
      %s18 = sphi 0, %s32
      %s19 = sphi 0, %s28
      %s20 = sphi 0, %s17
      %s21 = sphi 0, %s18
      %s22 = sphi 0, %s19
      %s23 = sphi 0, %s20
      %s24 = sphi 0, %s21
      %s25 = sphi 0, %s22
      %s41 = sphi 0, %s43
      %s44 = sphi 0, %s41
      %s45 = sphi 0, %s44
      %s61 = sphi 0, %s45
      %s69 = sphi 0, %s71
      %s72 = sphi 0, %s69
      %s73 = sphi 0, %s72
      %s89 = sphi 0, %s73
      %s95 = sphi 0, %s97
      %s98 = sphi 0, %s95
      %s99 = sphi 0, %s98
      %s115 = sphi 0, %s99
      %s123 = sphi 0, %s125
      %s126 = sphi 0, %s123
      %s127 = sphi 0, %s126
      %s143 = sphi 0, %s127
      %s151 = sphi 0, %s153
      %s154 = sphi 0, %s151
      %s155 = sphi 0, %s154
      %s171 = sphi 0, %s155
    $region4: #{transformer_forward.39} parent=1 // loop_header_branch
      %13 = sbr.rel (%p11) target = $region8
    $region5: #{transformer_forward.39} parent=1 // loop_body
      %s15 = ssub.s32 %s10, 1
      %s16 = ssub.s32 %s10, 2
      %s26 = sadd.s32 1, %s19
      %p27 = scmp.ge.s32.totalorder %s26, 2
      %s28 = scalar_select %p27, 0, %s26
      %s29 = sadd.s32 1, %s18
      %s30 = scalar_select %p27, %s29, %s18
      %p31 = scmp.ge.s32.totalorder %s30, 1
      %s32 = scalar_select %p31, 0, %s30
      %s33 = sadd.s32 1, %s17
      %s34 = scalar_select %p31, %s33, %s17
      %p35 = scmp.ge.s32.totalorder %s34, 1
      %s36 = scalar_select %p35, 0, %s34
      %s37 = ssub.s32 %s17, %s36
      %s38 = ssub.s32 %s19, %s28
      %s39 = sor.u32 %s37, %s38
      %p40 = scmp.eq.s32.totalorder %s39, 0
      %s42 = sadd.s32 %s41, 1
      %s43 = scalar_select %p40, %s41, %s42
      %p46 = pneg %p40
      %p47 = scmp.eq.s32.totalorder %s10, 1
      %p48 = por %p46, %p47
      %p49 = scmp.ne.s32.totalorder %s41, %s44
      %p50 = scmp.eq.s32.totalorder %s10, 0
      %p51 = por %p49, %p50
      %p52 = scmp.ne.s32.totalorder %s41, %s44
      %p53 = scmp.eq.s32.totalorder %s15, 1
      %p54 = por %p52, %p53
      %p55 = scmp.ne.s32.totalorder %s44, %s45
      %p56 = scmp.eq.s32.totalorder %s15, 0
      %p57 = por %p55, %p56
      %p58 = scmp.ne.s32.totalorder %s44, %s45
      %p59 = scmp.eq.s32.totalorder %s16, 1
      %p60 = por %p58, %p59
      %p62 = scmp.ne.s32.totalorder %s45, %s61
      %p63 = scmp.eq.s32.totalorder %s16, 0
      %p64 = por %p62, %p63
      %s65 = ssub.s32 %s19, %s28
      %s66 = ssub.s32 %s18, %s32
      %s67 = sor.u32 %s65, %s66
      %p68 = scmp.eq.s32.totalorder %s67, 0
      %s70 = sadd.s32 %s69, 1
      %s71 = scalar_select %p68, %s69, %s70
      %p74 = pneg %p68
      %p75 = scmp.eq.s32.totalorder %s10, 1
      %p76 = por %p74, %p75
      %p77 = scmp.ne.s32.totalorder %s69, %s72
      %p78 = scmp.eq.s32.totalorder %s10, 0
      %p79 = por %p77, %p78
      %p80 = scmp.ne.s32.totalorder %s69, %s72
      %p81 = scmp.eq.s32.totalorder %s15, 1
      %p82 = por %p80, %p81
      %p83 = scmp.ne.s32.totalorder %s72, %s73
      %p84 = scmp.eq.s32.totalorder %s15, 0
      %p85 = por %p83, %p84
      %p86 = scmp.ne.s32.totalorder %s72, %s73
      %p87 = scmp.eq.s32.totalorder %s16, 1
      %p88 = por %p86, %p87
      %p90 = scmp.ne.s32.totalorder %s73, %s89
      %p91 = scmp.eq.s32.totalorder %s16, 0
      %p92 = por %p90, %p91
      %s93 = ssub.s32 %s18, %s32
      %p94 = scmp.eq.s32.totalorder %s93, 0
      %s96 = sadd.s32 %s95, 1
      %s97 = scalar_select %p94, %s95, %s96
      %p100 = pneg %p94
      %p101 = scmp.eq.s32.totalorder %s10, 1
      %p102 = por %p100, %p101
      %p103 = scmp.ne.s32.totalorder %s95, %s98
      %p104 = scmp.eq.s32.totalorder %s10, 0
      %p105 = por %p103, %p104
      %p106 = scmp.ne.s32.totalorder %s95, %s98
      %p107 = scmp.eq.s32.totalorder %s15, 1
      %p108 = por %p106, %p107
      %p109 = scmp.ne.s32.totalorder %s98, %s99
      %p110 = scmp.eq.s32.totalorder %s15, 0
      %p111 = por %p109, %p110
      %p112 = scmp.ne.s32.totalorder %s98, %s99
      %p113 = scmp.eq.s32.totalorder %s16, 1
      %p114 = por %p112, %p113
      %p116 = scmp.ne.s32.totalorder %s99, %s115
      %p117 = scmp.eq.s32.totalorder %s16, 0
      %p118 = por %p116, %p117
      %s119 = ssub.s32 %s17, %s36
      %s120 = ssub.s32 %s18, %s32
      %s121 = sor.u32 %s119, %s120
      %p122 = scmp.eq.s32.totalorder %s121, 0
      %s124 = sadd.s32 %s123, 1
      %s125 = scalar_select %p122, %s123, %s124
      %p128 = pneg %p122
      %p129 = scmp.eq.s32.totalorder %s10, 1
      %p130 = por %p128, %p129
      %p131 = scmp.ne.s32.totalorder %s123, %s126
      %p132 = scmp.eq.s32.totalorder %s10, 0
      %p133 = por %p131, %p132
      %p134 = scmp.ne.s32.totalorder %s123, %s126
      %p135 = scmp.eq.s32.totalorder %s15, 1
      %p136 = por %p134, %p135
      %p137 = scmp.ne.s32.totalorder %s126, %s127
      %p138 = scmp.eq.s32.totalorder %s15, 0
      %p139 = por %p137, %p138
      %p140 = scmp.ne.s32.totalorder %s126, %s127
      %p141 = scmp.eq.s32.totalorder %s16, 1
      %p142 = por %p140, %p141
      %p144 = scmp.ne.s32.totalorder %s127, %s143
      %p145 = scmp.eq.s32.totalorder %s16, 0
      %p146 = por %p144, %p145
      %s147 = ssub.s32 %s17, %s36
      %s148 = ssub.s32 %s18, %s32
      %s149 = sor.u32 %s147, %s148
      %p150 = scmp.eq.s32.totalorder %s149, 0
      %s152 = sadd.s32 %s151, 1
      %s153 = scalar_select %p150, %s151, %s152
      %p156 = pneg %p150
      %p157 = scmp.eq.s32.totalorder %s10, 1
      %p158 = por %p156, %p157
      %p159 = scmp.ne.s32.totalorder %s151, %s154
      %p160 = scmp.eq.s32.totalorder %s10, 0
      %p161 = por %p159, %p160
      %p162 = scmp.ne.s32.totalorder %s151, %s154
      %p163 = scmp.eq.s32.totalorder %s15, 1
      %p164 = por %p162, %p163
      %p165 = scmp.ne.s32.totalorder %s154, %s155
      %p166 = scmp.eq.s32.totalorder %s15, 0
      %p167 = por %p165, %p166
      %p168 = scmp.ne.s32.totalorder %s154, %s155
      %p169 = scmp.eq.s32.totalorder %s16, 1
      %p170 = por %p168, %p169
      %p172 = scmp.ne.s32.totalorder %s155, %s171
      %p173 = scmp.eq.s32.totalorder %s16, 0
      %p174 = por %p172, %p173
      %p175 = scmp.le.s32.totalorder 1, %s10
      %p176 = scmp.lt.s32.totalorder %s10, 3
      %p177 = pnand %p175, %p176
      %p178 = pneg %p177
      // Predicated region
      $region9: #{transformer_forward.39} parent=5 // pred_check
        _
      $region10: #{transformer_forward.39} parent=5 // pred_check_branch
        %180 = sbr.rel (%p177) target = $region12
      $region11: #{transformer_forward.39} parent=5 // pred_region
        %s181 = ssub.s32 %s10, 1
        // Predicated region
        $region13: #{transformer_forward.39} parent=11 // pred_check
          %p182 = pneg %p111
        $region14: #{transformer_forward.39} parent=11 // pred_check_branch
          %184 = sbr.rel (%p182) target = $region16
        $region15: #{transformer_forward.39} parent=11 // pred_region
          %p185 = scmp.lt.s32.totalorder %s21, 0
          %s186 = scalar_select %p185, %s21, 0
          %s187 = scalar_lea.vmem %s2, %s186
        $region16: #{transformer_forward.39} parent=11 // pred_fallthru
          _
        // Predicated region
        $region17: #{transformer_forward.39} parent=11 // pred_check
          %p188 = pneg %p139
        $region18: #{transformer_forward.39} parent=11 // pred_check_branch
          %190 = sbr.rel (%p188) target = $region20
        $region19: #{transformer_forward.39} parent=11 // pred_region
          %s191 = smul.u32 2, %s20
          %p192 = scmp.lt.s32.totalorder %s191, 1
          %s193 = scalar_select %p192, %s191, 1
          %p194 = scmp.lt.s32.totalorder %s21, 0
          %s195 = scalar_select %p194, %s21, 0
          %s196 = sadd.s32 %s195, %s193
          %s197 = smul.addr %s196, 4
          %s198 = scalar_lea.vmem %s3, %s197
          %s199 = smul.u32 2, %s20
        $region20: #{transformer_forward.39} parent=11 // pred_fallthru
          _
      $region12: #{transformer_forward.39} parent=5 // pred_fallthru
        _
      %p200 = scmp.lt.s32.totalorder %s10, 2
      // Predicated region
      $region21: #{transformer_forward.39} parent=5 // pred_check
        %p201 = pneg %p200
      $region22: #{transformer_forward.39} parent=5 // pred_check_branch
        %203 = sbr.rel (%p201) target = $region24
      $region23: #{transformer_forward.39} parent=5 // pred_region
        // Predicated region
        $region25: #{transformer_forward.39} parent=23 // pred_check
          %p204 = pneg %p51
        $region26: #{transformer_forward.39} parent=23 // pred_check_branch
          %206 = sbr.rel (%p204) target = $region28
        $region27: #{transformer_forward.39} parent=23 // pred_region
          %s207 = sand.u32 %s41, 1
          %s208 = sand.u32 %s41, 1
          %s209 = smul.addr %s208, 64
          %s210 = scalar_lea.vmem [#allocation3], %s209
          %s211 = smul.u32 2, %s17
          %s212 = smul.u32 8, %s19
          %s213 = smul.addr %s211, 16
          %s214 = sadd.s32 %s212, %s213
          %s215 = smul.addr %s214, 4
          %s216 = scalar_lea.vmem %s0, %s215
          // Predicated region
          $region29: #{transformer_forward.39} parent=27 // pred_check
            _
          $region30: #{transformer_forward.39} parent=27 // pred_check_branch
            %218 = sbr.rel (0) target = $region32
          $region31: #{transformer_forward.39} parent=27 // pred_region
            // Predicated region
            $region33: #{transformer_forward.39} parent=31 // pred_check
              _
            $region34: #{transformer_forward.39} parent=31 // pred_check_branch
              %220 = sbr.rel (0) target = $region36
            $region35: #{transformer_forward.39} parent=31 // pred_region
              loop: start=0, step=1, limit=1
              $region37: #{transformer_forward.39} parent=35 // loop_pre_header
                _
              $region38: #{transformer_forward.39} parent=35 // loop_header
                %s222 = sphi 0, %s226
                %p223 = scmp.ge.s32.totalorder %s222, 1
                %s227 = sphi %s216, %s216
                %s228 = sphi %s210, %s210
              $region39: #{transformer_forward.39} parent=35 // loop_header_branch
                %225 = sbr.rel (%p223) target = $region43
              $region40: #{transformer_forward.39} parent=35 // loop_body
                %v229 = vld [vmem:[%s227] sm:$0xff]
                %230 = vst [vmem:[%s228] sm:$0xff] %v229
                %v231 = vld [vmem:[%s227 + $0x8] sm:$0xff]
                %232 = vst [vmem:[%s228 + $0x8] sm:$0xff] %v231
                %v233 = vld [vmem:[%s227 + $0x10] sm:$0xff]
                %234 = vst [vmem:[%s228 + $0x10] sm:$0xff] %v233
                %v235 = vld [vmem:[%s227 + $0x18] sm:$0xff]
                %236 = vst [vmem:[%s228 + $0x18] sm:$0xff] %v235
                %v237 = vld [vmem:[%s227 + $0x40] sm:$0xff]
                %238 = vst [vmem:[%s228 + $0x20] sm:$0xff] %v237
                %v239 = vld [vmem:[%s227 + $0x48] sm:$0xff]
                %240 = vst [vmem:[%s228 + $0x28] sm:$0xff] %v239
                %v241 = vld [vmem:[%s227 + $0x50] sm:$0xff]
                %242 = vst [vmem:[%s228 + $0x30] sm:$0xff] %v241
                %v243 = vld [vmem:[%s227 + $0x58] sm:$0xff]
                %244 = vst [vmem:[%s228 + $0x38] sm:$0xff] %v243
              $region41: #{transformer_forward.39} parent=35 // loop_footer
                %s226 = sadd.s32 1, %s222
              $region42: #{transformer_forward.39} parent=35 // loop_footer_branch
                %221 = sbr.rel target = $region38
              $region43: #{transformer_forward.39} parent=35 // loop_exit
                _
            $region36: #{transformer_forward.39} parent=31 // pred_fallthru
              _
            // Predicated region
            $region44: #{transformer_forward.39} parent=31 // pred_check
              _
            $region45: #{transformer_forward.39} parent=31 // pred_check_branch
              %246 = sbr.rel target = $region47
            $region46: #{transformer_forward.39} parent=31 // pred_region
              _
            $region47: #{transformer_forward.39} parent=31 // pred_fallthru
              _
          $region32: #{transformer_forward.39} parent=27 // pred_fallthru
            _
          %247 = vnop
        $region28: #{transformer_forward.39} parent=23 // pred_fallthru
          _
        // Predicated region
        $region48: #{transformer_forward.39} parent=23 // pred_check
          %p248 = pneg %p79
        $region49: #{transformer_forward.39} parent=23 // pred_check_branch
          %250 = sbr.rel (%p248) target = $region51
        $region50: #{transformer_forward.39} parent=23 // pred_region
          %s251 = smul.u32 128, %s19
          %p252 = scmp.lt.s32.totalorder %s251, 255
          %s253 = scalar_select %p252, %s251, 255
          %p254 = scmp.lt.s32.totalorder %s18, 0
          %s255 = scalar_select %p254, %s18, 0
          %s256 = sadd.s32 %s255, %s253
          %s257 = smul.addr %s256, 4
          %s258 = scalar_lea.vmem %s1, %s257
          %s259 = smul.u32 128, %s19
        $region51: #{transformer_forward.39} parent=23 // pred_fallthru
          _
      $region24: #{transformer_forward.39} parent=5 // pred_fallthru
        _
      %p260 = scmp.le.s32.totalorder 1, %s10
      %p261 = scmp.lt.s32.totalorder %s10, 3
      %p262 = pnand %p260, %p261
      %p263 = pneg %p262
      // Predicated region
      $region52: #{transformer_forward.39} parent=5 // pred_check
        _
      $region53: #{transformer_forward.39} parent=5 // pred_check_branch
        %265 = sbr.rel (%p262) target = $region55
      $region54: #{transformer_forward.39} parent=5 // pred_region
        %s266 = ssub.s32 %s10, 1
        %s267 = sand.u32 %s44, 1
        %s268 = sand.u32 %s44, 1
        %s269 = smul.addr %s268, 64
        %s270 = scalar_lea.vmem [#allocation3], %s269
        // Predicated region
        $region56: #{transformer_forward.39} parent=54 // pred_check
          %p271 = pneg %p57
        $region57: #{transformer_forward.39} parent=54 // pred_check_branch
          %273 = sbr.rel (%p271) target = $region59
        $region58: #{transformer_forward.39} parent=54 // pred_region
          _
        $region59: #{transformer_forward.39} parent=54 // pred_fallthru
          _
        %s274 = sand.u32 %s44, 1
        %s275 = sand.u32 %s44, 1
        %s276 = smul.addr %s275, 64
        %s277 = scalar_lea.vmem [#allocation3], %s276
        %p278 = pneg %p57
        %p279 = pneg %p54
        %s280 = smul.u32 128, %s22
        %p281 = scmp.lt.s32.totalorder %s280, 255
        %s282 = scalar_select %p281, %s280, 255
        %p283 = scmp.lt.s32.totalorder %s21, 0
        %s284 = scalar_select %p283, %s21, 0
        %s285 = sadd.s32 %s284, %s282
        %s286 = smul.addr %s285, 4
        %s287 = scalar_lea.vmem %s1, %s286
        %p288 = pneg %p85
        %p289 = pneg %p82
        %p290 = scmp.lt.s32.totalorder %s21, 0
        %s291 = scalar_select %p290, %s21, 0
        %s292 = scalar_lea.vmem %s2, %s291
        %p293 = pneg %p111
        %p294 = pneg %p108
        %s295 = smul.u32 2, %s20
        %p296 = scmp.lt.s32.totalorder %s295, 1
        %s297 = scalar_select %p296, %s295, 1
        %p298 = scmp.lt.s32.totalorder %s21, 0
        %s299 = scalar_select %p298, %s21, 0
        %s300 = sadd.s32 %s299, %s297
        %s301 = smul.addr %s300, 4
        %s302 = scalar_lea.vmem %s3, %s301
        %p303 = pneg %p139
        %p304 = pneg %p136
        %p305 = pneg %p167
        %p306 = pneg %p164
        %s307 = smul.u32 2, %s20
        %p308 = scmp.lt.s32.totalorder %s307, 1
        %s309 = scalar_select %p308, %s307, 1
        %p310 = scmp.lt.s32.totalorder %s21, 0
        %s311 = scalar_select %p310, %s21, 0
        %s312 = sadd.s32 %s311, %s309
        %s313 = smul.addr %s312, 4
        %s314 = scalar_lea.vmem %s4, %s313
        %s315 = smul.u32 2, %s20
        %s316 = smul.u32 8, %s22
        %s317 = smul.u32 128, %s22
        %p318 = scmp.lt.s32.totalorder %s317, 255
        %s319 = scalar_select %p318, %s317, 255
        %p320 = scmp.lt.s32.totalorder %s21, 0
        %s321 = scalar_select %p320, %s21, 0
        %s322 = sadd.s32 %s321, %s319
        %s323 = smul.addr %s322, 4
        %s324 = scalar_lea.vmem %s1, %s323
        %s325 = smul.u32 128, %s22
        %p326 = scmp.lt.s32.totalorder %s21, 0
        %s327 = scalar_select %p326, %s21, 0
        %s328 = scalar_lea.vmem %s2, %s327
        %s329 = smul.u32 2, %s20
        %p330 = scmp.lt.s32.totalorder %s329, 1
        %s331 = scalar_select %p330, %s329, 1
        %p332 = scmp.lt.s32.totalorder %s21, 0
        %s333 = scalar_select %p332, %s21, 0
        %s334 = sadd.s32 %s333, %s331
        %s335 = smul.addr %s334, 4
        %s336 = scalar_lea.vmem %s3, %s335
        %s337 = smul.u32 2, %s20
        %s338 = smul.u32 2, %s20
        %p339 = scmp.lt.s32.totalorder %s338, 1
        %s340 = scalar_select %p339, %s338, 1
        %p341 = scmp.lt.s32.totalorder %s21, 0
        %s342 = scalar_select %p341, %s21, 0
        %s343 = sadd.s32 %s342, %s340
        %s344 = smul.addr %s343, 4
        %s345 = scalar_lea.vmem %s4, %s344
        %s346 = smul.u32 2, %s20
        %p347 = scmp.eq.s32.totalorder %s22, 0
        // Predicated region
        $region60: #{transformer_forward.39} parent=54 // pred_check
          %p348 = pneg %p347
        $region61: #{transformer_forward.39} parent=54 // pred_check_branch
          %350 = sbr.rel (%p348) target = $region63
        $region62: #{transformer_forward.39} parent=54 // pred_region
          %vm351 = vcmask 261120
          %352 = vst.msk [vmem:[#allocation2] sm:$0xff] %vm351, 0.0
          %353 = vst.msk [vmem:[#allocation2 + $0x8] sm:$0xff] %vm351, 0.0
        $region63: #{transformer_forward.39} parent=54 // pred_fallthru
          _
        %v354 = vld [vmem:[%s270] sm:$0xff]
        %v355 = vld [vmem:[%s270 + $0x8] sm:$0xff]
        %v356 = vld [vmem:[%s270 + $0x10] sm:$0xff]
        %v357 = vld [vmem:[%s270 + $0x18] sm:$0xff]
        %v358 = vld [vmem:[%s270 + $0x20] sm:$0xff]
        %v359 = vld [vmem:[%s270 + $0x28] sm:$0xff]
        %v360 = vld [vmem:[%s270 + $0x30] sm:$0xff]
        %v361 = vld [vmem:[%s270 + $0x38] sm:$0xff]
        %v362 = vld [vmem:[#allocation2] sm:$0xff]
        %v363 = vld [vmem:[#allocation2 + $0x8] sm:$0xff]
        %v364 = vld [vmem:[%s324] sm:$0xf]
        %v365 = vld [vmem:[%s324 + $0x4] sm:$0xf]
        %v366 = vld [vmem:[%s324 + $0x8] sm:$0xf]
        %v367 = vld [vmem:[%s324 + $0xc] sm:$0xf]
        %v368 = vld [vmem:[%s324 + $0x10] sm:$0xf]
        %v369 = vld [vmem:[%s324 + $0x14] sm:$0xf]
        %v370 = vld [vmem:[%s324 + $0x18] sm:$0xf]
        %v371 = vld [vmem:[%s324 + $0x1c] sm:$0xf]
        %v372 = vld [vmem:[%s324 + $0x20] sm:$0xf]
        %v373 = vld [vmem:[%s324 + $0x24] sm:$0xf]
        %v374 = vld [vmem:[%s324 + $0x28] sm:$0xf]
        %v375 = vld [vmem:[%s324 + $0x2c] sm:$0xf]
        %v376 = vld [vmem:[%s324 + $0x30] sm:$0xf]
        %v377 = vld [vmem:[%s324 + $0x34] sm:$0xf]
        %v378 = vld [vmem:[%s324 + $0x38] sm:$0xf]
        %v379 = vld [vmem:[%s324 + $0x3c] sm:$0xf]
        %v380 = vld [vmem:[%s324 + $0x40] sm:$0xf]
        %v381 = vld [vmem:[%s324 + $0x44] sm:$0xf]
        %v382 = vld [vmem:[%s324 + $0x48] sm:$0xf]
        %v383 = vld [vmem:[%s324 + $0x4c] sm:$0xf]
        %v384 = vld [vmem:[%s324 + $0x50] sm:$0xf]
        %v385 = vld [vmem:[%s324 + $0x54] sm:$0xf]
        %v386 = vld [vmem:[%s324 + $0x58] sm:$0xf]
        %v387 = vld [vmem:[%s324 + $0x5c] sm:$0xf]
        %v388 = vld [vmem:[%s324 + $0x60] sm:$0xf]
        %v389 = vld [vmem:[%s324 + $0x64] sm:$0xf]
        %v390 = vld [vmem:[%s324 + $0x68] sm:$0xf]
        %v391 = vld [vmem:[%s324 + $0x6c] sm:$0xf]
        %v392 = vld [vmem:[%s324 + $0x70] sm:$0xf]
        %v393 = vld [vmem:[%s324 + $0x74] sm:$0xf]
        %v394 = vld [vmem:[%s324 + $0x78] sm:$0xf]
        %v395 = vld [vmem:[%s324 + $0x7c] sm:$0xf]
        %v396 = vld [vmem:[%s324 + $0x80] sm:$0xf]
        %v397 = vld [vmem:[%s324 + $0x84] sm:$0xf]
        %v398 = vld [vmem:[%s324 + $0x88] sm:$0xf]
        %v399 = vld [vmem:[%s324 + $0x8c] sm:$0xf]
        %v400 = vld [vmem:[%s324 + $0x90] sm:$0xf]
        %v401 = vld [vmem:[%s324 + $0x94] sm:$0xf]
        %v402 = vld [vmem:[%s324 + $0x98] sm:$0xf]
        %v403 = vld [vmem:[%s324 + $0x9c] sm:$0xf]
        %v404 = vld [vmem:[%s324 + $0xa0] sm:$0xf]
        %v405 = vld [vmem:[%s324 + $0xa4] sm:$0xf]
        %v406 = vld [vmem:[%s324 + $0xa8] sm:$0xf]
        %v407 = vld [vmem:[%s324 + $0xac] sm:$0xf]
        %v408 = vld [vmem:[%s324 + $0xb0] sm:$0xf]
        %v409 = vld [vmem:[%s324 + $0xb4] sm:$0xf]
        %v410 = vld [vmem:[%s324 + $0xb8] sm:$0xf]
        %v411 = vld [vmem:[%s324 + $0xbc] sm:$0xf]
        %v412 = vld [vmem:[%s324 + $0xc0] sm:$0xf]
        %v413 = vld [vmem:[%s324 + $0xc4] sm:$0xf]
        %v414 = vld [vmem:[%s324 + $0xc8] sm:$0xf]
        %v415 = vld [vmem:[%s324 + $0xcc] sm:$0xf]
        %v416 = vld [vmem:[%s324 + $0xd0] sm:$0xf]
        %v417 = vld [vmem:[%s324 + $0xd4] sm:$0xf]
        %v418 = vld [vmem:[%s324 + $0xd8] sm:$0xf]
        %v419 = vld [vmem:[%s324 + $0xdc] sm:$0xf]
        %v420 = vld [vmem:[%s324 + $0xe0] sm:$0xf]
        %v421 = vld [vmem:[%s324 + $0xe4] sm:$0xf]
        %v422 = vld [vmem:[%s324 + $0xe8] sm:$0xf]
        %v423 = vld [vmem:[%s324 + $0xec] sm:$0xf]
        %v424 = vld [vmem:[%s324 + $0xf0] sm:$0xf]
        %v425 = vld [vmem:[%s324 + $0xf4] sm:$0xf]
        %v426 = vld [vmem:[%s324 + $0xf8] sm:$0xf]
        %v427 = vld [vmem:[%s324 + $0xfc] sm:$0xf]
        %v428 = vld [vmem:[%s324 + $0x100] sm:$0xf]
        %v429 = vld [vmem:[%s324 + $0x104] sm:$0xf]
        %v430 = vld [vmem:[%s324 + $0x108] sm:$0xf]
        %v431 = vld [vmem:[%s324 + $0x10c] sm:$0xf]
        %v432 = vld [vmem:[%s324 + $0x110] sm:$0xf]
        %v433 = vld [vmem:[%s324 + $0x114] sm:$0xf]
        %v434 = vld [vmem:[%s324 + $0x118] sm:$0xf]
        %v435 = vld [vmem:[%s324 + $0x11c] sm:$0xf]
        %v436 = vld [vmem:[%s324 + $0x120] sm:$0xf]
        %v437 = vld [vmem:[%s324 + $0x124] sm:$0xf]
        %v438 = vld [vmem:[%s324 + $0x128] sm:$0xf]
        %v439 = vld [vmem:[%s324 + $0x12c] sm:$0xf]
        %v440 = vld [vmem:[%s324 + $0x130] sm:$0xf]
        %v441 = vld [vmem:[%s324 + $0x134] sm:$0xf]
        %v442 = vld [vmem:[%s324 + $0x138] sm:$0xf]
        %v443 = vld [vmem:[%s324 + $0x13c] sm:$0xf]
        %v444 = vld [vmem:[%s324 + $0x140] sm:$0xf]
        %v445 = vld [vmem:[%s324 + $0x144] sm:$0xf]
        %v446 = vld [vmem:[%s324 + $0x148] sm:$0xf]
        %v447 = vld [vmem:[%s324 + $0x14c] sm:$0xf]
        %v448 = vld [vmem:[%s324 + $0x150] sm:$0xf]
        %v449 = vld [vmem:[%s324 + $0x154] sm:$0xf]
        %v450 = vld [vmem:[%s324 + $0x158] sm:$0xf]
        %v451 = vld [vmem:[%s324 + $0x15c] sm:$0xf]
        %v452 = vld [vmem:[%s324 + $0x160] sm:$0xf]
        %v453 = vld [vmem:[%s324 + $0x164] sm:$0xf]
        %v454 = vld [vmem:[%s324 + $0x168] sm:$0xf]
        %v455 = vld [vmem:[%s324 + $0x16c] sm:$0xf]
        %v456 = vld [vmem:[%s324 + $0x170] sm:$0xf]
        %v457 = vld [vmem:[%s324 + $0x174] sm:$0xf]
        %v458 = vld [vmem:[%s324 + $0x178] sm:$0xf]
        %v459 = vld [vmem:[%s324 + $0x17c] sm:$0xf]
        %v460 = vld [vmem:[%s324 + $0x180] sm:$0xf]
        %v461 = vld [vmem:[%s324 + $0x184] sm:$0xf]
        %v462 = vld [vmem:[%s324 + $0x188] sm:$0xf]
        %v463 = vld [vmem:[%s324 + $0x18c] sm:$0xf]
        %v464 = vld [vmem:[%s324 + $0x190] sm:$0xf]
        %v465 = vld [vmem:[%s324 + $0x194] sm:$0xf]
        %v466 = vld [vmem:[%s324 + $0x198] sm:$0xf]
        %v467 = vld [vmem:[%s324 + $0x19c] sm:$0xf]
        %v468 = vld [vmem:[%s324 + $0x1a0] sm:$0xf]
        %v469 = vld [vmem:[%s324 + $0x1a4] sm:$0xf]
        %v470 = vld [vmem:[%s324 + $0x1a8] sm:$0xf]
        %v471 = vld [vmem:[%s324 + $0x1ac] sm:$0xf]
        %v472 = vld [vmem:[%s324 + $0x1b0] sm:$0xf]
        %v473 = vld [vmem:[%s324 + $0x1b4] sm:$0xf]
        %v474 = vld [vmem:[%s324 + $0x1b8] sm:$0xf]
        %v475 = vld [vmem:[%s324 + $0x1bc] sm:$0xf]
        %v476 = vld [vmem:[%s324 + $0x1c0] sm:$0xf]
        %v477 = vld [vmem:[%s324 + $0x1c4] sm:$0xf]
        %v478 = vld [vmem:[%s324 + $0x1c8] sm:$0xf]
        %v479 = vld [vmem:[%s324 + $0x1cc] sm:$0xf]
        %v480 = vld [vmem:[%s324 + $0x1d0] sm:$0xf]
        %v481 = vld [vmem:[%s324 + $0x1d4] sm:$0xf]
        %v482 = vld [vmem:[%s324 + $0x1d8] sm:$0xf]
        %v483 = vld [vmem:[%s324 + $0x1dc] sm:$0xf]
        %v484 = vld [vmem:[%s324 + $0x1e0] sm:$0xf]
        %v485 = vld [vmem:[%s324 + $0x1e4] sm:$0xf]
        %v486 = vld [vmem:[%s324 + $0x1e8] sm:$0xf]
        %v487 = vld [vmem:[%s324 + $0x1ec] sm:$0xf]
        %v488 = vld [vmem:[%s324 + $0x1f0] sm:$0xf]
        %v489 = vld [vmem:[%s324 + $0x1f4] sm:$0xf]
        %v490 = vld [vmem:[%s324 + $0x1f8] sm:$0xf]
        %v491 = vld [vmem:[%s324 + $0x1fc] sm:$0xf]
        %v500 = vunpack.c.l.b16 %v354
        %v501 = vunpack.c.h.b16 %v354
        %v502 = vunpack.c.l.b16 %v355
        %v503 = vunpack.c.h.b16 %v355
        %v504 = vunpack.c.l.b16 %v356
        %v505 = vunpack.c.h.b16 %v356
        %v506 = vunpack.c.l.b16 %v357
        %v507 = vunpack.c.h.b16 %v357
        %v508 = vunpack.c.l.b16 %v358
        %v509 = vunpack.c.h.b16 %v358
        %v510 = vunpack.c.l.b16 %v359
        %v511 = vunpack.c.h.b16 %v359
        %v512 = vunpack.c.l.b16 %v360
        %v513 = vunpack.c.h.b16 %v360
        %v514 = vunpack.c.l.b16 %v361
        %v515 = vunpack.c.h.b16 %v361
        %v516 = vpack.c.b16 %v508, %v500
        %v517 = vpack.c.b16 %v509, %v501
        %v518 = vpack.c.b16 %v510, %v502
        %v519 = vpack.c.b16 %v511, %v503
        %v520 = vpack.c.b16 %v512, %v504
        %v521 = vpack.c.b16 %v513, %v505
        %v522 = vpack.c.b16 %v514, %v506
        %v523 = vpack.c.b16 %v515, %v507
        %v660 = vunpack.c.l.b16 %v364
        %v661 = vunpack.c.l.b16 %v365
        %v662 = vunpack.c.l.b16 %v366
        %v663 = vunpack.c.l.b16 %v367
        %v664 = vunpack.c.l.b16 %v368
        %v665 = vunpack.c.l.b16 %v369
        %v666 = vunpack.c.l.b16 %v370
        %v667 = vunpack.c.l.b16 %v371
        %v668 = vunpack.c.l.b16 %v372
        %v669 = vunpack.c.l.b16 %v373
        %v670 = vunpack.c.l.b16 %v374
        %v671 = vunpack.c.l.b16 %v375
        %v672 = vunpack.c.l.b16 %v376
        %v673 = vunpack.c.l.b16 %v377
        %v674 = vunpack.c.l.b16 %v378
        %v675 = vunpack.c.l.b16 %v379
        %v676 = vunpack.c.l.b16 %v380
        %v677 = vunpack.c.l.b16 %v381
        %v678 = vunpack.c.l.b16 %v382
        %v679 = vunpack.c.l.b16 %v383
        %v680 = vunpack.c.l.b16 %v384
        %v681 = vunpack.c.l.b16 %v385
        %v682 = vunpack.c.l.b16 %v386
        %v683 = vunpack.c.l.b16 %v387
        %v684 = vunpack.c.l.b16 %v388
        %v685 = vunpack.c.l.b16 %v389
        %v686 = vunpack.c.l.b16 %v390
        %v687 = vunpack.c.l.b16 %v391
        %v688 = vunpack.c.l.b16 %v392
        %v689 = vunpack.c.l.b16 %v393
        %v690 = vunpack.c.l.b16 %v394
        %v691 = vunpack.c.l.b16 %v395
        %v692 = vunpack.c.l.b16 %v396
        %v693 = vunpack.c.l.b16 %v397
        %v694 = vunpack.c.l.b16 %v398
        %v695 = vunpack.c.l.b16 %v399
        %v696 = vunpack.c.l.b16 %v400
        %v697 = vunpack.c.l.b16 %v401
        %v698 = vunpack.c.l.b16 %v402
        %v699 = vunpack.c.l.b16 %v403
        %v700 = vunpack.c.l.b16 %v404
        %v701 = vunpack.c.l.b16 %v405
        %v702 = vunpack.c.l.b16 %v406
        %v703 = vunpack.c.l.b16 %v407
        %v704 = vunpack.c.l.b16 %v408
        %v705 = vunpack.c.l.b16 %v409
        %v706 = vunpack.c.l.b16 %v410
        %v707 = vunpack.c.l.b16 %v411
        %v708 = vunpack.c.l.b16 %v412
        %v709 = vunpack.c.l.b16 %v413
        %v710 = vunpack.c.l.b16 %v414
        %v711 = vunpack.c.l.b16 %v415
        %v712 = vunpack.c.l.b16 %v416
        %v713 = vunpack.c.l.b16 %v417
        %v714 = vunpack.c.l.b16 %v418
        %v715 = vunpack.c.l.b16 %v419
        %v716 = vunpack.c.l.b16 %v420
        %v717 = vunpack.c.l.b16 %v421
        %v718 = vunpack.c.l.b16 %v422
        %v719 = vunpack.c.l.b16 %v423
        %v720 = vunpack.c.l.b16 %v424
        %v721 = vunpack.c.l.b16 %v425
        %v722 = vunpack.c.l.b16 %v426
        %v723 = vunpack.c.l.b16 %v427
        %v724 = vunpack.c.l.b16 %v428
        %v725 = vunpack.c.l.b16 %v429
        %v726 = vunpack.c.l.b16 %v430
        %v727 = vunpack.c.l.b16 %v431
        %v728 = vunpack.c.l.b16 %v432
        %v729 = vunpack.c.l.b16 %v433
        %v730 = vunpack.c.l.b16 %v434
        %v731 = vunpack.c.l.b16 %v435
        %v732 = vunpack.c.l.b16 %v436
        %v733 = vunpack.c.l.b16 %v437
        %v734 = vunpack.c.l.b16 %v438
        %v735 = vunpack.c.l.b16 %v439
        %v736 = vunpack.c.l.b16 %v440
        %v737 = vunpack.c.l.b16 %v441
        %v738 = vunpack.c.l.b16 %v442
        %v739 = vunpack.c.l.b16 %v443
        %v740 = vunpack.c.l.b16 %v444
        %v741 = vunpack.c.l.b16 %v445
        %v742 = vunpack.c.l.b16 %v446
        %v743 = vunpack.c.l.b16 %v447
        %v744 = vunpack.c.l.b16 %v448
        %v745 = vunpack.c.l.b16 %v449
        %v746 = vunpack.c.l.b16 %v450
        %v747 = vunpack.c.l.b16 %v451
        %v748 = vunpack.c.l.b16 %v452
        %v749 = vunpack.c.l.b16 %v453
        %v750 = vunpack.c.l.b16 %v454
        %v751 = vunpack.c.l.b16 %v455
        %v752 = vunpack.c.l.b16 %v456
        %v753 = vunpack.c.l.b16 %v457
        %v754 = vunpack.c.l.b16 %v458
        %v755 = vunpack.c.l.b16 %v459
        %v756 = vunpack.c.l.b16 %v460
        %v757 = vunpack.c.l.b16 %v461
        %v758 = vunpack.c.l.b16 %v462
        %v759 = vunpack.c.l.b16 %v463
        %v760 = vunpack.c.l.b16 %v464
        %v761 = vunpack.c.l.b16 %v465
        %v762 = vunpack.c.l.b16 %v466
        %v763 = vunpack.c.l.b16 %v467
        %v764 = vunpack.c.l.b16 %v468
        %v765 = vunpack.c.l.b16 %v469
        %v766 = vunpack.c.l.b16 %v470
        %v767 = vunpack.c.l.b16 %v471
        %v768 = vunpack.c.l.b16 %v472
        %v769 = vunpack.c.l.b16 %v473
        %v770 = vunpack.c.l.b16 %v474
        %v771 = vunpack.c.l.b16 %v475
        %v772 = vunpack.c.l.b16 %v476
        %v773 = vunpack.c.l.b16 %v477
        %v774 = vunpack.c.l.b16 %v478
        %v775 = vunpack.c.l.b16 %v479
        %v776 = vunpack.c.l.b16 %v480
        %v777 = vunpack.c.l.b16 %v481
        %v778 = vunpack.c.l.b16 %v482
        %v779 = vunpack.c.l.b16 %v483
        %v780 = vunpack.c.l.b16 %v484
        %v781 = vunpack.c.l.b16 %v485
        %v782 = vunpack.c.l.b16 %v486
        %v783 = vunpack.c.l.b16 %v487
        %v784 = vunpack.c.l.b16 %v488
        %v785 = vunpack.c.l.b16 %v489
        %v786 = vunpack.c.l.b16 %v490
        %v787 = vunpack.c.l.b16 %v491
        %v788 = vpack.c.b16 %v661, %v660
        %v789 = vpack.c.b16 %v663, %v662
        %v790 = vpack.c.b16 %v665, %v664
        %v791 = vpack.c.b16 %v667, %v666
        %v792 = vpack.c.b16 %v669, %v668
        %v793 = vpack.c.b16 %v671, %v670
        %v794 = vpack.c.b16 %v673, %v672
        %v795 = vpack.c.b16 %v675, %v674
        %v796 = vpack.c.b16 %v677, %v676
        %v797 = vpack.c.b16 %v679, %v678
        %v798 = vpack.c.b16 %v681, %v680
        %v799 = vpack.c.b16 %v683, %v682
        %v800 = vpack.c.b16 %v685, %v684
        %v801 = vpack.c.b16 %v687, %v686
        %v802 = vpack.c.b16 %v689, %v688
        %v803 = vpack.c.b16 %v691, %v690
        %v804 = vpack.c.b16 %v693, %v692
        %v805 = vpack.c.b16 %v695, %v694
        %v806 = vpack.c.b16 %v697, %v696
        %v807 = vpack.c.b16 %v699, %v698
        %v808 = vpack.c.b16 %v701, %v700
        %v809 = vpack.c.b16 %v703, %v702
        %v810 = vpack.c.b16 %v705, %v704
        %v811 = vpack.c.b16 %v707, %v706
        %v812 = vpack.c.b16 %v709, %v708
        %v813 = vpack.c.b16 %v711, %v710
        %v814 = vpack.c.b16 %v713, %v712
        %v815 = vpack.c.b16 %v715, %v714
        %v816 = vpack.c.b16 %v717, %v716
        %v817 = vpack.c.b16 %v719, %v718
        %v818 = vpack.c.b16 %v721, %v720
        %v819 = vpack.c.b16 %v723, %v722
        %v820 = vpack.c.b16 %v725, %v724
        %v821 = vpack.c.b16 %v727, %v726
        %v822 = vpack.c.b16 %v729, %v728
        %v823 = vpack.c.b16 %v731, %v730
        %v824 = vpack.c.b16 %v733, %v732
        %v825 = vpack.c.b16 %v735, %v734
        %v826 = vpack.c.b16 %v737, %v736
        %v827 = vpack.c.b16 %v739, %v738
        %v828 = vpack.c.b16 %v741, %v740
        %v829 = vpack.c.b16 %v743, %v742
        %v830 = vpack.c.b16 %v745, %v744
        %v831 = vpack.c.b16 %v747, %v746
        %v832 = vpack.c.b16 %v749, %v748
        %v833 = vpack.c.b16 %v751, %v750
        %v834 = vpack.c.b16 %v753, %v752
        %v835 = vpack.c.b16 %v755, %v754
        %v836 = vpack.c.b16 %v757, %v756
        %v837 = vpack.c.b16 %v759, %v758
        %v838 = vpack.c.b16 %v761, %v760
        %v839 = vpack.c.b16 %v763, %v762
        %v840 = vpack.c.b16 %v765, %v764
        %v841 = vpack.c.b16 %v767, %v766
        %v842 = vpack.c.b16 %v769, %v768
        %v843 = vpack.c.b16 %v771, %v770
        %v844 = vpack.c.b16 %v773, %v772
        %v845 = vpack.c.b16 %v775, %v774
        %v846 = vpack.c.b16 %v777, %v776
        %v847 = vpack.c.b16 %v779, %v778
        %v848 = vpack.c.b16 %v781, %v780
        %v849 = vpack.c.b16 %v783, %v782
        %v850 = vpack.c.b16 %v785, %v784
        %v851 = vpack.c.b16 %v787, %v786
        %916 = vmatpush.bf16.msra.mxu0 %v795
        %917 = vmatpush.bf16.msra.mxu0 %v794
        %918 = vmatpush.bf16.msra.mxu0 %v793
        %919 = vmatpush.bf16.msra.mxu0 %v792
        %920 = vmatpush.bf16.msra.mxu0 %v791
        %921 = vmatpush.bf16.msra.mxu0 %v790
        %922 = vmatpush.bf16.msra.mxu0 %v789
        %923 = vmatpush.bf16.msra.mxu0 %v788
        %924 = vmatmul.bf16.gmra.mxu0 %v516
        %v925 = vpop.f32.mrf.mxu0
        %v926 = vadd.f32 0.0, %v925
        %v927 = vpop.f32.mrf.mxu0
        %v928 = vadd.f32 0.0, %v927
        %929 = vdwg.mxu0
        %930 = vmatpush.bf16.msra.mxu0 %v803
        %931 = vmatpush.bf16.msra.mxu0 %v802
        %932 = vmatpush.bf16.msra.mxu0 %v801
        %933 = vmatpush.bf16.msra.mxu0 %v800
        %934 = vmatpush.bf16.msra.mxu0 %v799
        %935 = vmatpush.bf16.msra.mxu0 %v798
        %936 = vmatpush.bf16.msra.mxu0 %v797
        %937 = vmatpush.bf16.msra.mxu0 %v796
        %938 = vmatmul.bf16.gmra.mxu0 %v517
        %v939 = vpop.f32.mrf.mxu0
        %v940 = vadd.f32 %v926, %v939
        %v941 = vpop.f32.mrf.mxu0
        %v942 = vadd.f32 %v928, %v941
        %943 = vdwg.mxu0
        %944 = vmatpush.bf16.msra.mxu0 %v811
        %945 = vmatpush.bf16.msra.mxu0 %v810
        %946 = vmatpush.bf16.msra.mxu0 %v809
        %947 = vmatpush.bf16.msra.mxu0 %v808
        %948 = vmatpush.bf16.msra.mxu0 %v807
        %949 = vmatpush.bf16.msra.mxu0 %v806
        %950 = vmatpush.bf16.msra.mxu0 %v805
        %951 = vmatpush.bf16.msra.mxu0 %v804
        %952 = vmatmul.bf16.gmra.mxu0 %v518
        %v953 = vpop.f32.mrf.mxu0
        %v954 = vadd.f32 %v940, %v953
        %v955 = vpop.f32.mrf.mxu0
        %v956 = vadd.f32 %v942, %v955
        %957 = vdwg.mxu0
        %958 = vmatpush.bf16.msra.mxu0 %v819
        %959 = vmatpush.bf16.msra.mxu0 %v818
        %960 = vmatpush.bf16.msra.mxu0 %v817
        %961 = vmatpush.bf16.msra.mxu0 %v816
        %962 = vmatpush.bf16.msra.mxu0 %v815
        %963 = vmatpush.bf16.msra.mxu0 %v814
        %964 = vmatpush.bf16.msra.mxu0 %v813
        %965 = vmatpush.bf16.msra.mxu0 %v812
        %966 = vmatmul.bf16.gmra.mxu0 %v519
        %v967 = vpop.f32.mrf.mxu0
        %v968 = vadd.f32 %v954, %v967
        %v969 = vpop.f32.mrf.mxu0
        %v970 = vadd.f32 %v956, %v969
        %971 = vdwg.mxu0
        %972 = vmatpush.bf16.msra.mxu0 %v827
        %973 = vmatpush.bf16.msra.mxu0 %v826
        %974 = vmatpush.bf16.msra.mxu0 %v825
        %975 = vmatpush.bf16.msra.mxu0 %v824
        %976 = vmatpush.bf16.msra.mxu0 %v823
        %977 = vmatpush.bf16.msra.mxu0 %v822
        %978 = vmatpush.bf16.msra.mxu0 %v821
        %979 = vmatpush.bf16.msra.mxu0 %v820
        %980 = vmatmul.bf16.gmra.mxu0 %v520
        %v981 = vpop.f32.mrf.mxu0
        %v982 = vadd.f32 %v968, %v981
        %v983 = vpop.f32.mrf.mxu0
        %v984 = vadd.f32 %v970, %v983
        %985 = vdwg.mxu0
        %986 = vmatpush.bf16.msra.mxu0 %v835
        %987 = vmatpush.bf16.msra.mxu0 %v834
        %988 = vmatpush.bf16.msra.mxu0 %v833
        %989 = vmatpush.bf16.msra.mxu0 %v832
        %990 = vmatpush.bf16.msra.mxu0 %v831
        %991 = vmatpush.bf16.msra.mxu0 %v830
        %992 = vmatpush.bf16.msra.mxu0 %v829
        %993 = vmatpush.bf16.msra.mxu0 %v828
        %994 = vmatmul.bf16.gmra.mxu0 %v521
        %v995 = vpop.f32.mrf.mxu0
        %v996 = vadd.f32 %v982, %v995
        %v997 = vpop.f32.mrf.mxu0
        %v998 = vadd.f32 %v984, %v997
        %999 = vdwg.mxu0
        %1000 = vmatpush.bf16.msra.mxu0 %v843
        %1001 = vmatpush.bf16.msra.mxu0 %v842
        %1002 = vmatpush.bf16.msra.mxu0 %v841
        %1003 = vmatpush.bf16.msra.mxu0 %v840
        %1004 = vmatpush.bf16.msra.mxu0 %v839
        %1005 = vmatpush.bf16.msra.mxu0 %v838
        %1006 = vmatpush.bf16.msra.mxu0 %v837
        %1007 = vmatpush.bf16.msra.mxu0 %v836
        %1008 = vmatmul.bf16.gmra.mxu0 %v522
        %v1009 = vpop.f32.mrf.mxu0
        %v1010 = vadd.f32 %v996, %v1009
        %v1011 = vpop.f32.mrf.mxu0
        %v1012 = vadd.f32 %v998, %v1011
        %1013 = vdwg.mxu0
        %1014 = vmatpush.bf16.msra.mxu0 %v851
        %1015 = vmatpush.bf16.msra.mxu0 %v850
        %1016 = vmatpush.bf16.msra.mxu0 %v849
        %1017 = vmatpush.bf16.msra.mxu0 %v848
        %1018 = vmatpush.bf16.msra.mxu0 %v847
        %1019 = vmatpush.bf16.msra.mxu0 %v846
        %1020 = vmatpush.bf16.msra.mxu0 %v845
        %1021 = vmatpush.bf16.msra.mxu0 %v844
        %1022 = vmatmul.bf16.gmra.mxu0 %v523
        %v1023 = vpop.f32.mrf.mxu0
        %v1024 = vadd.f32 %v1010, %v1023
        %v1025 = vpop.f32.mrf.mxu0
        %v1026 = vadd.f32 %v1012, %v1025
        %1027 = vdwg.mxu0
        %v1028 = vadd.f32 %v362, %v1024
        %v1029 = vadd.f32 %v363, %v1026
        %vm1030 = vcmask 261120
        %1031 = vst.msk [vmem:[#allocation2] sm:$0xff] %vm1030, %v1028
        %1032 = vst.msk [vmem:[#allocation2 + $0x8] sm:$0xff] %vm1030, %v1029
        %p1033 = scmp.eq.s32.totalorder %s22, 1
        // Predicated region
        $region64: #{transformer_forward.39} parent=54 // pred_check
          %p1034 = pneg %p1033
        $region65: #{transformer_forward.39} parent=54 // pred_check_branch
          %1036 = sbr.rel (%p1034) target = $region67
        $region66: #{transformer_forward.39} parent=54 // pred_region
          %v1037 = vld [vmem:[#allocation2] sm:$0xff]
          %v1038 = vld [vmem:[#allocation2 + $0x8] sm:$0xff]
          %v1039 = vld [vmem:[%s328] sm:$0x1]
          %v1041 = vperm.slane %v1039, 0
          %v1043 = vadd.f32 %v1037, %v1041
          %v1044 = vadd.f32 %v1038, %v1041
          %v1045 = vld [vmem:[%s336] sm:$0xf]
          %v1046 = vld [vmem:[%s336 + $0x4] sm:$0xf]
          %v1047 = vunpack.c.l.bf16 %v1045
          %v1048 = vunpack.c.l.bf16 %v1046
          %v1049 = vadd.f32 %v1043, %v1047
          %v1050 = vadd.f32 %v1044, %v1048
          %v1051 = vpack.c.bf16 %v1049, %v1049
          %v1052 = vpack.c.bf16 %v1050, %v1050
          %vm1053 = vcmask 257024
          %1054 = vst.msk [vmem:[%s345] sm:$0xf] %vm1053, %v1051
          %1055 = vst.msk [vmem:[%s345 + $0x4] sm:$0xf] %vm1053, %v1052
        $region67: #{transformer_forward.39} parent=54 // pred_fallthru
          _
        %s1056 = smul.u32 2, %s20
        %p1057 = scmp.lt.s32.totalorder %s1056, 1
        %s1058 = scalar_select %p1057, %s1056, 1
        %p1059 = scmp.lt.s32.totalorder %s21, 0
        %s1060 = scalar_select %p1059, %s21, 0
        %s1061 = sadd.s32 %s1060, %s1058
        %s1062 = smul.addr %s1061, 4
        %s1063 = scalar_lea.vmem %s4, %s1062
        // Predicated region
        $region68: #{transformer_forward.39} parent=54 // pred_check
          %p1064 = pneg %p164
        $region69: #{transformer_forward.39} parent=54 // pred_check_branch
          %1066 = sbr.rel (%p1064) target = $region71
        $region70: #{transformer_forward.39} parent=54 // pred_region
          %s1067 = smul.u32 2, %s20
        $region71: #{transformer_forward.39} parent=54 // pred_fallthru
          _
        // Predicated region
        $region72: #{transformer_forward.39} parent=54 // pred_check
          %p1068 = pneg %p164
        $region73: #{transformer_forward.39} parent=54 // pred_check_branch
          %1070 = sbr.rel (%p1068) target = $region75
        $region74: #{transformer_forward.39} parent=54 // pred_region
          %s1071 = smul.u32 2, %s20
          %p1072 = scmp.lt.s32.totalorder %s1071, 1
          %s1073 = scalar_select %p1072, %s1071, 1
          %p1074 = scmp.lt.s32.totalorder %s21, 0
          %s1075 = scalar_select %p1074, %s21, 0
          %s1076 = sadd.s32 %s1075, %s1073
          %s1077 = smul.addr %s1076, 4
          %s1078 = scalar_lea.vmem %s4, %s1077
        $region75: #{transformer_forward.39} parent=54 // pred_fallthru
          _
      $region55: #{transformer_forward.39} parent=5 // pred_fallthru
        _
      %p1079 = scmp.le.s32.totalorder 2, %s10
      // Predicated region
      $region76: #{transformer_forward.39} parent=5 // pred_check
        %p1080 = pneg %p1079
      $region77: #{transformer_forward.39} parent=5 // pred_check_branch
        %1082 = sbr.rel (%p1080) target = $region79
      $region78: #{transformer_forward.39} parent=5 // pred_region
        %s1083 = ssub.s32 %s10, 2
      $region79: #{transformer_forward.39} parent=5 // pred_fallthru
        _
    $region6: #{transformer_forward.39} parent=1 // loop_footer
      %s14 = sadd.s32 1, %s10
    $region7: #{transformer_forward.39} parent=1 // loop_footer_branch
      %9 = sbr.rel target = $region3
    $region8: #{transformer_forward.39} parent=1 // loop_exit
      _

// kernel: transformer_forward.51
$region0: #{transformer_forward.51}
  #allocation0 [shape = 'u32[]', space=smem, size = 0x4, offset = 0x4, fixed_abs, tag = 'smem constant byte address 0x4 - core index']
  #allocation1 [shape = 'u32[72,128]{1,0:T(1,128)}', space=vmem, size = 0x9000, scoped, tag = 'internal scratch']
  #allocation2 [shape = 'f32[16,64]{1,0:T(8,128)}', space=vmem, size = 0x2000, scoped, tag = 'scratch operand']
  %s0 = inlined_call_operand.vmem [shape: bf16[16,32], index: 0, kind: input, shape index: {}]
  %s1 = inlined_call_operand.vmem [shape: bf16[32,64], index: 1, kind: input, shape index: {}]
  %s2 = inlined_call_operand.vmem [shape: f32[1,64], index: 2, kind: input, shape index: {}]
  %s3 = inlined_call_operand.vmem [shape: bf16[16,64], index: 3, kind: output, shape index: {}]
  %s4 = sld [smem:[#allocation0]]
  $region30: #{transformer_forward.51} parent=0
    _
  %s6 = ssub.s32 1, %s4
  %s7 = scalar_select 0, %s6, %s4
  // Predicated region
  $region2: #{transformer_forward.51} parent=0 // pred_check
    _
  $region3: #{transformer_forward.51} parent=0 // pred_check_branch
    %9 = sbr.rel (0) target = $region5
  $region4: #{transformer_forward.51} parent=0 // pred_region
    _
  $region5: #{transformer_forward.51} parent=0 // pred_fallthru
    _
  // Predicated region
  $region6: #{transformer_forward.51} parent=0 // pred_check
    _
  $region7: #{transformer_forward.51} parent=0 // pred_check_branch
    %11 = sbr.rel (0) target = $region9
  $region8: #{transformer_forward.51} parent=0 // pred_region
    _
  $region9: #{transformer_forward.51} parent=0 // pred_fallthru
    _
  // Predicated region
  $region10: #{transformer_forward.51} parent=0 // pred_check
    _
  $region11: #{transformer_forward.51} parent=0 // pred_check_branch
    %13 = sbr.rel (0) target = $region13
  $region12: #{transformer_forward.51} parent=0 // pred_region
    _
  $region13: #{transformer_forward.51} parent=0 // pred_fallthru
    _
  %p15 = scmp.eq.s32.totalorder 0, 0
  // Predicated region
  $region14: #{transformer_forward.51} parent=0 // pred_check
    %p16 = pneg %p15
  $region15: #{transformer_forward.51} parent=0 // pred_check_branch
    %18 = sbr.rel (%p16) target = $region17
  $region16: #{transformer_forward.51} parent=0 // pred_region
    %vm19 = vcmask 523264
    %20 = vst.msk [vmem:[#allocation2] sm:$0xff] %vm19, 0.0
    %21 = vst.msk [vmem:[#allocation2 + $0x8] sm:$0xff] %vm19, 0.0
  $region17: #{transformer_forward.51} parent=0 // pred_fallthru
    _
  %v22 = vld [vmem:[%s0] sm:$0xf]
  %v23 = vld [vmem:[%s0 + $0x4] sm:$0xf]
  %v24 = vld [vmem:[#allocation2] sm:$0xff]
  %v25 = vld [vmem:[#allocation2 + $0x8] sm:$0xff]
  %v26 = vld [vmem:[%s1] sm:$0xf]
  %v27 = vld [vmem:[%s1 + $0x4] sm:$0xf]
  %v28 = vld [vmem:[%s1 + $0x8] sm:$0xf]
  %v29 = vld [vmem:[%s1 + $0xc] sm:$0xf]
  %v32 = vunpack.c.l.b16 %v22
  %v33 = vunpack.c.l.b16 %v23
  %v34 = vpack.c.b16 %v33, %v32
  %v39 = vunpack.c.l.b16 %v26
  %v40 = vunpack.c.l.b16 %v27
  %v41 = vunpack.c.l.b16 %v28
  %v42 = vunpack.c.l.b16 %v29
  %v43 = vpack.c.b16 %v40, %v39
  %v44 = vpack.c.b16 %v42, %v41
  %vm47 = vcmask 261120
  %v49 = vsel %vm47, %v34, 0
  %51 = vmatpush.bf16.msra.mxu0 0
  %52 = vmatpush.bf16.msra.mxu0 0
  %53 = vmatpush.bf16.msra.mxu0 0
  %54 = vmatpush.bf16.msra.mxu0 0
  %55 = vmatpush.bf16.msra.mxu0 0
  %56 = vmatpush.bf16.msra.mxu0 0
  %57 = vmatpush.bf16.msra.mxu0 %v44
  %58 = vmatpush.bf16.msra.mxu0 %v43
  %59 = vmatmul.bf16.gmra.mxu0 %v49
  %v60 = vpop.f32.mrf.mxu0
  %v61 = vadd.f32 0.0, %v60
  %v62 = vpop.f32.mrf.mxu0
  %v63 = vadd.f32 0.0, %v62
  %64 = vdwg.mxu0
  %v65 = vadd.f32 %v24, %v61
  %v66 = vadd.f32 %v25, %v63
  %vm67 = vcmask 523264
  %68 = vst.msk [vmem:[#allocation2] sm:$0xff] %vm67, %v65
  %69 = vst.msk [vmem:[#allocation2 + $0x8] sm:$0xff] %vm67, %v66
  // Predicated region
  $region18: #{transformer_forward.51} parent=0 // pred_check
    %p70 = pneg %p15
  $region19: #{transformer_forward.51} parent=0 // pred_check_branch
    %72 = sbr.rel (%p70) target = $region21
  $region20: #{transformer_forward.51} parent=0 // pred_region
    %v73 = vld [vmem:[#allocation2] sm:$0xff]
    %v74 = vld [vmem:[#allocation2 + $0x8] sm:$0xff]
    %v75 = vld [vmem:[%s2] sm:$0x1]
    %v77 = vperm.slane %v75, 0
    %v79 = vadd.f32 %v73, %v77
    %v80 = vadd.f32 %v74, %v77
    %v81 = vpack.c.bf16 %v79, %v79
    %v82 = vpack.c.bf16 %v80, %v80
    %vm83 = vcmask 519168
    %84 = vst.msk [vmem:[%s3] sm:$0xf] %vm83, %v81
    %85 = vst.msk [vmem:[%s3 + $0x4] sm:$0xf] %vm83, %v82
  $region21: #{transformer_forward.51} parent=0 // pred_fallthru
    _
  // Predicated region
  $region22: #{transformer_forward.51} parent=0 // pred_check
    _
  $region23: #{transformer_forward.51} parent=0 // pred_check_branch
    %87 = sbr.rel (0) target = $region25
  $region24: #{transformer_forward.51} parent=0 // pred_region
    _
  $region25: #{transformer_forward.51} parent=0 // pred_fallthru
    _
  // Predicated region
  $region26: #{transformer_forward.51} parent=0 // pred_check
    _
  $region27: #{transformer_forward.51} parent=0 // pred_check_branch
    %89 = sbr.rel (0) target = $region29
  $region28: #{transformer_forward.51} parent=0 // pred_region
    _
  $region29: #{transformer_forward.51} parent=0 // pred_fallthru
    _

// kernel: transformer_forward.50
$region0: #{transformer_forward.50}
  #allocation0 [shape = 'u32[]', space=smem, size = 0x4, offset = 0x4, fixed_abs, tag = 'smem constant byte address 0x4 - core index']
  #allocation1 [shape = 'u32[72,128]{1,0:T(1,128)}', space=vmem, size = 0x9000, scoped, tag = 'internal scratch']
  #allocation2 [shape = 'f32[16,32]{1,0:T(8,128)}', space=vmem, size = 0x2000, scoped, tag = 'scratch operand']
  %s0 = inlined_call_operand.vmem [shape: bf16[16,32], index: 0, kind: input, shape index: {}]
  %s1 = inlined_call_operand.vmem [shape: bf16[32,32], index: 1, kind: input, shape index: {}]
  %s2 = inlined_call_operand.vmem [shape: f32[1,32], index: 2, kind: input, shape index: {}]
  %s3 = inlined_call_operand.vmem [shape: f32[1,32], index: 3, kind: input, shape index: {}]
  %s4 = inlined_call_operand.vmem [shape: f32[1,32], index: 4, kind: input, shape index: {}]
  %s5 = inlined_call_operand.vmem [shape: bf16[16,32], index: 5, kind: output, shape index: {}]
  %s6 = sld [smem:[#allocation0]]
  $region38: #{transformer_forward.50} parent=0
    _
  %s8 = ssub.s32 1, %s6
  %s9 = scalar_select 0, %s8, %s6
  // Predicated region
  $region2: #{transformer_forward.50} parent=0 // pred_check
    _
  $region3: #{transformer_forward.50} parent=0 // pred_check_branch
    %11 = sbr.rel (0) target = $region5
  $region4: #{transformer_forward.50} parent=0 // pred_region
    _
  $region5: #{transformer_forward.50} parent=0 // pred_fallthru
    _
  // Predicated region
  $region6: #{transformer_forward.50} parent=0 // pred_check
    _
  $region7: #{transformer_forward.50} parent=0 // pred_check_branch
    %13 = sbr.rel (0) target = $region9
  $region8: #{transformer_forward.50} parent=0 // pred_region
    _
  $region9: #{transformer_forward.50} parent=0 // pred_fallthru
    _
  // Predicated region
  $region10: #{transformer_forward.50} parent=0 // pred_check
    _
  $region11: #{transformer_forward.50} parent=0 // pred_check_branch
    %15 = sbr.rel (0) target = $region13
  $region12: #{transformer_forward.50} parent=0 // pred_region
    _
  $region13: #{transformer_forward.50} parent=0 // pred_fallthru
    _
  // Predicated region
  $region14: #{transformer_forward.50} parent=0 // pred_check
    _
  $region15: #{transformer_forward.50} parent=0 // pred_check_branch
    %17 = sbr.rel (0) target = $region17
  $region16: #{transformer_forward.50} parent=0 // pred_region
    _
  $region17: #{transformer_forward.50} parent=0 // pred_fallthru
    _
  // Predicated region
  $region18: #{transformer_forward.50} parent=0 // pred_check
    _
  $region19: #{transformer_forward.50} parent=0 // pred_check_branch
    %19 = sbr.rel (0) target = $region21
  $region20: #{transformer_forward.50} parent=0 // pred_region
    _
  $region21: #{transformer_forward.50} parent=0 // pred_fallthru
    _
  %p21 = scmp.eq.s32.totalorder 0, 0
  // Predicated region
  $region22: #{transformer_forward.50} parent=0 // pred_check
    %p22 = pneg %p21
  $region23: #{transformer_forward.50} parent=0 // pred_check_branch
    %24 = sbr.rel (%p22) target = $region25
  $region24: #{transformer_forward.50} parent=0 // pred_region
    %vm25 = vcmask 261120
    %26 = vst.msk [vmem:[#allocation2] sm:$0xff] %vm25, 0.0
    %27 = vst.msk [vmem:[#allocation2 + $0x8] sm:$0xff] %vm25, 0.0
  $region25: #{transformer_forward.50} parent=0 // pred_fallthru
    _
  %v28 = vld [vmem:[%s0] sm:$0xf]
  %v29 = vld [vmem:[%s0 + $0x4] sm:$0xf]
  %v30 = vunpack.c.l.bf16 %v28
  %v31 = vunpack.c.l.bf16 %v29
  %vm32 = vcmask 261120
  %v33 = vsel %vm32, %v30, 0.0
  %34 = vadd.xlane.f32.xlu0 %v33
  %v35 = vpop.xlane.xlu0 %34
  %v36 = vsel %vm32, %v31, 0.0
  %37 = vadd.xlane.f32.xlu0 %v36
  %v38 = vpop.xlane.xlu0 %37
  %v39 = vrcp.pop 32.0
  %v40 = vmul.f32 32.0, %v39
  %v41 = vsub.f32 1.0, %v40
  %v42 = vmul.f32 %v39, %v41
  %v43 = vadd.f32 %v39, %v42
  %vm44 = vweird.f32 %v39
  %v45 = vsel %vm44, %v39, %v43
  %v46 = vmul.f32 %v35, %v45
  %v47 = vmul.f32 %v38, %v45
  %v48 = vsub.f32 %v30, %v46
  %v49 = vsub.f32 %v31, %v47
  %v50 = vmul.f32 %v48, %v48
  %v51 = vmul.f32 %v49, %v49
  %v52 = vsel %vm32, %v50, 0.0
  %53 = vadd.xlane.f32.xlu0 %v52
  %v54 = vpop.xlane.xlu0 %53
  %v55 = vsel %vm32, %v51, 0.0
  %56 = vadd.xlane.f32.xlu0 %v55
  %v57 = vpop.xlane.xlu0 %56
  %v58 = vrcp.pop 31.0
  %v59 = vmul.f32 31.0, %v58
  %v60 = vsub.f32 1.0, %v59
  %v61 = vmul.f32 %v58, %v60
  %v62 = vadd.f32 %v58, %v61
  %vm63 = vweird.f32 %v58
  %v64 = vsel %vm63, %v58, %v62
  %v65 = vmul.f32 %v54, %v64
  %v66 = vmul.f32 %v57, %v64
  %v67 = vrsqrt.pop %v65
  %v68 = vmul.f32 %v67, %v65
  %v69 = vmul.f32 %v68, %v67
  %v70 = vmul.f32 0.5, %v69
  %v71 = vsub.f32 1.5, %v70
  %v72 = vmul.f32 %v67, %v71
  %v73 = vmul.f32 %v65, %v72
  %vm74 = vcmp.eq.f32.partialorder %v65, inf
  %v75 = vsel %vm74, %v65, %v73
  %vm76 = vcmp.eq.f32.partialorder %v65, 0.0
  %v77 = vand.u32 %v65, 2147483648
  %v78 = vsel %vm76, %v77, %v75
  %v79 = vrsqrt.pop %v66
  %v80 = vmul.f32 %v79, %v66
  %v81 = vmul.f32 %v80, %v79
  %v82 = vmul.f32 0.5, %v81
  %v83 = vsub.f32 1.5, %v82
  %v84 = vmul.f32 %v79, %v83
  %v85 = vmul.f32 %v66, %v84
  %vm86 = vcmp.eq.f32.partialorder %v66, inf
  %v87 = vsel %vm86, %v66, %v85
  %vm88 = vcmp.eq.f32.partialorder %v66, 0.0
  %v89 = vand.u32 %v66, 2147483648
  %v90 = vsel %vm88, %v89, %v87
  %v91 = vadd.f32 %v78, 1e-06
  %v92 = vadd.f32 %v90, 1e-06
  %v93 = vrcp.pop %v91
  %v94 = vrcp.pop %v92
  %v95 = vld [vmem:[%s3] sm:$0x1]
  %v97 = vperm.slane %v95, 0
  %v99 = vmul.f32 %v97, %v48
  %v100 = vmul.f32 %v97, %v49
  %v101 = vmul.f32 %v99, %v93
  %v102 = vmul.f32 %v100, %v94
  %v103 = vld [vmem:[%s4] sm:$0x1]
  %v105 = vperm.slane %v103, 0
  %v107 = vadd.f32 %v101, %v105
  %v108 = vadd.f32 %v102, %v105
  %v109 = vpack.c.bf16 %v108, %v107
  %v110 = vld [vmem:[#allocation2] sm:$0xff]
  %v111 = vld [vmem:[#allocation2 + $0x8] sm:$0xff]
  %v112 = vld [vmem:[%s1] sm:$0xf]
  %v113 = vld [vmem:[%s1 + $0x4] sm:$0xf]
  %v114 = vld [vmem:[%s1 + $0x8] sm:$0xf]
  %v115 = vld [vmem:[%s1 + $0xc] sm:$0xf]
  %v120 = vunpack.c.l.b16 %v112
  %v121 = vunpack.c.l.b16 %v113
  %v122 = vunpack.c.l.b16 %v114
  %v123 = vunpack.c.l.b16 %v115
  %v124 = vpack.c.b16 %v121, %v120
  %v125 = vpack.c.b16 %v123, %v122
  %v129 = vsel %vm32, %v109, 0
  %131 = vmatpush.bf16.msra.mxu0 0
  %132 = vmatpush.bf16.msra.mxu0 0
  %133 = vmatpush.bf16.msra.mxu0 0
  %134 = vmatpush.bf16.msra.mxu0 0
  %135 = vmatpush.bf16.msra.mxu0 0
  %136 = vmatpush.bf16.msra.mxu0 0
  %137 = vmatpush.bf16.msra.mxu0 %v125
  %138 = vmatpush.bf16.msra.mxu0 %v124
  %139 = vmatmul.bf16.gmra.mxu0 %v129
  %v140 = vpop.f32.mrf.mxu0
  %v141 = vadd.f32 0.0, %v140
  %v142 = vpop.f32.mrf.mxu0
  %v143 = vadd.f32 0.0, %v142
  %144 = vdwg.mxu0
  %v145 = vadd.f32 %v110, %v141
  %v146 = vadd.f32 %v111, %v143
  %147 = vst.msk [vmem:[#allocation2] sm:$0xff] %vm32, %v145
  %148 = vst.msk [vmem:[#allocation2 + $0x8] sm:$0xff] %vm32, %v146
  // Predicated region
  $region26: #{transformer_forward.50} parent=0 // pred_check
    %p149 = pneg %p21
  $region27: #{transformer_forward.50} parent=0 // pred_check_branch
    %151 = sbr.rel (%p149) target = $region29
  $region28: #{transformer_forward.50} parent=0 // pred_region
    %v152 = vld [vmem:[#allocation2] sm:$0xff]
    %v153 = vld [vmem:[#allocation2 + $0x8] sm:$0xff]
    %v154 = vld [vmem:[%s2] sm:$0x1]
    %v156 = vperm.slane %v154, 0
    %v158 = vadd.f32 %v152, %v156
    %v159 = vadd.f32 %v153, %v156
    %v160 = vpack.c.bf16 %v158, %v158
    %v161 = vpack.c.bf16 %v159, %v159
    %vm162 = vcmask 257024
    %163 = vst.msk [vmem:[%s5] sm:$0xf] %vm162, %v160
    %164 = vst.msk [vmem:[%s5 + $0x4] sm:$0xf] %vm162, %v161
  $region29: #{transformer_forward.50} parent=0 // pred_fallthru
    _
  // Predicated region
  $region30: #{transformer_forward.50} parent=0 // pred_check
    _
  $region31: #{transformer_forward.50} parent=0 // pred_check_branch
    %166 = sbr.rel (0) target = $region33
  $region32: #{transformer_forward.50} parent=0 // pred_region
    _
  $region33: #{transformer_forward.50} parent=0 // pred_fallthru
    _
  // Predicated region
  $region34: #{transformer_forward.50} parent=0 // pred_check
    _
  $region35: #{transformer_forward.50} parent=0 // pred_check_branch
    %168 = sbr.rel (0) target = $region37
  $region36: #{transformer_forward.50} parent=0 // pred_region
    _
  $region37: #{transformer_forward.50} parent=0 // pred_fallthru
    _

// kernel: transformer_forward.48
$region0: #{transformer_forward.48}
  #allocation0 [shape = 'u32[]', space=smem, size = 0x4, offset = 0x4, fixed_abs, tag = 'smem constant byte address 0x4 - core index']
  #allocation1 [shape = 'u32[72,128]{1,0:T(1,128)}', space=vmem, size = 0x9000, scoped, tag = 'internal scratch']
  %s0 = inlined_call_operand.vmem [shape: bf16[2,8,96], index: 0, kind: input, shape index: {}]
  %s1 = inlined_call_operand.vmem [shape: f32[2,8,8], index: 1, kind: input, shape index: {}]
  %s2 = inlined_call_operand.vmem [shape: bf16[2,8,32], index: 2, kind: output, shape index: {}]
  %s3 = sld [smem:[#allocation0]]
  $region41: #{transformer_forward.48} parent=0
    _
  %s5 = ssub.s32 1, %s3
  %s6 = scalar_select 0, %s5, %s3
  loop: start=0, step=1, limit=4
  $region2: #{transformer_forward.48} parent=0 // loop_pre_header
    _
  $region3: #{transformer_forward.48} parent=0 // loop_header
    %s8 = sphi 0, %s12
    %p9 = scmp.ge.s32.totalorder %s8, 4
    %s18 = sphi 0, %s20
    %s21 = sphi 0, %s18
    %s22 = sphi 0, %s21
    %s38 = sphi 0, %s22
    %s44 = sphi 0, %s46
    %s47 = sphi 0, %s44
    %s48 = sphi 0, %s47
    %s64 = sphi 0, %s48
    %s70 = sphi 0, %s72
    %s73 = sphi 0, %s70
    %s74 = sphi 0, %s73
    %s90 = sphi 0, %s74
  $region4: #{transformer_forward.48} parent=0 // loop_header_branch
    %11 = sbr.rel (%p9) target = $region8
  $region5: #{transformer_forward.48} parent=0 // loop_body
    %s13 = ssub.s32 %s8, 1
    %s14 = ssub.s32 %s8, 2
    %s15 = sadd.s32 %s8, 1
    %s16 = ssub.s32 %s8, %s15
    %p17 = scmp.eq.s32.totalorder %s16, 0
    %s19 = sadd.s32 %s18, 1
    %s20 = scalar_select %p17, %s18, %s19
    %p23 = pneg %p17
    %p24 = scmp.eq.s32.totalorder %s8, 1
    %p25 = por %p23, %p24
    %p26 = scmp.ne.s32.totalorder %s18, %s21
    %p27 = scmp.eq.s32.totalorder %s8, 0
    %p28 = por %p26, %p27
    %p29 = scmp.ne.s32.totalorder %s18, %s21
    %p30 = scmp.eq.s32.totalorder %s13, 1
    %p31 = por %p29, %p30
    %p32 = scmp.ne.s32.totalorder %s21, %s22
    %p33 = scmp.eq.s32.totalorder %s13, 0
    %p34 = por %p32, %p33
    %p35 = scmp.ne.s32.totalorder %s21, %s22
    %p36 = scmp.eq.s32.totalorder %s14, 1
    %p37 = por %p35, %p36
    %p39 = scmp.ne.s32.totalorder %s22, %s38
    %p40 = scmp.eq.s32.totalorder %s14, 0
    %p41 = por %p39, %p40
    %s42 = ssub.s32 %s8, %s15
    %p43 = scmp.eq.s32.totalorder %s42, 0
    %s45 = sadd.s32 %s44, 1
    %s46 = scalar_select %p43, %s44, %s45
    %p49 = pneg %p43
    %p50 = scmp.eq.s32.totalorder %s8, 1
    %p51 = por %p49, %p50
    %p52 = scmp.ne.s32.totalorder %s44, %s47
    %p53 = scmp.eq.s32.totalorder %s8, 0
    %p54 = por %p52, %p53
    %p55 = scmp.ne.s32.totalorder %s44, %s47
    %p56 = scmp.eq.s32.totalorder %s13, 1
    %p57 = por %p55, %p56
    %p58 = scmp.ne.s32.totalorder %s47, %s48
    %p59 = scmp.eq.s32.totalorder %s13, 0
    %p60 = por %p58, %p59
    %p61 = scmp.ne.s32.totalorder %s47, %s48
    %p62 = scmp.eq.s32.totalorder %s14, 1
    %p63 = por %p61, %p62
    %p65 = scmp.ne.s32.totalorder %s48, %s64
    %p66 = scmp.eq.s32.totalorder %s14, 0
    %p67 = por %p65, %p66
    %s68 = ssub.s32 %s8, %s15
    %p69 = scmp.eq.s32.totalorder %s68, 0
    %s71 = sadd.s32 %s70, 1
    %s72 = scalar_select %p69, %s70, %s71
    %p75 = pneg %p69
    %p76 = scmp.eq.s32.totalorder %s8, 1
    %p77 = por %p75, %p76
    %p78 = scmp.ne.s32.totalorder %s70, %s73
    %p79 = scmp.eq.s32.totalorder %s8, 0
    %p80 = por %p78, %p79
    %p81 = scmp.ne.s32.totalorder %s70, %s73
    %p82 = scmp.eq.s32.totalorder %s13, 1
    %p83 = por %p81, %p82
    %p84 = scmp.ne.s32.totalorder %s73, %s74
    %p85 = scmp.eq.s32.totalorder %s13, 0
    %p86 = por %p84, %p85
    %p87 = scmp.ne.s32.totalorder %s73, %s74
    %p88 = scmp.eq.s32.totalorder %s14, 1
    %p89 = por %p87, %p88
    %p91 = scmp.ne.s32.totalorder %s74, %s90
    %p92 = scmp.eq.s32.totalorder %s14, 0
    %p93 = por %p91, %p92
    %p94 = scmp.le.s32.totalorder 1, %s8
    %p95 = scmp.lt.s32.totalorder %s8, 3
    %p96 = pnand %p94, %p95
    %p97 = pneg %p96
    // Predicated region
    $region9: #{transformer_forward.48} parent=5 // pred_check
      _
    $region10: #{transformer_forward.48} parent=5 // pred_check_branch
      %99 = sbr.rel (%p96) target = $region12
    $region11: #{transformer_forward.48} parent=5 // pred_region
      %s100 = ssub.s32 %s8, 1
    $region12: #{transformer_forward.48} parent=5 // pred_fallthru
      _
    %p101 = scmp.lt.s32.totalorder %s8, 2
    // Predicated region
    $region13: #{transformer_forward.48} parent=5 // pred_check
      %p102 = pneg %p101
    $region14: #{transformer_forward.48} parent=5 // pred_check_branch
      %104 = sbr.rel (%p102) target = $region16
    $region15: #{transformer_forward.48} parent=5 // pred_region
      // Predicated region
      $region17: #{transformer_forward.48} parent=15 // pred_check
        %p105 = pneg %p28
      $region18: #{transformer_forward.48} parent=15 // pred_check_branch
        %107 = sbr.rel (%p105) target = $region20
      $region19: #{transformer_forward.48} parent=15 // pred_region
        %p108 = scmp.lt.s32.totalorder %s8, 1
        %s109 = scalar_select %p108, %s8, 1
        %s110 = smul.addr %s109, 4
        %s111 = scalar_lea.vmem %s0, %s110
      $region20: #{transformer_forward.48} parent=15 // pred_fallthru
        _
      // Predicated region
      $region21: #{transformer_forward.48} parent=15 // pred_check
        %p112 = pneg %p54
      $region22: #{transformer_forward.48} parent=15 // pred_check_branch
        %114 = sbr.rel (%p112) target = $region24
      $region23: #{transformer_forward.48} parent=15 // pred_region
        %p115 = scmp.lt.s32.totalorder %s8, 1
        %s116 = scalar_select %p115, %s8, 1
        %s117 = smul.addr %s116, 8
        %s118 = scalar_lea.vmem %s1, %s117
      $region24: #{transformer_forward.48} parent=15 // pred_fallthru
        _
    $region16: #{transformer_forward.48} parent=5 // pred_fallthru
      _
    %p119 = scmp.le.s32.totalorder 1, %s8
    %p120 = scmp.lt.s32.totalorder %s8, 3
    %p121 = pnand %p119, %p120
    %p122 = pneg %p121
    // Predicated region
    $region25: #{transformer_forward.48} parent=5 // pred_check
      _
    $region26: #{transformer_forward.48} parent=5 // pred_check_branch
      %124 = sbr.rel (%p121) target = $region28
    $region27: #{transformer_forward.48} parent=5 // pred_region
      %s125 = ssub.s32 %s8, 1
      %p126 = scmp.lt.s32.totalorder %s13, 1
      %s127 = scalar_select %p126, %s13, 1
      %s128 = smul.addr %s127, 4
      %s129 = scalar_lea.vmem %s0, %s128
      %p130 = pneg %p34
      %p131 = pneg %p31
      %p132 = scmp.lt.s32.totalorder %s13, 1
      %s133 = scalar_select %p132, %s13, 1
      %s134 = smul.addr %s133, 8
      %s135 = scalar_lea.vmem %s1, %s134
      %p136 = pneg %p60
      %p137 = pneg %p57
      %p138 = pneg %p86
      %p139 = pneg %p83
      %p140 = scmp.lt.s32.totalorder %s13, 1
      %s141 = scalar_select %p140, %s13, 1
      %s142 = smul.addr %s141, 4
      %s143 = scalar_lea.vmem %s2, %s142
      %p144 = scmp.lt.s32.totalorder %s13, 1
      %s145 = scalar_select %p144, %s13, 1
      %s146 = smul.addr %s145, 4
      %s147 = scalar_lea.vmem %s0, %s146
      %p148 = scmp.lt.s32.totalorder %s13, 1
      %s149 = scalar_select %p148, %s13, 1
      %s150 = smul.addr %s149, 8
      %s151 = scalar_lea.vmem %s1, %s150
      %p152 = scmp.lt.s32.totalorder %s13, 1
      %s153 = scalar_select %p152, %s13, 1
      %s154 = smul.addr %s153, 4
      %s155 = scalar_lea.vmem %s2, %s154
      %v157 = vld [vmem:[%s147] sm:$0xf]
      %v158 = vld [vmem:[%s151] sm:$0xff]
      %vm159 = vcmp.eq.f32.partialorder %v158, 0.0
      %v160 = vsel %vm159, -1e+09, 0.0
      %v162 = vunpack.c.l.b16 %v157
      %v163 = vpack.c.b16 %v162, %v162
      %164 = vrot.lane.b32.xlu0 %v163, 96
      %v165 = vpop.permute.xlu0 %164
      %vm166 = vcmask 64512
      %v168 = vsel %vm166, %v157, 0
      %v171 = vsel %vm166, %v165, 0
      %173 = vmatpush.bf16.xpose.msra.mxu0 0
      %174 = vmatpush.bf16.xpose.msra.mxu0 0
      %175 = vmatpush.bf16.xpose.msra.mxu0 0
      %176 = vmatpush.bf16.xpose.msra.mxu0 0
      %177 = vmatpush.bf16.xpose.msra.mxu0 0
      %178 = vmatpush.bf16.xpose.msra.mxu0 0
      %179 = vmatpush.bf16.xpose.msra.mxu0 0
      %180 = vmatpush.bf16.xpose.msra.mxu0 %v171
      %181 = vmatmul.bf16.gmra.mxu0 %v168
      %v182 = vpop.f32.mrf.mxu0
      %v183 = vadd.f32 0.0, %v182
      %v184 = vpop.f32.mrf.mxu0
      %185 = vdwg.mxu0
      %v186 = vmul.f32 %v183, 0.35355338
      %v187 = vadd.f32 %v186, %v160
      %v188 = vsel %vm166, %v187, -inf
      %189 = vmax.xlane.f32.xlu0 %v188
      %v190 = vpop.xlane.xlu0 %189
      %v191 = vsub.f32 %v187, %v190
      %v192 = vmul.f32 %v191, 1.442695
      %v193 = vpow.pop %v192
      %v194 = vsel %vm166, %v193, 0.0
      %195 = vadd.xlane.f32.xlu0 %v194
      %v196 = vpop.xlane.xlu0 %195
      %v197 = vrcp.pop %v196
      %v198 = vmul.f32 %v193, %v197
      %v199 = vpack.c.bf16 %v198, %v198
      %200 = vrot.lane.b32.xlu0 %v163, 64
      %v201 = vpop.permute.xlu0 %200
      %v203 = vsel %vm166, %v199, 0
      %vm205 = vcmask 1043456
      %v207 = vsel %vm205, %v201, 0
      %209 = vmatpush.bf16.msra.mxu0 0
      %210 = vmatpush.bf16.msra.mxu0 0
      %211 = vmatpush.bf16.msra.mxu0 0
      %212 = vmatpush.bf16.msra.mxu0 0
      %213 = vmatpush.bf16.msra.mxu0 0
      %214 = vmatpush.bf16.msra.mxu0 0
      %215 = vmatpush.bf16.msra.mxu0 0
      %216 = vmatpush.bf16.msra.mxu0 %v207
      %217 = vmatmul.bf16.gmra.mxu0 %v203
      %v218 = vpop.f32.mrf.mxu0
      %v219 = vadd.f32 0.0, %v218
      %v220 = vpop.f32.mrf.mxu0
      %221 = vdwg.mxu0
      %222 = vrot.lane.b32.xlu0 %v163, 120
      %v223 = vpop.permute.xlu0 %222
      %224 = vrot.lane.b32.xlu0 %v163, 88
      %v225 = vpop.permute.xlu0 %224
      %v227 = vsel %vm166, %v223, 0
      %v230 = vsel %vm166, %v225, 0
      %232 = vmatpush.bf16.xpose.msra.mxu0 0
      %233 = vmatpush.bf16.xpose.msra.mxu0 0
      %234 = vmatpush.bf16.xpose.msra.mxu0 0
      %235 = vmatpush.bf16.xpose.msra.mxu0 0
      %236 = vmatpush.bf16.xpose.msra.mxu0 0
      %237 = vmatpush.bf16.xpose.msra.mxu0 0
      %238 = vmatpush.bf16.xpose.msra.mxu0 0
      %239 = vmatpush.bf16.xpose.msra.mxu0 %v230
      %240 = vmatmul.bf16.gmra.mxu0 %v227
      %v241 = vpop.f32.mrf.mxu0
      %v242 = vadd.f32 0.0, %v241
      %v243 = vpop.f32.mrf.mxu0
      %244 = vdwg.mxu0
      %v245 = vmul.f32 %v242, 0.35355338
      %v246 = vadd.f32 %v245, %v160
      %v247 = vsel %vm166, %v246, -inf
      %248 = vmax.xlane.f32.xlu0 %v247
      %v249 = vpop.xlane.xlu0 %248
      %v250 = vsub.f32 %v246, %v249
      %v251 = vmul.f32 %v250, 1.442695
      %v252 = vpow.pop %v251
      %v253 = vsel %vm166, %v252, 0.0
      %254 = vadd.xlane.f32.xlu0 %v253
      %v255 = vpop.xlane.xlu0 %254
      %v256 = vrcp.pop %v255
      %v257 = vmul.f32 %v252, %v256
      %v258 = vpack.c.bf16 %v257, %v257
      %259 = vrot.lane.b32.xlu0 %v163, 56
      %v260 = vpop.permute.xlu0 %259
      %v262 = vsel %vm166, %v258, 0
      %v265 = vsel %vm205, %v260, 0
      %267 = vmatpush.bf16.msra.mxu0 0
      %268 = vmatpush.bf16.msra.mxu0 0
      %269 = vmatpush.bf16.msra.mxu0 0
      %270 = vmatpush.bf16.msra.mxu0 0
      %271 = vmatpush.bf16.msra.mxu0 0
      %272 = vmatpush.bf16.msra.mxu0 0
      %273 = vmatpush.bf16.msra.mxu0 0
      %274 = vmatpush.bf16.msra.mxu0 %v265
      %275 = vmatmul.bf16.gmra.mxu0 %v262
      %v276 = vpop.f32.mrf.mxu0
      %v277 = vadd.f32 0.0, %v276
      %v278 = vpop.f32.mrf.mxu0
      %279 = vdwg.mxu0
      %280 = vrot.lane.b32.xlu0 %v163, 112
      %v281 = vpop.permute.xlu0 %280
      %282 = vrot.lane.b32.xlu0 %v163, 80
      %v283 = vpop.permute.xlu0 %282
      %v285 = vsel %vm166, %v281, 0
      %v288 = vsel %vm166, %v283, 0
      %290 = vmatpush.bf16.xpose.msra.mxu0 0
      %291 = vmatpush.bf16.xpose.msra.mxu0 0
      %292 = vmatpush.bf16.xpose.msra.mxu0 0
      %293 = vmatpush.bf16.xpose.msra.mxu0 0
      %294 = vmatpush.bf16.xpose.msra.mxu0 0
      %295 = vmatpush.bf16.xpose.msra.mxu0 0
      %296 = vmatpush.bf16.xpose.msra.mxu0 0
      %297 = vmatpush.bf16.xpose.msra.mxu0 %v288
      %298 = vmatmul.bf16.gmra.mxu0 %v285
      %v299 = vpop.f32.mrf.mxu0
      %v300 = vadd.f32 0.0, %v299
      %v301 = vpop.f32.mrf.mxu0
      %302 = vdwg.mxu0
      %v303 = vmul.f32 %v300, 0.35355338
      %v304 = vadd.f32 %v303, %v160
      %v305 = vsel %vm166, %v304, -inf
      %306 = vmax.xlane.f32.xlu0 %v305
      %v307 = vpop.xlane.xlu0 %306
      %v308 = vsub.f32 %v304, %v307
      %v309 = vmul.f32 %v308, 1.442695
      %v310 = vpow.pop %v309
      %v311 = vsel %vm166, %v310, 0.0
      %312 = vadd.xlane.f32.xlu0 %v311
      %v313 = vpop.xlane.xlu0 %312
      %v314 = vrcp.pop %v313
      %v315 = vmul.f32 %v310, %v314
      %v316 = vpack.c.bf16 %v315, %v315
      %317 = vrot.lane.b32.xlu0 %v163, 48
      %v318 = vpop.permute.xlu0 %317
      %v320 = vsel %vm166, %v316, 0
      %v323 = vsel %vm205, %v318, 0
      %325 = vmatpush.bf16.msra.mxu0 0
      %326 = vmatpush.bf16.msra.mxu0 0
      %327 = vmatpush.bf16.msra.mxu0 0
      %328 = vmatpush.bf16.msra.mxu0 0
      %329 = vmatpush.bf16.msra.mxu0 0
      %330 = vmatpush.bf16.msra.mxu0 0
      %331 = vmatpush.bf16.msra.mxu0 0
      %332 = vmatpush.bf16.msra.mxu0 %v323
      %333 = vmatmul.bf16.gmra.mxu0 %v320
      %v334 = vpop.f32.mrf.mxu0
      %v335 = vadd.f32 0.0, %v334
      %v336 = vpop.f32.mrf.mxu0
      %337 = vdwg.mxu0
      %338 = vrot.lane.b32.xlu0 %v163, 104
      %v339 = vpop.permute.xlu0 %338
      %340 = vrot.lane.b32.xlu0 %v163, 72
      %v341 = vpop.permute.xlu0 %340
      %v343 = vsel %vm166, %v339, 0
      %v346 = vsel %vm166, %v341, 0
      %348 = vmatpush.bf16.xpose.msra.mxu0 0
      %349 = vmatpush.bf16.xpose.msra.mxu0 0
      %350 = vmatpush.bf16.xpose.msra.mxu0 0
      %351 = vmatpush.bf16.xpose.msra.mxu0 0
      %352 = vmatpush.bf16.xpose.msra.mxu0 0
      %353 = vmatpush.bf16.xpose.msra.mxu0 0
      %354 = vmatpush.bf16.xpose.msra.mxu0 0
      %355 = vmatpush.bf16.xpose.msra.mxu0 %v346
      %356 = vmatmul.bf16.gmra.mxu0 %v343
      %v357 = vpop.f32.mrf.mxu0
      %v358 = vadd.f32 0.0, %v357
      %v359 = vpop.f32.mrf.mxu0
      %360 = vdwg.mxu0
      %v361 = vmul.f32 %v358, 0.35355338
      %v362 = vadd.f32 %v361, %v160
      %v363 = vsel %vm166, %v362, -inf
      %364 = vmax.xlane.f32.xlu0 %v363
      %v365 = vpop.xlane.xlu0 %364
      %v366 = vsub.f32 %v362, %v365
      %v367 = vmul.f32 %v366, 1.442695
      %v368 = vpow.pop %v367
      %v369 = vsel %vm166, %v368, 0.0
      %370 = vadd.xlane.f32.xlu0 %v369
      %v371 = vpop.xlane.xlu0 %370
      %v372 = vrcp.pop %v371
      %v373 = vmul.f32 %v368, %v372
      %v374 = vpack.c.bf16 %v373, %v373
      %375 = vrot.lane.b32.xlu0 %v163, 40
      %v376 = vpop.permute.xlu0 %375
      %v378 = vsel %vm166, %v374, 0
      %v381 = vsel %vm205, %v376, 0
      %383 = vmatpush.bf16.msra.mxu0 0
      %384 = vmatpush.bf16.msra.mxu0 0
      %385 = vmatpush.bf16.msra.mxu0 0
      %386 = vmatpush.bf16.msra.mxu0 0
      %387 = vmatpush.bf16.msra.mxu0 0
      %388 = vmatpush.bf16.msra.mxu0 0
      %389 = vmatpush.bf16.msra.mxu0 0
      %390 = vmatpush.bf16.msra.mxu0 %v381
      %391 = vmatmul.bf16.gmra.mxu0 %v378
      %v392 = vpop.f32.mrf.mxu0
      %v393 = vadd.f32 0.0, %v392
      %v394 = vpop.f32.mrf.mxu0
      %395 = vdwg.mxu0
      %397 = vrot.lane.b32.xlu0 %v277, 8
      %v398 = vpop.permute.xlu0 %397
      %401 = vrot.lane.b32.xlu0 %v335, 16
      %v402 = vpop.permute.xlu0 %401
      %405 = vrot.lane.b32.xlu0 %v393, 24
      %v406 = vpop.permute.xlu0 %405
      %v408 = vsel %vm166, %v219, %v398
      %vm409 = vcmask 130048
      %v410 = vsel %vm409, %v408, %v402
      %vm411 = vcmask 195584
      %v412 = vsel %vm411, %v410, %v406
      %v413 = vpack.c.bf16 %v412, %v412
      %vm414 = vcmask 257024
      %415 = vst.msk [vmem:[%s155] sm:$0xf] %vm414, %v413
      %p416 = scmp.lt.s32.totalorder %s13, 1
      %s417 = scalar_select %p416, %s13, 1
      %s418 = smul.addr %s417, 4
      %s419 = scalar_lea.vmem %s2, %s418
      // Predicated region
      $region29: #{transformer_forward.48} parent=27 // pred_check
        %p420 = pneg %p83
      $region30: #{transformer_forward.48} parent=27 // pred_check_branch
        %422 = sbr.rel (%p420) target = $region32
      $region31: #{transformer_forward.48} parent=27 // pred_region
        _
      $region32: #{transformer_forward.48} parent=27 // pred_fallthru
        _
    $region28: #{transformer_forward.48} parent=5 // pred_fallthru
      _
    %p423 = scmp.le.s32.totalorder 2, %s8
    // Predicated region
    $region33: #{transformer_forward.48} parent=5 // pred_check
      %p424 = pneg %p423
    $region34: #{transformer_forward.48} parent=5 // pred_check_branch
      %426 = sbr.rel (%p424) target = $region36
    $region35: #{transformer_forward.48} parent=5 // pred_region
      %s427 = ssub.s32 %s8, 2
      // Predicated region
      $region37: #{transformer_forward.48} parent=35 // pred_check
        %p428 = pneg %p89
      $region38: #{transformer_forward.48} parent=35 // pred_check_branch
        %430 = sbr.rel (%p428) target = $region40
      $region39: #{transformer_forward.48} parent=35 // pred_region
        %p431 = scmp.lt.s32.totalorder %s14, 1
        %s432 = scalar_select %p431, %s14, 1
        %s433 = smul.addr %s432, 4
        %s434 = scalar_lea.vmem %s2, %s433
      $region40: #{transformer_forward.48} parent=35 // pred_fallthru
        _
    $region36: #{transformer_forward.48} parent=5 // pred_fallthru
      _
  $region6: #{transformer_forward.48} parent=0 // loop_footer
    %s12 = sadd.s32 1, %s8
  $region7: #{transformer_forward.48} parent=0 // loop_footer_branch
    %7 = sbr.rel target = $region3
  $region8: #{transformer_forward.48} parent=0 // loop_exit
    _

// kernel: transformer_forward.67
$region0: #{transformer_forward.67}
  #allocation0 [shape = 'u32[]', space=smem, size = 0x4, offset = 0x4, fixed_abs, tag = 'smem constant byte address 0x4 - core index']
  #allocation1 [shape = 'u32[72,128]{1,0:T(1,128)}', space=vmem, size = 0x9000, scoped, tag = 'internal scratch']
  #allocation2 [shape = 'f32[16,48]{1,0:T(8,128)}', space=vmem, size = 0x2000, scoped, tag = 'scratch operand']
  %s0 = inlined_call_operand.vmem [shape: bf16[16,32], index: 0, kind: input, shape index: {}]
  %s1 = inlined_call_operand.vmem [shape: bf16[32,48], index: 1, kind: input, shape index: {}]
  %s2 = inlined_call_operand.vmem [shape: f32[1,48], index: 2, kind: input, shape index: {}]
  %s3 = inlined_call_operand.vmem [shape: f32[1,32], index: 3, kind: input, shape index: {}]
  %s4 = inlined_call_operand.vmem [shape: f32[1,32], index: 4, kind: input, shape index: {}]
  %s5 = inlined_call_operand.hbm [shape: f32[16,48], index: 5, kind: output, shape index: {}]
  %s6 = sld [smem:[#allocation0]]
  $region38: #{transformer_forward.67} parent=0
    _
  %s8 = ssub.s32 1, %s6
  %s9 = scalar_select 0, %s8, %s6
  $region1: #{transformer_forward.67} parent=0
    #allocation3 [shape = 'u8[8192]{0}', space=vmem, size = 0x2000, scoped, tag = 'output window, operand 0, single buffered']
    #allocation4 [shape = 's32[1]{0}', space=sflag, size = 0x4, scoped, tag = 'scoped memory for transformer_forward.67']
    %10 = vsyncpa [#allocation4], 0
    // Predicated region
    $region2: #{transformer_forward.67} parent=1 // pred_check
      _
    $region3: #{transformer_forward.67} parent=1 // pred_check_branch
      %12 = sbr.rel (0) target = $region5
    $region4: #{transformer_forward.67} parent=1 // pred_region
      _
    $region5: #{transformer_forward.67} parent=1 // pred_fallthru
      _
    // Predicated region
    $region6: #{transformer_forward.67} parent=1 // pred_check
      _
    $region7: #{transformer_forward.67} parent=1 // pred_check_branch
      %14 = sbr.rel (0) target = $region9
    $region8: #{transformer_forward.67} parent=1 // pred_region
      _
    $region9: #{transformer_forward.67} parent=1 // pred_fallthru
      _
    // Predicated region
    $region10: #{transformer_forward.67} parent=1 // pred_check
      _
    $region11: #{transformer_forward.67} parent=1 // pred_check_branch
      %16 = sbr.rel (0) target = $region13
    $region12: #{transformer_forward.67} parent=1 // pred_region
      _
    $region13: #{transformer_forward.67} parent=1 // pred_fallthru
      _
    // Predicated region
    $region14: #{transformer_forward.67} parent=1 // pred_check
      _
    $region15: #{transformer_forward.67} parent=1 // pred_check_branch
      %18 = sbr.rel (0) target = $region17
    $region16: #{transformer_forward.67} parent=1 // pred_region
      _
    $region17: #{transformer_forward.67} parent=1 // pred_fallthru
      _
    // Predicated region
    $region18: #{transformer_forward.67} parent=1 // pred_check
      _
    $region19: #{transformer_forward.67} parent=1 // pred_check_branch
      %20 = sbr.rel (0) target = $region21
    $region20: #{transformer_forward.67} parent=1 // pred_region
      _
    $region21: #{transformer_forward.67} parent=1 // pred_fallthru
      _
    %p22 = scmp.eq.s32.totalorder 0, 0
    // Predicated region
    $region22: #{transformer_forward.67} parent=1 // pred_check
      %p23 = pneg %p22
    $region23: #{transformer_forward.67} parent=1 // pred_check_branch
      %25 = sbr.rel (%p23) target = $region25
    $region24: #{transformer_forward.67} parent=1 // pred_region
      %vm26 = vcmask 392192
      %27 = vst.msk [vmem:[#allocation2] sm:$0xff] %vm26, 0.0
      %28 = vst.msk [vmem:[#allocation2 + $0x8] sm:$0xff] %vm26, 0.0
    $region25: #{transformer_forward.67} parent=1 // pred_fallthru
      _
    %v29 = vld [vmem:[%s0] sm:$0xf]
    %v30 = vld [vmem:[%s0 + $0x4] sm:$0xf]
    %v31 = vunpack.c.l.bf16 %v29
    %v32 = vunpack.c.l.bf16 %v30
    %vm33 = vcmask 261120
    %v34 = vsel %vm33, %v31, 0.0
    %35 = vadd.xlane.f32.xlu0 %v34
    %v36 = vpop.xlane.xlu0 %35
    %v37 = vsel %vm33, %v32, 0.0
    %38 = vadd.xlane.f32.xlu0 %v37
    %v39 = vpop.xlane.xlu0 %38
    %v40 = vrcp.pop 32.0
    %v41 = vmul.f32 32.0, %v40
    %v42 = vsub.f32 1.0, %v41
    %v43 = vmul.f32 %v40, %v42
    %v44 = vadd.f32 %v40, %v43
    %vm45 = vweird.f32 %v40
    %v46 = vsel %vm45, %v40, %v44
    %v47 = vmul.f32 %v36, %v46
    %v48 = vmul.f32 %v39, %v46
    %v49 = vsub.f32 %v31, %v47
    %v50 = vsub.f32 %v32, %v48
    %v51 = vmul.f32 %v49, %v49
    %v52 = vmul.f32 %v50, %v50
    %v53 = vsel %vm33, %v51, 0.0
    %54 = vadd.xlane.f32.xlu0 %v53
    %v55 = vpop.xlane.xlu0 %54
    %v56 = vsel %vm33, %v52, 0.0
    %57 = vadd.xlane.f32.xlu0 %v56
    %v58 = vpop.xlane.xlu0 %57
    %v59 = vrcp.pop 31.0
    %v60 = vmul.f32 31.0, %v59
    %v61 = vsub.f32 1.0, %v60
    %v62 = vmul.f32 %v59, %v61
    %v63 = vadd.f32 %v59, %v62
    %vm64 = vweird.f32 %v59
    %v65 = vsel %vm64, %v59, %v63
    %v66 = vmul.f32 %v55, %v65
    %v67 = vmul.f32 %v58, %v65
    %v68 = vrsqrt.pop %v66
    %v69 = vmul.f32 %v68, %v66
    %v70 = vmul.f32 %v69, %v68
    %v71 = vmul.f32 0.5, %v70
    %v72 = vsub.f32 1.5, %v71
    %v73 = vmul.f32 %v68, %v72
    %v74 = vmul.f32 %v66, %v73
    %vm75 = vcmp.eq.f32.partialorder %v66, inf
    %v76 = vsel %vm75, %v66, %v74
    %vm77 = vcmp.eq.f32.partialorder %v66, 0.0
    %v78 = vand.u32 %v66, 2147483648
    %v79 = vsel %vm77, %v78, %v76
    %v80 = vrsqrt.pop %v67
    %v81 = vmul.f32 %v80, %v67
    %v82 = vmul.f32 %v81, %v80
    %v83 = vmul.f32 0.5, %v82
    %v84 = vsub.f32 1.5, %v83
    %v85 = vmul.f32 %v80, %v84
    %v86 = vmul.f32 %v67, %v85
    %vm87 = vcmp.eq.f32.partialorder %v67, inf
    %v88 = vsel %vm87, %v67, %v86
    %vm89 = vcmp.eq.f32.partialorder %v67, 0.0
    %v90 = vand.u32 %v67, 2147483648
    %v91 = vsel %vm89, %v90, %v88
    %v92 = vadd.f32 %v79, 1e-06
    %v93 = vadd.f32 %v91, 1e-06
    %v94 = vrcp.pop %v92
    %v95 = vrcp.pop %v93
    %v96 = vld [vmem:[%s3] sm:$0x1]
    %v98 = vperm.slane %v96, 0
    %v100 = vmul.f32 %v98, %v49
    %v101 = vmul.f32 %v98, %v50
    %v102 = vmul.f32 %v100, %v94
    %v103 = vmul.f32 %v101, %v95
    %v104 = vld [vmem:[%s4] sm:$0x1]
    %v106 = vperm.slane %v104, 0
    %v108 = vadd.f32 %v102, %v106
    %v109 = vadd.f32 %v103, %v106
    %v110 = vpack.c.bf16 %v109, %v108
    %v111 = vld [vmem:[#allocation2] sm:$0xff]
    %v112 = vld [vmem:[#allocation2 + $0x8] sm:$0xff]
    %v113 = vld [vmem:[%s1] sm:$0xf]
    %v114 = vld [vmem:[%s1 + $0x4] sm:$0xf]
    %v115 = vld [vmem:[%s1 + $0x8] sm:$0xf]
    %v116 = vld [vmem:[%s1 + $0xc] sm:$0xf]
    %v121 = vunpack.c.l.b16 %v113
    %v122 = vunpack.c.l.b16 %v114
    %v123 = vunpack.c.l.b16 %v115
    %v124 = vunpack.c.l.b16 %v116
    %v125 = vpack.c.b16 %v122, %v121
    %v126 = vpack.c.b16 %v124, %v123
    %v130 = vsel %vm33, %v110, 0
    %132 = vmatpush.bf16.msra.mxu0 0
    %133 = vmatpush.bf16.msra.mxu0 0
    %134 = vmatpush.bf16.msra.mxu0 0
    %135 = vmatpush.bf16.msra.mxu0 0
    %136 = vmatpush.bf16.msra.mxu0 0
    %137 = vmatpush.bf16.msra.mxu0 0
    %138 = vmatpush.bf16.msra.mxu0 %v126
    %139 = vmatpush.bf16.msra.mxu0 %v125
    %140 = vmatmul.bf16.gmra.mxu0 %v130
    %v141 = vpop.f32.mrf.mxu0
    %v142 = vadd.f32 0.0, %v141
    %v143 = vpop.f32.mrf.mxu0
    %v144 = vadd.f32 0.0, %v143
    %145 = vdwg.mxu0
    %v146 = vadd.f32 %v111, %v142
    %v147 = vadd.f32 %v112, %v144
    %vm148 = vcmask 392192
    %149 = vst.msk [vmem:[#allocation2] sm:$0xff] %vm148, %v146
    %150 = vst.msk [vmem:[#allocation2 + $0x8] sm:$0xff] %vm148, %v147
    // Predicated region
    $region26: #{transformer_forward.67} parent=1 // pred_check
      %p151 = pneg %p22
    $region27: #{transformer_forward.67} parent=1 // pred_check_branch
      %153 = sbr.rel (%p151) target = $region29
    $region28: #{transformer_forward.67} parent=1 // pred_region
      %v154 = vld [vmem:[#allocation2] sm:$0xff]
      %v155 = vld [vmem:[#allocation2 + $0x8] sm:$0xff]
      %v156 = vld [vmem:[%s2] sm:$0x1]
      %v158 = vperm.slane %v156, 0
      %v160 = vadd.f32 %v154, %v158
      %v161 = vadd.f32 %v155, %v158
      %162 = vst.msk [vmem:[#allocation3] sm:$0xff] %vm148, %v160
      %163 = vst.msk [vmem:[#allocation3 + $0x8] sm:$0xff] %vm148, %v161
    $region29: #{transformer_forward.67} parent=1 // pred_fallthru
      _
    // Predicated region
    $region30: #{transformer_forward.67} parent=1 // pred_check
      _
    $region31: #{transformer_forward.67} parent=1 // pred_check_branch
      %165 = sbr.rel (0) target = $region33
    $region32: #{transformer_forward.67} parent=1 // pred_region
      %167 = vsyncadd [#allocation4], 0
      %s168 = sshll.u32 [#allocation3], 4
      %s169 = int_to_ptr.vmem [resolvable:$true] %s168
      %s170 = sshll.u32 %s5, 4
      %s171 = int_to_ptr.hbm [resolvable:$true] %s170
      %176 = dma.vmem_to_hbm [thread:$0]  %s169, 256, %s171, [#allocation4], 128, 128, 8
    $region33: #{transformer_forward.67} parent=1 // pred_fallthru
      _
    // Predicated region
    $region34: #{transformer_forward.67} parent=1 // pred_check
      _
    $region35: #{transformer_forward.67} parent=1 // pred_check_branch
      %178 = sbr.rel (0) target = $region37
    $region36: #{transformer_forward.67} parent=1 // pred_region
      %180 = dma.done [#allocation4], 256
    $region37: #{transformer_forward.67} parent=1 // pred_fallthru
      _
    %181 = vsyncpa [#allocation4], 1

// kernel: transformer_forward.52
$region0: #{transformer_forward.52}
  #allocation0 [shape = 'u32[]', space=smem, size = 0x4, offset = 0x4, fixed_abs, tag = 'smem constant byte address 0x4 - core index']
  #allocation1 [shape = 'u32[72,128]{1,0:T(1,128)}', space=vmem, size = 0x9000, scoped, tag = 'internal scratch']
  %s0 = inlined_call_operand.vmem [shape: bf16[2,8,32], index: 0, kind: input, shape index: {}]
  %s1 = inlined_call_operand.vmem [shape: bf16[2,8,64], index: 1, kind: input, shape index: {}]
  %s2 = inlined_call_operand.vmem [shape: f32[2,1,8], index: 2, kind: input, shape index: {}]
  %s3 = inlined_call_operand.vmem [shape: bf16[2,8,32], index: 3, kind: output, shape index: {}]
  %s4 = sld [smem:[#allocation0]]
  $region45: #{transformer_forward.52} parent=0
    _
  %s6 = ssub.s32 1, %s4
  %s7 = scalar_select 0, %s6, %s4
  loop: start=0, step=1, limit=4
  $region2: #{transformer_forward.52} parent=0 // loop_pre_header
    _
  $region3: #{transformer_forward.52} parent=0 // loop_header
    %s9 = sphi 0, %s13
    %p10 = scmp.ge.s32.totalorder %s9, 4
    %s19 = sphi 0, %s21
    %s22 = sphi 0, %s19
    %s23 = sphi 0, %s22
    %s39 = sphi 0, %s23
    %s45 = sphi 0, %s47
    %s48 = sphi 0, %s45
    %s49 = sphi 0, %s48
    %s65 = sphi 0, %s49
    %s71 = sphi 0, %s73
    %s74 = sphi 0, %s71
    %s75 = sphi 0, %s74
    %s91 = sphi 0, %s75
    %s97 = sphi 0, %s99
    %s100 = sphi 0, %s97
    %s101 = sphi 0, %s100
    %s117 = sphi 0, %s101
  $region4: #{transformer_forward.52} parent=0 // loop_header_branch
    %12 = sbr.rel (%p10) target = $region8
  $region5: #{transformer_forward.52} parent=0 // loop_body
    %s14 = ssub.s32 %s9, 1
    %s15 = ssub.s32 %s9, 2
    %s16 = sadd.s32 %s9, 1
    %s17 = ssub.s32 %s9, %s16
    %p18 = scmp.eq.s32.totalorder %s17, 0
    %s20 = sadd.s32 %s19, 1
    %s21 = scalar_select %p18, %s19, %s20
    %p24 = pneg %p18
    %p25 = scmp.eq.s32.totalorder %s9, 1
    %p26 = por %p24, %p25
    %p27 = scmp.ne.s32.totalorder %s19, %s22
    %p28 = scmp.eq.s32.totalorder %s9, 0
    %p29 = por %p27, %p28
    %p30 = scmp.ne.s32.totalorder %s19, %s22
    %p31 = scmp.eq.s32.totalorder %s14, 1
    %p32 = por %p30, %p31
    %p33 = scmp.ne.s32.totalorder %s22, %s23
    %p34 = scmp.eq.s32.totalorder %s14, 0
    %p35 = por %p33, %p34
    %p36 = scmp.ne.s32.totalorder %s22, %s23
    %p37 = scmp.eq.s32.totalorder %s15, 1
    %p38 = por %p36, %p37
    %p40 = scmp.ne.s32.totalorder %s23, %s39
    %p41 = scmp.eq.s32.totalorder %s15, 0
    %p42 = por %p40, %p41
    %s43 = ssub.s32 %s9, %s16
    %p44 = scmp.eq.s32.totalorder %s43, 0
    %s46 = sadd.s32 %s45, 1
    %s47 = scalar_select %p44, %s45, %s46
    %p50 = pneg %p44
    %p51 = scmp.eq.s32.totalorder %s9, 1
    %p52 = por %p50, %p51
    %p53 = scmp.ne.s32.totalorder %s45, %s48
    %p54 = scmp.eq.s32.totalorder %s9, 0
    %p55 = por %p53, %p54
    %p56 = scmp.ne.s32.totalorder %s45, %s48
    %p57 = scmp.eq.s32.totalorder %s14, 1
    %p58 = por %p56, %p57
    %p59 = scmp.ne.s32.totalorder %s48, %s49
    %p60 = scmp.eq.s32.totalorder %s14, 0
    %p61 = por %p59, %p60
    %p62 = scmp.ne.s32.totalorder %s48, %s49
    %p63 = scmp.eq.s32.totalorder %s15, 1
    %p64 = por %p62, %p63
    %p66 = scmp.ne.s32.totalorder %s49, %s65
    %p67 = scmp.eq.s32.totalorder %s15, 0
    %p68 = por %p66, %p67
    %s69 = ssub.s32 %s9, %s16
    %p70 = scmp.eq.s32.totalorder %s69, 0
    %s72 = sadd.s32 %s71, 1
    %s73 = scalar_select %p70, %s71, %s72
    %p76 = pneg %p70
    %p77 = scmp.eq.s32.totalorder %s9, 1
    %p78 = por %p76, %p77
    %p79 = scmp.ne.s32.totalorder %s71, %s74
    %p80 = scmp.eq.s32.totalorder %s9, 0
    %p81 = por %p79, %p80
    %p82 = scmp.ne.s32.totalorder %s71, %s74
    %p83 = scmp.eq.s32.totalorder %s14, 1
    %p84 = por %p82, %p83
    %p85 = scmp.ne.s32.totalorder %s74, %s75
    %p86 = scmp.eq.s32.totalorder %s14, 0
    %p87 = por %p85, %p86
    %p88 = scmp.ne.s32.totalorder %s74, %s75
    %p89 = scmp.eq.s32.totalorder %s15, 1
    %p90 = por %p88, %p89
    %p92 = scmp.ne.s32.totalorder %s75, %s91
    %p93 = scmp.eq.s32.totalorder %s15, 0
    %p94 = por %p92, %p93
    %s95 = ssub.s32 %s9, %s16
    %p96 = scmp.eq.s32.totalorder %s95, 0
    %s98 = sadd.s32 %s97, 1
    %s99 = scalar_select %p96, %s97, %s98
    %p102 = pneg %p96
    %p103 = scmp.eq.s32.totalorder %s9, 1
    %p104 = por %p102, %p103
    %p105 = scmp.ne.s32.totalorder %s97, %s100
    %p106 = scmp.eq.s32.totalorder %s9, 0
    %p107 = por %p105, %p106
    %p108 = scmp.ne.s32.totalorder %s97, %s100
    %p109 = scmp.eq.s32.totalorder %s14, 1
    %p110 = por %p108, %p109
    %p111 = scmp.ne.s32.totalorder %s100, %s101
    %p112 = scmp.eq.s32.totalorder %s14, 0
    %p113 = por %p111, %p112
    %p114 = scmp.ne.s32.totalorder %s100, %s101
    %p115 = scmp.eq.s32.totalorder %s15, 1
    %p116 = por %p114, %p115
    %p118 = scmp.ne.s32.totalorder %s101, %s117
    %p119 = scmp.eq.s32.totalorder %s15, 0
    %p120 = por %p118, %p119
    %p121 = scmp.le.s32.totalorder 1, %s9
    %p122 = scmp.lt.s32.totalorder %s9, 3
    %p123 = pnand %p121, %p122
    %p124 = pneg %p123
    // Predicated region
    $region9: #{transformer_forward.52} parent=5 // pred_check
      _
    $region10: #{transformer_forward.52} parent=5 // pred_check_branch
      %126 = sbr.rel (%p123) target = $region12
    $region11: #{transformer_forward.52} parent=5 // pred_region
      %s127 = ssub.s32 %s9, 1
    $region12: #{transformer_forward.52} parent=5 // pred_fallthru
      _
    %p128 = scmp.lt.s32.totalorder %s9, 2
    // Predicated region
    $region13: #{transformer_forward.52} parent=5 // pred_check
      %p129 = pneg %p128
    $region14: #{transformer_forward.52} parent=5 // pred_check_branch
      %131 = sbr.rel (%p129) target = $region16
    $region15: #{transformer_forward.52} parent=5 // pred_region
      // Predicated region
      $region17: #{transformer_forward.52} parent=15 // pred_check
        %p132 = pneg %p29
      $region18: #{transformer_forward.52} parent=15 // pred_check_branch
        %134 = sbr.rel (%p132) target = $region20
      $region19: #{transformer_forward.52} parent=15 // pred_region
        %p135 = scmp.lt.s32.totalorder %s9, 1
        %s136 = scalar_select %p135, %s9, 1
        %s137 = smul.addr %s136, 4
        %s138 = scalar_lea.vmem %s0, %s137
      $region20: #{transformer_forward.52} parent=15 // pred_fallthru
        _
      // Predicated region
      $region21: #{transformer_forward.52} parent=15 // pred_check
        %p139 = pneg %p55
      $region22: #{transformer_forward.52} parent=15 // pred_check_branch
        %141 = sbr.rel (%p139) target = $region24
      $region23: #{transformer_forward.52} parent=15 // pred_region
        %p142 = scmp.lt.s32.totalorder %s9, 1
        %s143 = scalar_select %p142, %s9, 1
        %s144 = smul.addr %s143, 4
        %s145 = scalar_lea.vmem %s1, %s144
      $region24: #{transformer_forward.52} parent=15 // pred_fallthru
        _
      // Predicated region
      $region25: #{transformer_forward.52} parent=15 // pred_check
        %p146 = pneg %p81
      $region26: #{transformer_forward.52} parent=15 // pred_check_branch
        %148 = sbr.rel (%p146) target = $region28
      $region27: #{transformer_forward.52} parent=15 // pred_region
        %p149 = scmp.lt.s32.totalorder %s9, 1
        %s150 = scalar_select %p149, %s9, 1
        %s151 = scalar_lea.vmem %s2, %s150
      $region28: #{transformer_forward.52} parent=15 // pred_fallthru
        _
    $region16: #{transformer_forward.52} parent=5 // pred_fallthru
      _
    %p152 = scmp.le.s32.totalorder 1, %s9
    %p153 = scmp.lt.s32.totalorder %s9, 3
    %p154 = pnand %p152, %p153
    %p155 = pneg %p154
    // Predicated region
    $region29: #{transformer_forward.52} parent=5 // pred_check
      _
    $region30: #{transformer_forward.52} parent=5 // pred_check_branch
      %157 = sbr.rel (%p154) target = $region32
    $region31: #{transformer_forward.52} parent=5 // pred_region
      %s158 = ssub.s32 %s9, 1
      %p159 = scmp.lt.s32.totalorder %s14, 1
      %s160 = scalar_select %p159, %s14, 1
      %s161 = smul.addr %s160, 4
      %s162 = scalar_lea.vmem %s0, %s161
      %p163 = pneg %p35
      %p164 = pneg %p32
      %p165 = scmp.lt.s32.totalorder %s14, 1
      %s166 = scalar_select %p165, %s14, 1
      %s167 = smul.addr %s166, 4
      %s168 = scalar_lea.vmem %s1, %s167
      %p169 = pneg %p61
      %p170 = pneg %p58
      %p171 = scmp.lt.s32.totalorder %s14, 1
      %s172 = scalar_select %p171, %s14, 1
      %s173 = scalar_lea.vmem %s2, %s172
      %p174 = pneg %p87
      %p175 = pneg %p84
      %p176 = pneg %p113
      %p177 = pneg %p110
      %p178 = scmp.lt.s32.totalorder %s14, 1
      %s179 = scalar_select %p178, %s14, 1
      %s180 = smul.addr %s179, 4
      %s181 = scalar_lea.vmem %s3, %s180
      %p182 = scmp.lt.s32.totalorder %s14, 1
      %s183 = scalar_select %p182, %s14, 1
      %s184 = smul.addr %s183, 4
      %s185 = scalar_lea.vmem %s0, %s184
      %p186 = scmp.lt.s32.totalorder %s14, 1
      %s187 = scalar_select %p186, %s14, 1
      %s188 = smul.addr %s187, 4
      %s189 = scalar_lea.vmem %s1, %s188
      %p190 = scmp.lt.s32.totalorder %s14, 1
      %s191 = scalar_select %p190, %s14, 1
      %s192 = scalar_lea.vmem %s2, %s191
      %p193 = scmp.lt.s32.totalorder %s14, 1
      %s194 = scalar_select %p193, %s14, 1
      %s195 = smul.addr %s194, 4
      %s196 = scalar_lea.vmem %s3, %s195
      %v198 = vld [vmem:[%s185] sm:$0xf]
      %v199 = vld [vmem:[%s189] sm:$0xf]
      %v200 = vld [vmem:[%s192] sm:$0x1]
      %vm201 = vcmp.eq.f32.partialorder %v200, 0.0
      %v202 = vsel %vm201, -1e+09, 0.0
      %vm203 = vcmask 64512
      %v205 = vsel %vm203, %v198, 0
      %v208 = vsel %vm203, %v199, 0
      %210 = vmatpush.bf16.xpose.msra.mxu0 0
      %211 = vmatpush.bf16.xpose.msra.mxu0 0
      %212 = vmatpush.bf16.xpose.msra.mxu0 0
      %213 = vmatpush.bf16.xpose.msra.mxu0 0
      %214 = vmatpush.bf16.xpose.msra.mxu0 0
      %215 = vmatpush.bf16.xpose.msra.mxu0 0
      %216 = vmatpush.bf16.xpose.msra.mxu0 0
      %217 = vmatpush.bf16.xpose.msra.mxu0 %v208
      %218 = vmatmul.bf16.gmra.mxu0 %v205
      %v219 = vpop.f32.mrf.mxu0
      %v220 = vadd.f32 0.0, %v219
      %v221 = vpop.f32.mrf.mxu0
      %222 = vdwg.mxu0
      %v223 = vmul.f32 %v220, 0.35355338
      %v225 = vperm.slane %v202, 0
      %v227 = vadd.f32 %v223, %v225
      %v228 = vsel %vm203, %v227, -inf
      %229 = vmax.xlane.f32.xlu0 %v228
      %v230 = vpop.xlane.xlu0 %229
      %v231 = vsub.f32 %v227, %v230
      %v232 = vmul.f32 %v231, 1.442695
      %v233 = vpow.pop %v232
      %v234 = vsel %vm203, %v233, 0.0
      %235 = vadd.xlane.f32.xlu0 %v234
      %v236 = vpop.xlane.xlu0 %235
      %v237 = vrcp.pop %v236
      %v238 = vmul.f32 %v233, %v237
      %v239 = vpack.c.bf16 %v238, %v238
      %v241 = vunpack.c.l.b16 %v199
      %v242 = vpack.c.b16 %v241, %v241
      %243 = vrot.lane.b32.xlu0 %v242, 96
      %v244 = vpop.permute.xlu0 %243
      %v246 = vsel %vm203, %v239, 0
      %vm248 = vcmask 1043456
      %v250 = vsel %vm248, %v244, 0
      %252 = vmatpush.bf16.msra.mxu0 0
      %253 = vmatpush.bf16.msra.mxu0 0
      %254 = vmatpush.bf16.msra.mxu0 0
      %255 = vmatpush.bf16.msra.mxu0 0
      %256 = vmatpush.bf16.msra.mxu0 0
      %257 = vmatpush.bf16.msra.mxu0 0
      %258 = vmatpush.bf16.msra.mxu0 0
      %259 = vmatpush.bf16.msra.mxu0 %v250
      %260 = vmatmul.bf16.gmra.mxu0 %v246
      %v261 = vpop.f32.mrf.mxu0
      %v262 = vadd.f32 0.0, %v261
      %v263 = vpop.f32.mrf.mxu0
      %264 = vdwg.mxu0
      %v266 = vunpack.c.l.b16 %v198
      %v267 = vpack.c.b16 %v266, %v266
      %268 = vrot.lane.b32.xlu0 %v267, 120
      %v269 = vpop.permute.xlu0 %268
      %270 = vrot.lane.b32.xlu0 %v242, 120
      %v271 = vpop.permute.xlu0 %270
      %v273 = vsel %vm203, %v269, 0
      %v276 = vsel %vm203, %v271, 0
      %278 = vmatpush.bf16.xpose.msra.mxu0 0
      %279 = vmatpush.bf16.xpose.msra.mxu0 0
      %280 = vmatpush.bf16.xpose.msra.mxu0 0
      %281 = vmatpush.bf16.xpose.msra.mxu0 0
      %282 = vmatpush.bf16.xpose.msra.mxu0 0
      %283 = vmatpush.bf16.xpose.msra.mxu0 0
      %284 = vmatpush.bf16.xpose.msra.mxu0 0
      %285 = vmatpush.bf16.xpose.msra.mxu0 %v276
      %286 = vmatmul.bf16.gmra.mxu0 %v273
      %v287 = vpop.f32.mrf.mxu0
      %v288 = vadd.f32 0.0, %v287
      %v289 = vpop.f32.mrf.mxu0
      %290 = vdwg.mxu0
      %v291 = vmul.f32 %v288, 0.35355338
      %v292 = vadd.f32 %v291, %v225
      %v293 = vsel %vm203, %v292, -inf
      %294 = vmax.xlane.f32.xlu0 %v293
      %v295 = vpop.xlane.xlu0 %294
      %v296 = vsub.f32 %v292, %v295
      %v297 = vmul.f32 %v296, 1.442695
      %v298 = vpow.pop %v297
      %v299 = vsel %vm203, %v298, 0.0
      %300 = vadd.xlane.f32.xlu0 %v299
      %v301 = vpop.xlane.xlu0 %300
      %v302 = vrcp.pop %v301
      %v303 = vmul.f32 %v298, %v302
      %v304 = vpack.c.bf16 %v303, %v303
      %305 = vrot.lane.b32.xlu0 %v242, 88
      %v306 = vpop.permute.xlu0 %305
      %v308 = vsel %vm203, %v304, 0
      %v311 = vsel %vm248, %v306, 0
      %313 = vmatpush.bf16.msra.mxu0 0
      %314 = vmatpush.bf16.msra.mxu0 0
      %315 = vmatpush.bf16.msra.mxu0 0
      %316 = vmatpush.bf16.msra.mxu0 0
      %317 = vmatpush.bf16.msra.mxu0 0
      %318 = vmatpush.bf16.msra.mxu0 0
      %319 = vmatpush.bf16.msra.mxu0 0
      %320 = vmatpush.bf16.msra.mxu0 %v311
      %321 = vmatmul.bf16.gmra.mxu0 %v308
      %v322 = vpop.f32.mrf.mxu0
      %v323 = vadd.f32 0.0, %v322
      %v324 = vpop.f32.mrf.mxu0
      %325 = vdwg.mxu0
      %326 = vrot.lane.b32.xlu0 %v267, 112
      %v327 = vpop.permute.xlu0 %326
      %328 = vrot.lane.b32.xlu0 %v242, 112
      %v329 = vpop.permute.xlu0 %328
      %v331 = vsel %vm203, %v327, 0
      %v334 = vsel %vm203, %v329, 0
      %336 = vmatpush.bf16.xpose.msra.mxu0 0
      %337 = vmatpush.bf16.xpose.msra.mxu0 0
      %338 = vmatpush.bf16.xpose.msra.mxu0 0
      %339 = vmatpush.bf16.xpose.msra.mxu0 0
      %340 = vmatpush.bf16.xpose.msra.mxu0 0
      %341 = vmatpush.bf16.xpose.msra.mxu0 0
      %342 = vmatpush.bf16.xpose.msra.mxu0 0
      %343 = vmatpush.bf16.xpose.msra.mxu0 %v334
      %344 = vmatmul.bf16.gmra.mxu0 %v331
      %v345 = vpop.f32.mrf.mxu0
      %v346 = vadd.f32 0.0, %v345
      %v347 = vpop.f32.mrf.mxu0
      %348 = vdwg.mxu0
      %v349 = vmul.f32 %v346, 0.35355338
      %v350 = vadd.f32 %v349, %v225
      %v351 = vsel %vm203, %v350, -inf
      %352 = vmax.xlane.f32.xlu0 %v351
      %v353 = vpop.xlane.xlu0 %352
      %v354 = vsub.f32 %v350, %v353
      %v355 = vmul.f32 %v354, 1.442695
      %v356 = vpow.pop %v355
      %v357 = vsel %vm203, %v356, 0.0
      %358 = vadd.xlane.f32.xlu0 %v357
      %v359 = vpop.xlane.xlu0 %358
      %v360 = vrcp.pop %v359
      %v361 = vmul.f32 %v356, %v360
      %v362 = vpack.c.bf16 %v361, %v361
      %363 = vrot.lane.b32.xlu0 %v242, 80
      %v364 = vpop.permute.xlu0 %363
      %v366 = vsel %vm203, %v362, 0
      %v369 = vsel %vm248, %v364, 0
      %371 = vmatpush.bf16.msra.mxu0 0
      %372 = vmatpush.bf16.msra.mxu0 0
      %373 = vmatpush.bf16.msra.mxu0 0
      %374 = vmatpush.bf16.msra.mxu0 0
      %375 = vmatpush.bf16.msra.mxu0 0
      %376 = vmatpush.bf16.msra.mxu0 0
      %377 = vmatpush.bf16.msra.mxu0 0
      %378 = vmatpush.bf16.msra.mxu0 %v369
      %379 = vmatmul.bf16.gmra.mxu0 %v366
      %v380 = vpop.f32.mrf.mxu0
      %v381 = vadd.f32 0.0, %v380
      %v382 = vpop.f32.mrf.mxu0
      %383 = vdwg.mxu0
      %384 = vrot.lane.b32.xlu0 %v267, 104
      %v385 = vpop.permute.xlu0 %384
      %386 = vrot.lane.b32.xlu0 %v242, 104
      %v387 = vpop.permute.xlu0 %386
      %v389 = vsel %vm203, %v385, 0
      %v392 = vsel %vm203, %v387, 0
      %394 = vmatpush.bf16.xpose.msra.mxu0 0
      %395 = vmatpush.bf16.xpose.msra.mxu0 0
      %396 = vmatpush.bf16.xpose.msra.mxu0 0
      %397 = vmatpush.bf16.xpose.msra.mxu0 0
      %398 = vmatpush.bf16.xpose.msra.mxu0 0
      %399 = vmatpush.bf16.xpose.msra.mxu0 0
      %400 = vmatpush.bf16.xpose.msra.mxu0 0
      %401 = vmatpush.bf16.xpose.msra.mxu0 %v392
      %402 = vmatmul.bf16.gmra.mxu0 %v389
      %v403 = vpop.f32.mrf.mxu0
      %v404 = vadd.f32 0.0, %v403
      %v405 = vpop.f32.mrf.mxu0
      %406 = vdwg.mxu0
      %v407 = vmul.f32 %v404, 0.35355338
      %v408 = vadd.f32 %v407, %v225
      %v409 = vsel %vm203, %v408, -inf
      %410 = vmax.xlane.f32.xlu0 %v409
      %v411 = vpop.xlane.xlu0 %410
      %v412 = vsub.f32 %v408, %v411
      %v413 = vmul.f32 %v412, 1.442695
      %v414 = vpow.pop %v413
      %v415 = vsel %vm203, %v414, 0.0
      %416 = vadd.xlane.f32.xlu0 %v415
      %v417 = vpop.xlane.xlu0 %416
      %v418 = vrcp.pop %v417
      %v419 = vmul.f32 %v414, %v418
      %v420 = vpack.c.bf16 %v419, %v419
      %421 = vrot.lane.b32.xlu0 %v242, 72
      %v422 = vpop.permute.xlu0 %421
      %v424 = vsel %vm203, %v420, 0
      %v427 = vsel %vm248, %v422, 0
      %429 = vmatpush.bf16.msra.mxu0 0
      %430 = vmatpush.bf16.msra.mxu0 0
      %431 = vmatpush.bf16.msra.mxu0 0
      %432 = vmatpush.bf16.msra.mxu0 0
      %433 = vmatpush.bf16.msra.mxu0 0
      %434 = vmatpush.bf16.msra.mxu0 0
      %435 = vmatpush.bf16.msra.mxu0 0
      %436 = vmatpush.bf16.msra.mxu0 %v427
      %437 = vmatmul.bf16.gmra.mxu0 %v424
      %v438 = vpop.f32.mrf.mxu0
      %v439 = vadd.f32 0.0, %v438
      %v440 = vpop.f32.mrf.mxu0
      %441 = vdwg.mxu0
      %443 = vrot.lane.b32.xlu0 %v323, 8
      %v444 = vpop.permute.xlu0 %443
      %447 = vrot.lane.b32.xlu0 %v381, 16
      %v448 = vpop.permute.xlu0 %447
      %451 = vrot.lane.b32.xlu0 %v439, 24
      %v452 = vpop.permute.xlu0 %451
      %v454 = vsel %vm203, %v262, %v444
      %vm455 = vcmask 130048
      %v456 = vsel %vm455, %v454, %v448
      %vm457 = vcmask 195584
      %v458 = vsel %vm457, %v456, %v452
      %v459 = vpack.c.bf16 %v458, %v458
      %vm460 = vcmask 257024
      %461 = vst.msk [vmem:[%s196] sm:$0xf] %vm460, %v459
      %p462 = scmp.lt.s32.totalorder %s14, 1
      %s463 = scalar_select %p462, %s14, 1
      %s464 = smul.addr %s463, 4
      %s465 = scalar_lea.vmem %s3, %s464
      // Predicated region
      $region33: #{transformer_forward.52} parent=31 // pred_check
        %p466 = pneg %p110
      $region34: #{transformer_forward.52} parent=31 // pred_check_branch
        %468 = sbr.rel (%p466) target = $region36
      $region35: #{transformer_forward.52} parent=31 // pred_region
        _
      $region36: #{transformer_forward.52} parent=31 // pred_fallthru
        _
    $region32: #{transformer_forward.52} parent=5 // pred_fallthru
      _
    %p469 = scmp.le.s32.totalorder 2, %s9
    // Predicated region
    $region37: #{transformer_forward.52} parent=5 // pred_check
      %p470 = pneg %p469
    $region38: #{transformer_forward.52} parent=5 // pred_check_branch
      %472 = sbr.rel (%p470) target = $region40
    $region39: #{transformer_forward.52} parent=5 // pred_region
      %s473 = ssub.s32 %s9, 2
      // Predicated region
      $region41: #{transformer_forward.52} parent=39 // pred_check
        %p474 = pneg %p116
      $region42: #{transformer_forward.52} parent=39 // pred_check_branch
        %476 = sbr.rel (%p474) target = $region44
      $region43: #{transformer_forward.52} parent=39 // pred_region
        %p477 = scmp.lt.s32.totalorder %s15, 1
        %s478 = scalar_select %p477, %s15, 1
        %s479 = smul.addr %s478, 4
        %s480 = scalar_lea.vmem %s3, %s479
      $region44: #{transformer_forward.52} parent=39 // pred_fallthru
        _
    $region40: #{transformer_forward.52} parent=5 // pred_fallthru
      _
  $region6: #{transformer_forward.52} parent=0 // loop_footer
    %s13 = sadd.s32 1, %s9
  $region7: #{transformer_forward.52} parent=0 // loop_footer_branch
    %8 = sbr.rel target = $region3
  $region8: #{transformer_forward.52} parent=0 // loop_exit
    _

</llo_original>
